<compile_context>
chip_gen: v7x
topology: tpu7x:2x2x1
jax: 0.10.0
libtpu: 0.0.40
codegen_flags: <defaults>
</compile_context>

<pallas_src>
import functools

import jax
import jax.numpy as jnp
from jax.experimental import pallas as pl
from jax.experimental.pallas import tpu as pltpu


_ALIGN = 8     # interior of the padded scratch starts at this sublane-aligned column
_LANES = 128   # TPU lane width; cv2 output channels are padded up to a multiple


def _round_up(n, m):
    return ((n + m - 1) // m) * m


def _make_bottleneck_kernel(H, W, C1, Cmid, C2p, add_residual, compute_dtype):
    HW = H * W
    WP = W + 2 * _ALIGN

    def _im2col_3x3(pad_ref, cin):
        """Gather the 9 shifted 3x3 taps from a zero-haloed scratch into a single
        (H*W, 9*cin) matrix: one lane-axis concat + one layout-benign reshape."""
        taps = []
        for dy in range(3):
            for dx in range(3):
                c0 = _ALIGN - 1 + dx          # column of the (dx-1) shifted window
                taps.append(pad_ref[dy:dy + H, c0:c0 + W, :])
        col = jnp.concatenate(taps, axis=-1)  # (H, W, 9*cin), tap order (dy, dx, c)
        return col.reshape(HW, 9 * cin)       # W % 8 == 0 -> minor dim preserved

    def _zero_halo(pad_ref, cin):
        """Zero only the halo the 3x3 taps actually read (rows 0 / H+1, and the
        column strips around the interior).  The interior rows [1, H+1) x cols
        [_ALIGN, _ALIGN+W) are fully overwritten immediately afterwards."""
        z_row = jnp.zeros((1, WP, cin), compute_dtype)
        z_col = jnp.zeros((H, _ALIGN, cin), compute_dtype)
        pad_ref[0:1, :, :] = z_row
        pad_ref[H + 1:H + 2, :, :] = z_row
        pad_ref[1:H + 1, 0:_ALIGN, :] = z_col
        pad_ref[1:H + 1, _ALIGN + W:WP, :] = z_col

    def _body(x_ref, w1_ref, w2_ref, s1_ref, b1_ref, s2_ref, b2_ref, res_ref,
              out_ref, xpad_ref, ypad_ref):
        # Re-zero the halo every step: with a "parallel" batch axis each
        # TensorCore owns its own scratch, so a program_id==0-only init would
        # leave other cores' halos undefined.  This is cheap now (halo only).
        _zero_halo(xpad_ref, C1)
        _zero_halo(ypad_ref, Cmid)
        xpad_ref[1:H + 1, _ALIGN:_ALIGN + W, :] = x_ref[0]   # aligned interior fill

        # ---- cv1: single K=9*C1 matmul (bf16 x bf16 -> f32) + folded BN + SiLU ----
        col1 = _im2col_3x3(xpad_ref, C1)                                 # (HW, 9*C1)
        acc1 = jnp.dot(col1, w1_ref[...], preferred_element_type=jnp.float32)
        y = acc1 * s1_ref[...] + b1_ref[...]
        y = y * jax.nn.sigmoid(y)                                        # SiLU, f32
        # Intermediate activation stays on-chip (bf16 operand for cv2).
        ypad_ref[1:H + 1, _ALIGN:_ALIGN + W, :] = (
            y.reshape(H, W, Cmid).astype(compute_dtype))

        # ---- cv2: single K=9*Cmid matmul + folded BN + SiLU (+ residual) ----
        # N = C2p (multiple of 128): lane-dense epilogue and unmasked output store.
        col2 = _im2col_3x3(ypad_ref, Cmid)                               # (HW, 9*Cmid)
        acc2 = jnp.dot(col2, w2_ref[...], preferred_element_type=jnp.float32)
        z = acc2 * s2_ref[...] + b2_ref[...]
        z = z * jax.nn.sigmoid(z)
        if add_residual:
            z = z + res_ref[0]       # original (un-quantized) f32 input, lane-dense
        out_ref[0] = z.astype(out_ref.dtype)

    if add_residual:
        def kernel(x_ref, w1_ref, w2_ref, s1_ref, b1_ref, s2_ref, b2_ref, res_ref,
                   out_ref, xpad_ref, ypad_ref):
            _body(x_ref, w1_ref, w2_ref, s1_ref, b1_ref, s2_ref, b2_ref, res_ref,
                  out_ref, xpad_ref, ypad_ref)
    else:
        def kernel(x_ref, w1_ref, w2_ref, s1_ref, b1_ref, s2_ref, b2_ref,
                   out_ref, xpad_ref, ypad_ref):
            _body(x_ref, w1_ref, w2_ref, s1_ref, b1_ref, s2_ref, b2_ref, None,
                  out_ref, xpad_ref, ypad_ref)

    return kernel


def bottleneck_fused(x_nhwc, w1, w2, s1, b1, s2, b2, *, add,
                     compute_dtype=jnp.bfloat16):
    """Fused Bottleneck forward in NHWC. Weights are HWIO (3,3,Cin,Cout);
    s*/b* are the folded (eval-mode) BatchNorm scale/bias. Returns (B,H,W,C2)."""
    B, H, W, C1 = x_nhwc.shape
    # Layout assumptions made inside the kernel (see _im2col_3x3 / weight flatten).
    assert W % 8 == 0, "kernel assumes W is a multiple of 8 (sublane-preserving reshape)"
    assert w1.shape[:3] == (3, 3, C1), "w1 must be HWIO (3,3,C1,Cmid)"
    Cmid = w1.shape[-1]
    assert w2.shape[:3] == (3, 3, Cmid), "w2 must be HWIO (3,3,Cmid,C2)"
    C2 = w2.shape[-1]
    HW = H * W
    C2p = _round_up(max(C2, _LANES), _LANES)       # lane-dense output channel count
    out_dtype = x_nhwc.dtype
    WP = W + 2 * _ALIGN

    # bf16 MXU operands; weights flattened HWIO -> (9*Cin, Cout) so each conv is a
    # single contraction.  Flattening order (kh, kw, cin) matches the in-kernel
    # im2col concatenation order.  cv2's Cout is zero-padded to C2p so every
    # epilogue/store is a full 128-lane vector op; the pad is sliced off below.
    xc = x_nhwc.astype(compute_dtype)
    w1f = w1.reshape(9 * C1, Cmid).astype(compute_dtype)
    w2f = (jnp.zeros((9 * Cmid, C2p), compute_dtype)
           .at[:, :C2].set(w2.reshape(9 * Cmid, C2).astype(compute_dtype)))
    s1r = s1.reshape(1, Cmid).astype(jnp.float32)
    b1r = b1.reshape(1, Cmid).astype(jnp.float32)
    s2r = (jnp.zeros((1, C2p), jnp.float32)
           .at[:, :C2].set(s2.reshape(1, C2).astype(jnp.float32)))
    b2r = (jnp.zeros((1, C2p), jnp.float32)
           .at[:, :C2].set(b2.reshape(1, C2).astype(jnp.float32)))

    kernel = _make_bottleneck_kernel(H, W, C1, Cmid, C2p, add, compute_dtype)

    in_specs = [
        pl.BlockSpec((1, H, W, C1), lambda b: (b, 0, 0, 0)),   # x (conv operand)
        pl.BlockSpec((9 * C1, Cmid), lambda b: (0, 0)),        # w1 flat (VMEM-resident)
        pl.BlockSpec((9 * Cmid, C2p), lambda b: (0, 0)),       # w2 flat, Cout padded
        pl.BlockSpec((1, Cmid), lambda b: (0, 0)),             # bn1 scale
        pl.BlockSpec((1, Cmid), lambda b: (0, 0)),             # bn1 bias
        pl.BlockSpec((1, C2p), lambda b: (0, 0)),              # bn2 scale (padded)
        pl.BlockSpec((1, C2p), lambda b: (0, 0)),              # bn2 bias (padded)
    ]
    args = [xc, w1f, w2f, s1r, b1r, s2r, b2r]
    if add:
        assert C1 == C2, "shortcut requires c1 == c2"
        # Original f32 input as the residual operand (PyTorch bit-parity), laid
        # out lane-dense to match the output slab (channels zero-padded to C2p).
        res = (jnp.zeros((B, HW, C2p), jnp.float32)
               .at[:, :, :C1].set(x_nhwc.reshape(B, HW, C1).astype(jnp.float32)))
        in_specs.append(pl.BlockSpec((1, HW, C2p), lambda b: (b, 0, 0)))
        args.append(res)

    out_flat = pl.pallas_call(
        kernel,
        out_shape=jax.ShapeDtypeStruct((B, HW, C2p), out_dtype),
        grid=(B,),
        in_specs=in_specs,
        out_specs=pl.BlockSpec((1, HW, C2p), lambda b: (b, 0, 0)),
        scratch_shapes=[
            pltpu.VMEM((H + 2, WP, C1), compute_dtype),    # zero-haloed input
            pltpu.VMEM((H + 2, WP, Cmid), compute_dtype),  # zero-haloed cv1 output
        ],
        compiler_params=pltpu.CompilerParams(
            dimension_semantics=("parallel",),
            vmem_limit_bytes=32 * 1024 * 1024),
    )(*args)

    return out_flat[:, :, :C2].reshape(B, H, W, C2)


def fold_bn(gamma, beta, mean, var, eps=1e-3):
    """Fold eval-mode BatchNorm2d (eps=0.001 like ultralytics) into scale/bias."""
    scale = gamma / jnp.sqrt(var + eps)
    bias = beta - mean * scale
    return scale, bias


@functools.partial(jax.jit, static_argnames=("shortcut",))
def bottleneck_forward(x_nchw, params, shortcut=True):
    """Bottleneck.forward: x + cv2(cv1(x)) if add else cv2(cv1(x)). NCHW in/out."""
    c1 = x_nchw.shape[1]
    c2 = params["w2"].shape[-1]
    add = shortcut and (c1 == c2)
    x = jnp.transpose(x_nchw, (0, 2, 3, 1))           # NCHW -> NHWC
    y = bottleneck_fused(x, params["w1"], params["w2"],
                         params["s1"], params["b1"], params["s2"], params["b2"],
                         add=add)
    return jnp.transpose(y, (0, 3, 1, 2))             # NHWC -> NCHW


# ---------------- reference (pure JAX) for correctness check ----------------
def _q(x, dtype):
    """Round-trip through the kernel's matmul operand dtype (bf16)."""
    return x.astype(dtype).astype(jnp.float32)


def _ref_conv_bn_silu(x_nhwc, w_hwio, scale, bias, compute_dtype):
    y = jax.lax.conv_general_dilated(
        _q(x_nhwc, compute_dtype), _q(w_hwio, compute_dtype),
        window_strides=(1, 1), padding="SAME",
        dimension_numbers=("NHWC", "HWIO", "NHWC"),
        preferred_element_type=jnp.float32)
    y = y * scale + bias
    return y * jax.nn.sigmoid(y)


def _ref_bottleneck(x_nchw, params, shortcut=True, compute_dtype=jnp.bfloat16):
    c1 = x_nchw.shape[1]
    c2 = params["w2"].shape[-1]
    add = shortcut and (c1 == c2)
    x = jnp.transpose(x_nchw, (0, 2, 3, 1)).astype(jnp.float32)
    y = _ref_conv_bn_silu(x, params["w1"], params["s1"], params["b1"], compute_dtype)
    y = _ref_conv_bn_silu(y, params["w2"], params["s2"], params["b2"], compute_dtype)
    if add:
        y = y + x                     # residual uses the original f32 input
    return jnp.transpose(y, (0, 3, 1, 2))


if __name__ == "__main__":
    key = jax.random.PRNGKey(0)
    B, C1, H, W = 2, 4, 16, 16
    C2 = C1                      # shortcut requires c1 == c2
    e = 0.5
    C_ = int(C2 * e)             # hidden channels = 2

    ks = jax.random.split(key, 11)
    # Conv weights (HWIO), no conv bias (Conv2d(..., bias=False) inside Conv).
    w1 = 0.1 * jax.random.normal(ks[0], (3, 3, C1, C_), jnp.float32)
    w2 = 0.1 * jax.random.normal(ks[1], (3, 3, C_, C2), jnp.float32)
    # BatchNorm parameters (eval mode, running stats), folded to scale/bias.
    g1 = 1.0 + 0.1 * jax.random.normal(ks[2], (C_,), jnp.float32)
    b1 = 0.1 * jax.random.normal(ks[3], (C_,), jnp.float32)
    m1 = 0.1 * jax.random.normal(ks[4], (C_,), jnp.float32)
    v1 = 0.5 + jnp.abs(jax.random.normal(ks[5], (C_,), jnp.float32))
    g2 = 1.0 + 0.1 * jax.random.normal(ks[6], (C2,), jnp.float32)
    b2 = 0.1 * jax.random.normal(ks[7], (C2,), jnp.float32)
    m2 = 0.1 * jax.random.normal(ks[8], (C2,), jnp.float32)
    v2 = 0.5 + jnp.abs(jax.random.normal(ks[9], (C2,), jnp.float32))

    s1, bb1 = fold_bn(g1, b1, m1, v1)
    s2, bb2 = fold_bn(g2, b2, m2, v2)
    params = {"w1": w1, "s1": s1, "b1": bb1,
              "w2": w2, "s2": s2, "b2": bb2}

    x = jax.random.normal(ks[10], (B, C1, H, W), jnp.float32)  # NCHW like PyTorch

    out = bottleneck_forward(x, params, shortcut=True)
    out = jax.block_until_ready(out)

    ref = _ref_bottleneck(x, params, shortcut=True)
    assert out.shape == (B, C2, H, W)
    max_err = jnp.max(jnp.abs(out - ref))
    assert jnp.allclose(out, ref, atol=5e-3, rtol=5e-3), (
        f"mismatch vs reference, max abs err = {max_err}")

    print("KERNEL_OK")
</pallas_src>

<mosaic_0001>
module attributes {stable_mosaic.version = 11 : i64} {
  func.func @kernel(%arg0: i32, %arg1: memref<1x16x16x4xbf16, #tpu.memory_space<vmem>>, %arg2: memref<36x2xbf16, #tpu.memory_space<vmem>>, %arg3: memref<18x128xbf16, #tpu.memory_space<vmem>>, %arg4: memref<1x2xf32, #tpu.memory_space<vmem>>, %arg5: memref<1x2xf32, #tpu.memory_space<vmem>>, %arg6: memref<1x128xf32, #tpu.memory_space<vmem>>, %arg7: memref<1x128xf32, #tpu.memory_space<vmem>>, %arg8: memref<1x256x128xf32, #tpu.memory_space<vmem>>, %arg9: memref<1x256x128xf32, #tpu.memory_space<vmem>>, %arg10: memref<18x32x4xbf16, #tpu.memory_space<vmem>>, %arg11: memref<18x32x2xbf16, #tpu.memory_space<vmem>>) attributes {dimension_semantics = [#tpu.dimension_semantics<parallel>], iteration_bounds = array<i64: 2>, scalar_prefetch = 0 : i64, scratch_operands = 2 : i64, tpu.core_type = #tpu.core_type<tc>, window_params = [{transform_indices = @transform_0, window_bounds = array<i64: 1, 16, 16, 4>}, {pipeline_mode = #tpu.pipeline_mode<synchronous>, transform_indices = @transform_1, window_bounds = array<i64: 36, 2>}, {pipeline_mode = #tpu.pipeline_mode<synchronous>, transform_indices = @transform_2, window_bounds = array<i64: 18, 128>}, {pipeline_mode = #tpu.pipeline_mode<synchronous>, transform_indices = @transform_3, window_bounds = array<i64: 1, 2>}, {pipeline_mode = #tpu.pipeline_mode<synchronous>, transform_indices = @transform_4, window_bounds = array<i64: 1, 2>}, {pipeline_mode = #tpu.pipeline_mode<synchronous>, transform_indices = @transform_5, window_bounds = array<i64: 1, 128>}, {pipeline_mode = #tpu.pipeline_mode<synchronous>, transform_indices = @transform_6, window_bounds = array<i64: 1, 128>}, {transform_indices = @transform_7, window_bounds = array<i64: 1, 256, 128>}, {transform_indices = @transform_8, window_bounds = array<i64: 1, 256, 128>}]} {
    %cst = arith.constant 0.000000e+00 : bf16
    %0 = vector.broadcast %cst : bf16 to vector<1x32x4xbf16>
    %cst_0 = arith.constant 0.000000e+00 : bf16
    %1 = vector.broadcast %cst_0 : bf16 to vector<16x8x4xbf16>
    %c0 = arith.constant 0 : index
    %c0_1 = arith.constant 0 : index
    %c0_2 = arith.constant 0 : index
    %2 = vector.load %arg10[%c0, %c0_1, %c0_2] : memref<18x32x4xbf16, #tpu.memory_space<vmem>>, vector<1x32x4xbf16>
    tpu.vector_store %arg10[%c0, %c0_1, %c0_2], %0 {strides = array<i32>} : memref<18x32x4xbf16, #tpu.memory_space<vmem>>, vector<1x32x4xbf16>,
    %c17 = arith.constant 17 : index
    %c0_3 = arith.constant 0 : index
    %c0_4 = arith.constant 0 : index
    %3 = vector.load %arg10[%c17, %c0_3, %c0_4] : memref<18x32x4xbf16, #tpu.memory_space<vmem>>, vector<1x32x4xbf16>
    tpu.vector_store %arg10[%c17, %c0_3, %c0_4], %0 {strides = array<i32>} : memref<18x32x4xbf16, #tpu.memory_space<vmem>>, vector<1x32x4xbf16>,
    %c1 = arith.constant 1 : index
    %c0_5 = arith.constant 0 : index
    %c0_6 = arith.constant 0 : index
    %4 = vector.load %arg10[%c1, %c0_5, %c0_6] : memref<18x32x4xbf16, #tpu.memory_space<vmem>>, vector<16x8x4xbf16>
    tpu.vector_store %arg10[%c1, %c0_5, %c0_6], %1 {strides = array<i32>} : memref<18x32x4xbf16, #tpu.memory_space<vmem>>, vector<16x8x4xbf16>,
    %c1_7 = arith.constant 1 : index
    %c24 = arith.constant 24 : index
    %c0_8 = arith.constant 0 : index
    %5 = vector.load %arg10[%c1_7, %c24, %c0_8] : memref<18x32x4xbf16, #tpu.memory_space<vmem>>, vector<16x8x4xbf16>
    tpu.vector_store %arg10[%c1_7, %c24, %c0_8], %1 {strides = array<i32>} : memref<18x32x4xbf16, #tpu.memory_space<vmem>>, vector<16x8x4xbf16>,
    %cst_9 = arith.constant 0.000000e+00 : bf16
    %6 = vector.broadcast %cst_9 : bf16 to vector<1x32x2xbf16>
    %cst_10 = arith.constant 0.000000e+00 : bf16
    %7 = vector.broadcast %cst_10 : bf16 to vector<16x8x2xbf16>
    %c0_11 = arith.constant 0 : index
    %c0_12 = arith.constant 0 : index
    %c0_13 = arith.constant 0 : index
    %8 = vector.load %arg11[%c0_11, %c0_12, %c0_13] : memref<18x32x2xbf16, #tpu.memory_space<vmem>>, vector<1x32x2xbf16>
    tpu.vector_store %arg11[%c0_11, %c0_12, %c0_13], %6 {strides = array<i32>} : memref<18x32x2xbf16, #tpu.memory_space<vmem>>, vector<1x32x2xbf16>,
    %c17_14 = arith.constant 17 : index
    %c0_15 = arith.constant 0 : index
    %c0_16 = arith.constant 0 : index
    %9 = vector.load %arg11[%c17_14, %c0_15, %c0_16] : memref<18x32x2xbf16, #tpu.memory_space<vmem>>, vector<1x32x2xbf16>
    tpu.vector_store %arg11[%c17_14, %c0_15, %c0_16], %6 {strides = array<i32>} : memref<18x32x2xbf16, #tpu.memory_space<vmem>>, vector<1x32x2xbf16>,
    %c1_17 = arith.constant 1 : index
    %c0_18 = arith.constant 0 : index
    %c0_19 = arith.constant 0 : index
    %10 = vector.load %arg11[%c1_17, %c0_18, %c0_19] : memref<18x32x2xbf16, #tpu.memory_space<vmem>>, vector<16x8x2xbf16>
    tpu.vector_store %arg11[%c1_17, %c0_18, %c0_19], %7 {strides = array<i32>} : memref<18x32x2xbf16, #tpu.memory_space<vmem>>, vector<16x8x2xbf16>,
    %c1_20 = arith.constant 1 : index
    %c24_21 = arith.constant 24 : index
    %c0_22 = arith.constant 0 : index
    %11 = vector.load %arg11[%c1_20, %c24_21, %c0_22] : memref<18x32x2xbf16, #tpu.memory_space<vmem>>, vector<16x8x2xbf16>
    tpu.vector_store %arg11[%c1_20, %c24_21, %c0_22], %7 {strides = array<i32>} : memref<18x32x2xbf16, #tpu.memory_space<vmem>>, vector<16x8x2xbf16>,
    %c0_23 = arith.constant 0 : index
    %c0_24 = arith.constant 0 : index
    %c0_25 = arith.constant 0 : index
    %c0_26 = arith.constant 0 : index
    %12 = vector.load %arg1[%c0_23, %c0_24, %c0_25, %c0_26] : memref<1x16x16x4xbf16, #tpu.memory_space<vmem>>, vector<1x16x16x4xbf16>
    %13 = vector.shape_cast %12 : vector<1x16x16x4xbf16> to vector<16x16x4xbf16>
    %c1_27 = arith.constant 1 : index
    %c8 = arith.constant 8 : index
    %c0_28 = arith.constant 0 : index
    %14 = vector.load %arg10[%c1_27, %c8, %c0_28] : memref<18x32x4xbf16, #tpu.memory_space<vmem>>, vector<16x16x4xbf16>
    tpu.vector_store %arg10[%c1_27, %c8, %c0_28], %13 {strides = array<i32>} : memref<18x32x4xbf16, #tpu.memory_space<vmem>>, vector<16x16x4xbf16>,
    %c0_29 = arith.constant 0 : index
    %c7 = arith.constant 7 : index
    %c0_30 = arith.constant 0 : index
    %15 = vector.load %arg10[%c0_29, %c7, %c0_30] : memref<18x32x4xbf16, #tpu.memory_space<vmem>>, vector<16x16x4xbf16>
    %c0_31 = arith.constant 0 : index
    %c8_32 = arith.constant 8 : index
    %c0_33 = arith.constant 0 : index
    %16 = vector.load %arg10[%c0_31, %c8_32, %c0_33] : memref<18x32x4xbf16, #tpu.memory_space<vmem>>, vector<16x16x4xbf16>
    %c0_34 = arith.constant 0 : index
    %c9 = arith.constant 9 : index
    %c0_35 = arith.constant 0 : index
    %17 = vector.load %arg10[%c0_34, %c9, %c0_35] : memref<18x32x4xbf16, #tpu.memory_space<vmem>>, vector<16x16x4xbf16>
    %c1_36 = arith.constant 1 : index
    %c7_37 = arith.constant 7 : index
    %c0_38 = arith.constant 0 : index
    %18 = vector.load %arg10[%c1_36, %c7_37, %c0_38] : memref<18x32x4xbf16, #tpu.memory_space<vmem>>, vector<16x16x4xbf16>
    %c1_39 = arith.constant 1 : index
    %c8_40 = arith.constant 8 : index
    %c0_41 = arith.constant 0 : index
    %19 = vector.load %arg10[%c1_39, %c8_40, %c0_41] : memref<18x32x4xbf16, #tpu.memory_space<vmem>>, vector<16x16x4xbf16>
    %c1_42 = arith.constant 1 : index
    %c9_43 = arith.constant 9 : index
    %c0_44 = arith.constant 0 : index
    %20 = vector.load %arg10[%c1_42, %c9_43, %c0_44] : memref<18x32x4xbf16, #tpu.memory_space<vmem>>, vector<16x16x4xbf16>
    %c2 = arith.constant 2 : index
    %c7_45 = arith.constant 7 : index
    %c0_46 = arith.constant 0 : index
    %21 = vector.load %arg10[%c2, %c7_45, %c0_46] : memref<18x32x4xbf16, #tpu.memory_space<vmem>>, vector<16x16x4xbf16>
    %c2_47 = arith.constant 2 : index
    %c8_48 = arith.constant 8 : index
    %c0_49 = arith.constant 0 : index
    %22 = vector.load %arg10[%c2_47, %c8_48, %c0_49] : memref<18x32x4xbf16, #tpu.memory_space<vmem>>, vector<16x16x4xbf16>
    %c2_50 = arith.constant 2 : index
    %c9_51 = arith.constant 9 : index
    %c0_52 = arith.constant 0 : index
    %23 = vector.load %arg10[%c2_50, %c9_51, %c0_52] : memref<18x32x4xbf16, #tpu.memory_space<vmem>>, vector<16x16x4xbf16>
    %24 = tpu.concatenate %15, %16, %17, %18, %19, %20, %21, %22, %23 in 2 : vector<16x16x4xbf16>, vector<16x16x4xbf16>, vector<16x16x4xbf16>, vector<16x16x4xbf16>, vector<16x16x4xbf16>, vector<16x16x4xbf16>, vector<16x16x4xbf16>, vector<16x16x4xbf16>, vector<16x16x4xbf16> -> vector<16x16x36xbf16>
    %25 = vector.shape_cast %24 : vector<16x16x36xbf16> to vector<256x36xbf16>
    %c0_53 = arith.constant 0 : index
    %c0_54 = arith.constant 0 : index
    %26 = vector.load %arg2[%c0_53, %c0_54] : memref<36x2xbf16, #tpu.memory_space<vmem>>, vector<36x2xbf16>
    %cst_55 = arith.constant dense<0.000000e+00> : vector<256x2xf32>
    %27 = tpu.matmul %25, %26, %cst_55 {dimension_numbers = #tpu.dot_dimension_numbers<[1], [0], [0], [1], [0, 0, 1, 1], [], []>} : vector<256x36xbf16>, vector<36x2xbf16>, vector<256x2xf32> -> vector<256x2xf32>
    %c0_56 = arith.constant 0 : index
    %c0_57 = arith.constant 0 : index
    %28 = vector.load %arg4[%c0_56, %c0_57] : memref<1x2xf32, #tpu.memory_space<vmem>>, vector<1x2xf32>
    %29 = vector.broadcast %28 : vector<1x2xf32> to vector<256x2xf32>
    %30 = arith.mulf %27, %29 : vector<256x2xf32>
    %c0_58 = arith.constant 0 : index
    %c0_59 = arith.constant 0 : index
    %31 = vector.load %arg5[%c0_58, %c0_59] : memref<1x2xf32, #tpu.memory_space<vmem>>, vector<1x2xf32>
    %32 = vector.broadcast %31 : vector<1x2xf32> to vector<256x2xf32>
    %33 = arith.addf %30, %32 : vector<256x2xf32>
    %34 = arith.negf %33 : vector<256x2xf32>
    %35 = math.exp %34 : vector<256x2xf32>
    %cst_60 = arith.constant 1.000000e+00 : f32
    %36 = vector.broadcast %cst_60 : f32 to vector<256x2xf32>
    %37 = arith.addf %36, %35 : vector<256x2xf32>
    %38 = arith.divf %36, %37 : vector<256x2xf32>
    %39 = arith.mulf %33, %38 : vector<256x2xf32>
    %40 = vector.shape_cast %39 : vector<256x2xf32> to vector<16x16x2xf32>
    %41 = arith.truncf %40 : vector<16x16x2xf32> to vector<16x16x2xbf16>
    %c1_61 = arith.constant 1 : index
    %c8_62 = arith.constant 8 : index
    %c0_63 = arith.constant 0 : index
    %42 = vector.load %arg11[%c1_61, %c8_62, %c0_63] : memref<18x32x2xbf16, #tpu.memory_space<vmem>>, vector<16x16x2xbf16>
    tpu.vector_store %arg11[%c1_61, %c8_62, %c0_63], %41 {strides = array<i32>} : memref<18x32x2xbf16, #tpu.memory_space<vmem>>, vector<16x16x2xbf16>,
    %c0_64 = arith.constant 0 : index
    %c7_65 = arith.constant 7 : index
    %c0_66 = arith.constant 0 : index
    %43 = vector.load %arg11[%c0_64, %c7_65, %c0_66] : memref<18x32x2xbf16, #tpu.memory_space<vmem>>, vector<16x16x2xbf16>
    %c0_67 = arith.constant 0 : index
    %c8_68 = arith.constant 8 : index
    %c0_69 = arith.constant 0 : index
    %44 = vector.load %arg11[%c0_67, %c8_68, %c0_69] : memref<18x32x2xbf16, #tpu.memory_space<vmem>>, vector<16x16x2xbf16>
    %c0_70 = arith.constant 0 : index
    %c9_71 = arith.constant 9 : index
    %c0_72 = arith.constant 0 : index
    %45 = vector.load %arg11[%c0_70, %c9_71, %c0_72] : memref<18x32x2xbf16, #tpu.memory_space<vmem>>, vector<16x16x2xbf16>
    %c1_73 = arith.constant 1 : index
    %c7_74 = arith.constant 7 : index
    %c0_75 = arith.constant 0 : index
    %46 = vector.load %arg11[%c1_73, %c7_74, %c0_75] : memref<18x32x2xbf16, #tpu.memory_space<vmem>>, vector<16x16x2xbf16>
    %c1_76 = arith.constant 1 : index
    %c8_77 = arith.constant 8 : index
    %c0_78 = arith.constant 0 : index
    %47 = vector.load %arg11[%c1_76, %c8_77, %c0_78] : memref<18x32x2xbf16, #tpu.memory_space<vmem>>, vector<16x16x2xbf16>
    %c1_79 = arith.constant 1 : index
    %c9_80 = arith.constant 9 : index
    %c0_81 = arith.constant 0 : index
    %48 = vector.load %arg11[%c1_79, %c9_80, %c0_81] : memref<18x32x2xbf16, #tpu.memory_space<vmem>>, vector<16x16x2xbf16>
    %c2_82 = arith.constant 2 : index
    %c7_83 = arith.constant 7 : index
    %c0_84 = arith.constant 0 : index
    %49 = vector.load %arg11[%c2_82, %c7_83, %c0_84] : memref<18x32x2xbf16, #tpu.memory_space<vmem>>, vector<16x16x2xbf16>
    %c2_85 = arith.constant 2 : index
    %c8_86 = arith.constant 8 : index
    %c0_87 = arith.constant 0 : index
    %50 = vector.load %arg11[%c2_85, %c8_86, %c0_87] : memref<18x32x2xbf16, #tpu.memory_space<vmem>>, vector<16x16x2xbf16>
    %c2_88 = arith.constant 2 : index
    %c9_89 = arith.constant 9 : index
    %c0_90 = arith.constant 0 : index
    %51 = vector.load %arg11[%c2_88, %c9_89, %c0_90] : memref<18x32x2xbf16, #tpu.memory_space<vmem>>, vector<16x16x2xbf16>
    %52 = tpu.concatenate %43, %44, %45, %46, %47, %48, %49, %50, %51 in 2 : vector<16x16x2xbf16>, vector<16x16x2xbf16>, vector<16x16x2xbf16>, vector<16x16x2xbf16>, vector<16x16x2xbf16>, vector<16x16x2xbf16>, vector<16x16x2xbf16>, vector<16x16x2xbf16>, vector<16x16x2xbf16> -> vector<16x16x18xbf16>
    %53 = vector.shape_cast %52 : vector<16x16x18xbf16> to vector<256x18xbf16>
    %c0_91 = arith.constant 0 : index
    %c0_92 = arith.constant 0 : index
    %54 = vector.load %arg3[%c0_91, %c0_92] : memref<18x128xbf16, #tpu.memory_space<vmem>>, vector<18x128xbf16>
    %cst_93 = arith.constant dense<0.000000e+00> : vector<256x128xf32>
    %55 = tpu.matmul %53, %54, %cst_93 {dimension_numbers = #tpu.dot_dimension_numbers<[1], [0], [0], [1], [0, 0, 1, 1], [], []>} : vector<256x18xbf16>, vector<18x128xbf16>, vector<256x128xf32> -> vector<256x128xf32>
    %c0_94 = arith.constant 0 : index
    %c0_95 = arith.constant 0 : index
    %56 = vector.load %arg6[%c0_94, %c0_95] : memref<1x128xf32, #tpu.memory_space<vmem>>, vector<1x128xf32>
    %57 = vector.broadcast %56 : vector<1x128xf32> to vector<256x128xf32>
    %58 = arith.mulf %55, %57 : vector<256x128xf32>
    %c0_96 = arith.constant 0 : index
    %c0_97 = arith.constant 0 : index
    %59 = vector.load %arg7[%c0_96, %c0_97] : memref<1x128xf32, #tpu.memory_space<vmem>>, vector<1x128xf32>
    %60 = vector.broadcast %59 : vector<1x128xf32> to vector<256x128xf32>
    %61 = arith.addf %58, %60 : vector<256x128xf32>
    %62 = arith.negf %61 : vector<256x128xf32>
    %63 = math.exp %62 : vector<256x128xf32>
    %cst_98 = arith.constant 1.000000e+00 : f32
    %64 = vector.broadcast %cst_98 : f32 to vector<256x128xf32>
    %65 = arith.addf %64, %63 : vector<256x128xf32>
    %66 = arith.divf %64, %65 : vector<256x128xf32>
    %67 = arith.mulf %61, %66 : vector<256x128xf32>
    %c0_99 = arith.constant 0 : index
    %c0_100 = arith.constant 0 : index
    %c0_101 = arith.constant 0 : index
    %68 = vector.load %arg8[%c0_99, %c0_100, %c0_101] : memref<1x256x128xf32, #tpu.memory_space<vmem>>, vector<1x256x128xf32>
    %69 = vector.shape_cast %68 : vector<1x256x128xf32> to vector<256x128xf32>
    %70 = arith.addf %67, %69 : vector<256x128xf32>
    %c0_102 = arith.constant 0 : index
    %c0_103 = arith.constant 0 : index
    %c0_104 = arith.constant 0 : index
    %71 = vector.load %arg9[%c0_102, %c0_103, %c0_104] : memref<1x256x128xf32, #tpu.memory_space<vmem>>, vector<1x256x128xf32>
    %72 = vector.shape_cast %71 : vector<1x256x128xf32> to vector<256x128xf32>
    %73 = vector.shape_cast %70 : vector<256x128xf32> to vector<1x256x128xf32>
    tpu.vector_store %arg9[%c0_102, %c0_103, %c0_104], %73 {strides = array<i32>} : memref<1x256x128xf32, #tpu.memory_space<vmem>>, vector<1x256x128xf32>,
    return
  }
  func.func @transform_0(%arg0: i32) -> (i32, i32, i32, i32) {
    %c0_i32 = arith.constant 0 : i32
    %c0_i32_0 = arith.constant 0 : i32
    %c0_i32_1 = arith.constant 0 : i32
    %c0_i32_2 = arith.constant 0 : i32
    return %arg0, %c0_i32, %c0_i32_0, %c0_i32_1 : i32, i32, i32, i32
  }
  func.func @transform_1(%arg0: i32) -> (i32, i32) {
    %c0_i32 = arith.constant 0 : i32
    %c0_i32_0 = arith.constant 0 : i32
    %c0_i32_1 = arith.constant 0 : i32
    return %c0_i32, %c0_i32_0 : i32, i32
  }
  func.func @transform_2(%arg0: i32) -> (i32, i32) {
    %c0_i32 = arith.constant 0 : i32
    %c0_i32_0 = arith.constant 0 : i32
    %c0_i32_1 = arith.constant 0 : i32
    return %c0_i32, %c0_i32_0 : i32, i32
  }
  func.func @transform_3(%arg0: i32) -> (i32, i32) {
    %c0_i32 = arith.constant 0 : i32
    %c0_i32_0 = arith.constant 0 : i32
    %c0_i32_1 = arith.constant 0 : i32
    return %c0_i32, %c0_i32_0 : i32, i32
  }
  func.func @transform_4(%arg0: i32) -> (i32, i32) {
    %c0_i32 = arith.constant 0 : i32
    %c0_i32_0 = arith.constant 0 : i32
    %c0_i32_1 = arith.constant 0 : i32
    return %c0_i32, %c0_i32_0 : i32, i32
  }
  func.func @transform_5(%arg0: i32) -> (i32, i32) {
    %c0_i32 = arith.constant 0 : i32
    %c0_i32_0 = arith.constant 0 : i32
    %c0_i32_1 = arith.constant 0 : i32
    return %c0_i32, %c0_i32_0 : i32, i32
  }
  func.func @transform_6(%arg0: i32) -> (i32, i32) {
    %c0_i32 = arith.constant 0 : i32
    %c0_i32_0 = arith.constant 0 : i32
    %c0_i32_1 = arith.constant 0 : i32
    return %c0_i32, %c0_i32_0 : i32, i32
  }
  func.func @transform_7(%arg0: i32) -> (i32, i32, i32) {
    %c0_i32 = arith.constant 0 : i32
    %c0_i32_0 = arith.constant 0 : i32
    %c0_i32_1 = arith.constant 0 : i32
    return %arg0, %c0_i32, %c0_i32_0 : i32, i32, i32
  }
  func.func @transform_8(%arg0: i32) -> (i32, i32, i32) {
    %c0_i32 = arith.constant 0 : i32
    %c0_i32_0 = arith.constant 0 : i32
    %c0_i32_1 = arith.constant 0 : i32
    return %arg0, %c0_i32, %c0_i32_0 : i32, i32, i32
  }
}

</mosaic_0001>

<llo_original>
// kernel: bottleneck_forward.1
$region0: #{bottleneck_forward.1}
  #allocation0 [shape = 'u32[]', space=smem, size = 0x4, offset = 0x4, fixed_abs, tag = 'smem constant byte address 0x4 - core index']
  #allocation1 [shape = 'u32[144,128]{1,0:T(1,128)}', space=vmem, size = 0x12000, scoped, tag = 'internal scratch']
  #allocation2 [shape = 'bf16[18,32,4]{2,1,0:T(16,128)(2,1)}', space=vmem, size = 0x24000, scoped, tag = 'scratch operand']
  #allocation3 [shape = 'bf16[18,32,2]{2,1,0:T(16,128)(2,1)}', space=vmem, size = 0x24000, scoped, tag = 'scratch operand']
  %s0 = inlined_call_operand.vmem [shape: bf16[2,16,16,4], index: 0, kind: input, shape index: {}]
  %s1 = inlined_call_operand.vmem [shape: bf16[36,2], index: 1, kind: input, shape index: {}]
  %s2 = inlined_call_operand.vmem [shape: bf16[18,128], index: 2, kind: input, shape index: {}]
  %s3 = inlined_call_operand.vmem [shape: f32[1,2], index: 3, kind: input, shape index: {}]
  %s4 = inlined_call_operand.vmem [shape: f32[1,2], index: 4, kind: input, shape index: {}]
  %s5 = inlined_call_operand.vmem [shape: f32[1,128], index: 5, kind: input, shape index: {}]
  %s6 = inlined_call_operand.vmem [shape: f32[1,128], index: 6, kind: input, shape index: {}]
  %s7 = inlined_call_operand.vmem [shape: f32[2,256,128], index: 7, kind: input, shape index: {}]
  %s8 = inlined_call_operand.vmem [shape: f32[2,256,128], index: 8, kind: output, shape index: {}]
  %s9 = sld [smem:[#allocation0]]
  $region65: #{bottleneck_forward.1} parent=0
    _
  %s11 = ssub.s32 1, %s9
  %s12 = scalar_select 0, %s11, %s9
  loop: start=0, step=1, limit=4
  $region2: #{bottleneck_forward.1} parent=0 // loop_pre_header
    _
  $region3: #{bottleneck_forward.1} parent=0 // loop_header
    %s14 = sphi 0, %s18
    %p15 = scmp.ge.s32.totalorder %s14, 4
    %s24 = sphi 0, %s26
    %s27 = sphi 0, %s24
    %s28 = sphi 0, %s27
    %s44 = sphi 0, %s28
    %s48 = sphi 0, %s48
    %s50 = sphi 0, %s48
    %s51 = sphi 0, %s50
    %s65 = sphi 0, %s51
    %s69 = sphi 0, %s69
    %s71 = sphi 0, %s69
    %s72 = sphi 0, %s71
    %s86 = sphi 0, %s72
    %s90 = sphi 0, %s90
    %s92 = sphi 0, %s90
    %s93 = sphi 0, %s92
    %s107 = sphi 0, %s93
    %s111 = sphi 0, %s111
    %s113 = sphi 0, %s111
    %s114 = sphi 0, %s113
    %s128 = sphi 0, %s114
    %s132 = sphi 0, %s132
    %s134 = sphi 0, %s132
    %s135 = sphi 0, %s134
    %s149 = sphi 0, %s135
    %s153 = sphi 0, %s153
    %s155 = sphi 0, %s153
    %s156 = sphi 0, %s155
    %s170 = sphi 0, %s156
    %s176 = sphi 0, %s178
    %s179 = sphi 0, %s176
    %s180 = sphi 0, %s179
    %s196 = sphi 0, %s180
    %s202 = sphi 0, %s204
    %s205 = sphi 0, %s202
    %s206 = sphi 0, %s205
    %s222 = sphi 0, %s206
  $region4: #{bottleneck_forward.1} parent=0 // loop_header_branch
    %17 = sbr.rel (%p15) target = $region8
  $region5: #{bottleneck_forward.1} parent=0 // loop_body
    %s19 = ssub.s32 %s14, 1
    %s20 = ssub.s32 %s14, 2
    %s21 = sadd.s32 %s14, 1
    %s22 = ssub.s32 %s14, %s21
    %p23 = scmp.eq.s32.totalorder %s22, 0
    %s25 = sadd.s32 %s24, 1
    %s26 = scalar_select %p23, %s24, %s25
    %p29 = pneg %p23
    %p30 = scmp.eq.s32.totalorder %s14, 1
    %p31 = por %p29, %p30
    %p32 = scmp.ne.s32.totalorder %s24, %s27
    %p33 = scmp.eq.s32.totalorder %s14, 0
    %p34 = por %p32, %p33
    %p35 = scmp.ne.s32.totalorder %s24, %s27
    %p36 = scmp.eq.s32.totalorder %s19, 1
    %p37 = por %p35, %p36
    %p38 = scmp.ne.s32.totalorder %s27, %s28
    %p39 = scmp.eq.s32.totalorder %s19, 0
    %p40 = por %p38, %p39
    %p41 = scmp.ne.s32.totalorder %s27, %s28
    %p42 = scmp.eq.s32.totalorder %s20, 1
    %p43 = por %p41, %p42
    %p45 = scmp.ne.s32.totalorder %s28, %s44
    %p46 = scmp.eq.s32.totalorder %s20, 0
    %p47 = por %p45, %p46
    %s49 = sadd.s32 %s48, 1
    %p52 = scmp.eq.s32.totalorder %s14, 1
    %p53 = scmp.ne.s32.totalorder %s48, %s50
    %p54 = scmp.eq.s32.totalorder %s14, 0
    %p55 = por %p53, %p54
    %p56 = scmp.ne.s32.totalorder %s48, %s50
    %p57 = scmp.eq.s32.totalorder %s19, 1
    %p58 = por %p56, %p57
    %p59 = scmp.ne.s32.totalorder %s50, %s51
    %p60 = scmp.eq.s32.totalorder %s19, 0
    %p61 = por %p59, %p60
    %p62 = scmp.ne.s32.totalorder %s50, %s51
    %p63 = scmp.eq.s32.totalorder %s20, 1
    %p64 = por %p62, %p63
    %p66 = scmp.ne.s32.totalorder %s51, %s65
    %p67 = scmp.eq.s32.totalorder %s20, 0
    %p68 = por %p66, %p67
    %s70 = sadd.s32 %s69, 1
    %p73 = scmp.eq.s32.totalorder %s14, 1
    %p74 = scmp.ne.s32.totalorder %s69, %s71
    %p75 = scmp.eq.s32.totalorder %s14, 0
    %p76 = por %p74, %p75
    %p77 = scmp.ne.s32.totalorder %s69, %s71
    %p78 = scmp.eq.s32.totalorder %s19, 1
    %p79 = por %p77, %p78
    %p80 = scmp.ne.s32.totalorder %s71, %s72
    %p81 = scmp.eq.s32.totalorder %s19, 0
    %p82 = por %p80, %p81
    %p83 = scmp.ne.s32.totalorder %s71, %s72
    %p84 = scmp.eq.s32.totalorder %s20, 1
    %p85 = por %p83, %p84
    %p87 = scmp.ne.s32.totalorder %s72, %s86
    %p88 = scmp.eq.s32.totalorder %s20, 0
    %p89 = por %p87, %p88
    %s91 = sadd.s32 %s90, 1
    %p94 = scmp.eq.s32.totalorder %s14, 1
    %p95 = scmp.ne.s32.totalorder %s90, %s92
    %p96 = scmp.eq.s32.totalorder %s14, 0
    %p97 = por %p95, %p96
    %p98 = scmp.ne.s32.totalorder %s90, %s92
    %p99 = scmp.eq.s32.totalorder %s19, 1
    %p100 = por %p98, %p99
    %p101 = scmp.ne.s32.totalorder %s92, %s93
    %p102 = scmp.eq.s32.totalorder %s19, 0
    %p103 = por %p101, %p102
    %p104 = scmp.ne.s32.totalorder %s92, %s93
    %p105 = scmp.eq.s32.totalorder %s20, 1
    %p106 = por %p104, %p105
    %p108 = scmp.ne.s32.totalorder %s93, %s107
    %p109 = scmp.eq.s32.totalorder %s20, 0
    %p110 = por %p108, %p109
    %s112 = sadd.s32 %s111, 1
    %p115 = scmp.eq.s32.totalorder %s14, 1
    %p116 = scmp.ne.s32.totalorder %s111, %s113
    %p117 = scmp.eq.s32.totalorder %s14, 0
    %p118 = por %p116, %p117
    %p119 = scmp.ne.s32.totalorder %s111, %s113
    %p120 = scmp.eq.s32.totalorder %s19, 1
    %p121 = por %p119, %p120
    %p122 = scmp.ne.s32.totalorder %s113, %s114
    %p123 = scmp.eq.s32.totalorder %s19, 0
    %p124 = por %p122, %p123
    %p125 = scmp.ne.s32.totalorder %s113, %s114
    %p126 = scmp.eq.s32.totalorder %s20, 1
    %p127 = por %p125, %p126
    %p129 = scmp.ne.s32.totalorder %s114, %s128
    %p130 = scmp.eq.s32.totalorder %s20, 0
    %p131 = por %p129, %p130
    %s133 = sadd.s32 %s132, 1
    %p136 = scmp.eq.s32.totalorder %s14, 1
    %p137 = scmp.ne.s32.totalorder %s132, %s134
    %p138 = scmp.eq.s32.totalorder %s14, 0
    %p139 = por %p137, %p138
    %p140 = scmp.ne.s32.totalorder %s132, %s134
    %p141 = scmp.eq.s32.totalorder %s19, 1
    %p142 = por %p140, %p141
    %p143 = scmp.ne.s32.totalorder %s134, %s135
    %p144 = scmp.eq.s32.totalorder %s19, 0
    %p145 = por %p143, %p144
    %p146 = scmp.ne.s32.totalorder %s134, %s135
    %p147 = scmp.eq.s32.totalorder %s20, 1
    %p148 = por %p146, %p147
    %p150 = scmp.ne.s32.totalorder %s135, %s149
    %p151 = scmp.eq.s32.totalorder %s20, 0
    %p152 = por %p150, %p151
    %s154 = sadd.s32 %s153, 1
    %p157 = scmp.eq.s32.totalorder %s14, 1
    %p158 = scmp.ne.s32.totalorder %s153, %s155
    %p159 = scmp.eq.s32.totalorder %s14, 0
    %p160 = por %p158, %p159
    %p161 = scmp.ne.s32.totalorder %s153, %s155
    %p162 = scmp.eq.s32.totalorder %s19, 1
    %p163 = por %p161, %p162
    %p164 = scmp.ne.s32.totalorder %s155, %s156
    %p165 = scmp.eq.s32.totalorder %s19, 0
    %p166 = por %p164, %p165
    %p167 = scmp.ne.s32.totalorder %s155, %s156
    %p168 = scmp.eq.s32.totalorder %s20, 1
    %p169 = por %p167, %p168
    %p171 = scmp.ne.s32.totalorder %s156, %s170
    %p172 = scmp.eq.s32.totalorder %s20, 0
    %p173 = por %p171, %p172
    %s174 = ssub.s32 %s14, %s21
    %p175 = scmp.eq.s32.totalorder %s174, 0
    %s177 = sadd.s32 %s176, 1
    %s178 = scalar_select %p175, %s176, %s177
    %p181 = pneg %p175
    %p182 = scmp.eq.s32.totalorder %s14, 1
    %p183 = por %p181, %p182
    %p184 = scmp.ne.s32.totalorder %s176, %s179
    %p185 = scmp.eq.s32.totalorder %s14, 0
    %p186 = por %p184, %p185
    %p187 = scmp.ne.s32.totalorder %s176, %s179
    %p188 = scmp.eq.s32.totalorder %s19, 1
    %p189 = por %p187, %p188
    %p190 = scmp.ne.s32.totalorder %s179, %s180
    %p191 = scmp.eq.s32.totalorder %s19, 0
    %p192 = por %p190, %p191
    %p193 = scmp.ne.s32.totalorder %s179, %s180
    %p194 = scmp.eq.s32.totalorder %s20, 1
    %p195 = por %p193, %p194
    %p197 = scmp.ne.s32.totalorder %s180, %s196
    %p198 = scmp.eq.s32.totalorder %s20, 0
    %p199 = por %p197, %p198
    %s200 = ssub.s32 %s14, %s21
    %p201 = scmp.eq.s32.totalorder %s200, 0
    %s203 = sadd.s32 %s202, 1
    %s204 = scalar_select %p201, %s202, %s203
    %p207 = pneg %p201
    %p208 = scmp.eq.s32.totalorder %s14, 1
    %p209 = por %p207, %p208
    %p210 = scmp.ne.s32.totalorder %s202, %s205
    %p211 = scmp.eq.s32.totalorder %s14, 0
    %p212 = por %p210, %p211
    %p213 = scmp.ne.s32.totalorder %s202, %s205
    %p214 = scmp.eq.s32.totalorder %s19, 1
    %p215 = por %p213, %p214
    %p216 = scmp.ne.s32.totalorder %s205, %s206
    %p217 = scmp.eq.s32.totalorder %s19, 0
    %p218 = por %p216, %p217
    %p219 = scmp.ne.s32.totalorder %s205, %s206
    %p220 = scmp.eq.s32.totalorder %s20, 1
    %p221 = por %p219, %p220
    %p223 = scmp.ne.s32.totalorder %s206, %s222
    %p224 = scmp.eq.s32.totalorder %s20, 0
    %p225 = por %p223, %p224
    %p226 = scmp.le.s32.totalorder 1, %s14
    %p227 = scmp.lt.s32.totalorder %s14, 3
    %p228 = pnand %p226, %p227
    %p229 = pneg %p228
    // Predicated region
    $region9: #{bottleneck_forward.1} parent=5 // pred_check
      _
    $region10: #{bottleneck_forward.1} parent=5 // pred_check_branch
      %231 = sbr.rel (%p228) target = $region12
    $region11: #{bottleneck_forward.1} parent=5 // pred_region
      %s232 = ssub.s32 %s14, 1
      // Predicated region
      $region13: #{bottleneck_forward.1} parent=11 // pred_check
        %p233 = pneg %p61
      $region14: #{bottleneck_forward.1} parent=11 // pred_check_branch
        %235 = sbr.rel (%p233) target = $region16
      $region15: #{bottleneck_forward.1} parent=11 // pred_region
        _
      $region16: #{bottleneck_forward.1} parent=11 // pred_fallthru
        _
      // Predicated region
      $region17: #{bottleneck_forward.1} parent=11 // pred_check
        %p236 = pneg %p82
      $region18: #{bottleneck_forward.1} parent=11 // pred_check_branch
        %238 = sbr.rel (%p236) target = $region20
      $region19: #{bottleneck_forward.1} parent=11 // pred_region
        _
      $region20: #{bottleneck_forward.1} parent=11 // pred_fallthru
        _
      // Predicated region
      $region21: #{bottleneck_forward.1} parent=11 // pred_check
        %p239 = pneg %p103
      $region22: #{bottleneck_forward.1} parent=11 // pred_check_branch
        %241 = sbr.rel (%p239) target = $region24
      $region23: #{bottleneck_forward.1} parent=11 // pred_region
        _
      $region24: #{bottleneck_forward.1} parent=11 // pred_fallthru
        _
      // Predicated region
      $region25: #{bottleneck_forward.1} parent=11 // pred_check
        %p242 = pneg %p124
      $region26: #{bottleneck_forward.1} parent=11 // pred_check_branch
        %244 = sbr.rel (%p242) target = $region28
      $region27: #{bottleneck_forward.1} parent=11 // pred_region
        _
      $region28: #{bottleneck_forward.1} parent=11 // pred_fallthru
        _
      // Predicated region
      $region29: #{bottleneck_forward.1} parent=11 // pred_check
        %p245 = pneg %p145
      $region30: #{bottleneck_forward.1} parent=11 // pred_check_branch
        %247 = sbr.rel (%p245) target = $region32
      $region31: #{bottleneck_forward.1} parent=11 // pred_region
        _
      $region32: #{bottleneck_forward.1} parent=11 // pred_fallthru
        _
      // Predicated region
      $region33: #{bottleneck_forward.1} parent=11 // pred_check
        %p248 = pneg %p166
      $region34: #{bottleneck_forward.1} parent=11 // pred_check_branch
        %250 = sbr.rel (%p248) target = $region36
      $region35: #{bottleneck_forward.1} parent=11 // pred_region
        _
      $region36: #{bottleneck_forward.1} parent=11 // pred_fallthru
        _
    $region12: #{bottleneck_forward.1} parent=5 // pred_fallthru
      _
    %p251 = scmp.lt.s32.totalorder %s14, 2
    // Predicated region
    $region37: #{bottleneck_forward.1} parent=5 // pred_check
      %p252 = pneg %p251
    $region38: #{bottleneck_forward.1} parent=5 // pred_check_branch
      %254 = sbr.rel (%p252) target = $region40
    $region39: #{bottleneck_forward.1} parent=5 // pred_region
      // Predicated region
      $region41: #{bottleneck_forward.1} parent=39 // pred_check
        %p255 = pneg %p34
      $region42: #{bottleneck_forward.1} parent=39 // pred_check_branch
        %257 = sbr.rel (%p255) target = $region44
      $region43: #{bottleneck_forward.1} parent=39 // pred_region
        %p258 = scmp.lt.s32.totalorder %s14, 1
        %s259 = scalar_select %p258, %s14, 1
        %s260 = smul.addr %s259, 32
        %s261 = smul.addr %s260, 4
        %s262 = scalar_lea.vmem %s0, %s261
      $region44: #{bottleneck_forward.1} parent=39 // pred_fallthru
        _
      // Predicated region
      $region45: #{bottleneck_forward.1} parent=39 // pred_check
        %p263 = pneg %p186
      $region46: #{bottleneck_forward.1} parent=39 // pred_check_branch
        %265 = sbr.rel (%p263) target = $region48
      $region47: #{bottleneck_forward.1} parent=39 // pred_region
        %p266 = scmp.lt.s32.totalorder %s14, 1
        %s267 = scalar_select %p266, %s14, 1
        %s268 = smul.addr %s267, 32
        %s269 = smul.addr %s268, 8
        %s270 = scalar_lea.vmem %s7, %s269
      $region48: #{bottleneck_forward.1} parent=39 // pred_fallthru
        _
    $region40: #{bottleneck_forward.1} parent=5 // pred_fallthru
      _
    %p271 = scmp.le.s32.totalorder 1, %s14
    %p272 = scmp.lt.s32.totalorder %s14, 3
    %p273 = pnand %p271, %p272
    %p274 = pneg %p273
    // Predicated region
    $region49: #{bottleneck_forward.1} parent=5 // pred_check
      _
    $region50: #{bottleneck_forward.1} parent=5 // pred_check_branch
      %276 = sbr.rel (%p273) target = $region52
    $region51: #{bottleneck_forward.1} parent=5 // pred_region
      %s277 = ssub.s32 %s14, 1
      %p278 = scmp.lt.s32.totalorder %s19, 1
      %s279 = scalar_select %p278, %s19, 1
      %s280 = smul.addr %s279, 32
      %s281 = smul.addr %s280, 4
      %s282 = scalar_lea.vmem %s0, %s281
      %p283 = pneg %p40
      %p284 = pneg %p37
      %p285 = pneg %p61
      %p286 = pneg %p58
      %p287 = pneg %p82
      %p288 = pneg %p79
      %p289 = pneg %p103
      %p290 = pneg %p100
      %p291 = pneg %p124
      %p292 = pneg %p121
      %p293 = pneg %p145
      %p294 = pneg %p142
      %p295 = pneg %p166
      %p296 = pneg %p163
      %p297 = scmp.lt.s32.totalorder %s19, 1
      %s298 = scalar_select %p297, %s19, 1
      %s299 = smul.addr %s298, 32
      %s300 = smul.addr %s299, 8
      %s301 = scalar_lea.vmem %s7, %s300
      %p302 = pneg %p192
      %p303 = pneg %p189
      %p304 = pneg %p218
      %p305 = pneg %p215
      %p306 = scmp.lt.s32.totalorder %s19, 1
      %s307 = scalar_select %p306, %s19, 1
      %s308 = smul.addr %s307, 32
      %s309 = smul.addr %s308, 8
      %s310 = scalar_lea.vmem %s8, %s309
      %p311 = scmp.lt.s32.totalorder %s19, 1
      %s312 = scalar_select %p311, %s19, 1
      %s313 = smul.addr %s312, 32
      %s314 = smul.addr %s313, 4
      %s315 = scalar_lea.vmem %s0, %s314
      %p316 = scmp.lt.s32.totalorder %s19, 1
      %s317 = scalar_select %p316, %s19, 1
      %s318 = smul.addr %s317, 32
      %s319 = smul.addr %s318, 8
      %s320 = scalar_lea.vmem %s7, %s319
      %p321 = scmp.lt.s32.totalorder %s19, 1
      %s322 = scalar_select %p321, %s19, 1
      %s323 = smul.addr %s322, 32
      %s324 = smul.addr %s323, 8
      %s325 = scalar_lea.vmem %s8, %s324
      %vm327 = vcmask 31744
      %328 = vst.msk [vmem:[#allocation2] sm:$0xff] %vm327, 0
      %329 = vst.msk [vmem:[#allocation2 + $0x8] sm:$0xff] %vm327, 0
      %s330 = scalar_lea.vmem [#allocation2], 272
      %331 = vst.msk [vmem:[%s330] sm:$0xff] %vm327, 0
      %332 = vst.msk [vmem:[%s330 + $0x8] sm:$0xff] %vm327, 0
      %s333 = scalar_lea.vmem [#allocation2], 16
      %vm334 = vcmask 27648
      %335 = vst.msk [vmem:[%s333] sm:$0xf] %vm334, 0
      %336 = vst.msk [vmem:[%s333 + $0x10] sm:$0xf] %vm334, 0
      %337 = vst.msk [vmem:[%s333 + $0x20] sm:$0xf] %vm334, 0
      %338 = vst.msk [vmem:[%s333 + $0x30] sm:$0xf] %vm334, 0
      %339 = vst.msk [vmem:[%s333 + $0x40] sm:$0xf] %vm334, 0
      %340 = vst.msk [vmem:[%s333 + $0x50] sm:$0xf] %vm334, 0
      %341 = vst.msk [vmem:[%s333 + $0x60] sm:$0xf] %vm334, 0
      %342 = vst.msk [vmem:[%s333 + $0x70] sm:$0xf] %vm334, 0
      %343 = vst.msk [vmem:[%s333 + $0x80] sm:$0xf] %vm334, 0
      %344 = vst.msk [vmem:[%s333 + $0x90] sm:$0xf] %vm334, 0
      %345 = vst.msk [vmem:[%s333 + $0xa0] sm:$0xf] %vm334, 0
      %346 = vst.msk [vmem:[%s333 + $0xb0] sm:$0xf] %vm334, 0
      %347 = vst.msk [vmem:[%s333 + $0xc0] sm:$0xf] %vm334, 0
      %348 = vst.msk [vmem:[%s333 + $0xd0] sm:$0xf] %vm334, 0
      %349 = vst.msk [vmem:[%s333 + $0xe0] sm:$0xf] %vm334, 0
      %350 = vst.msk [vmem:[%s333 + $0xf0] sm:$0xf] %vm334, 0
      %vm351 = vcmask 31748
      %352 = vst.msk [vmem:[%s333 + $0x8] sm:$0xf0] %vm351, 0
      %353 = vst.msk [vmem:[%s333 + $0x18] sm:$0xf0] %vm351, 0
      %354 = vst.msk [vmem:[%s333 + $0x28] sm:$0xf0] %vm351, 0
      %355 = vst.msk [vmem:[%s333 + $0x38] sm:$0xf0] %vm351, 0
      %356 = vst.msk [vmem:[%s333 + $0x48] sm:$0xf0] %vm351, 0
      %357 = vst.msk [vmem:[%s333 + $0x58] sm:$0xf0] %vm351, 0
      %358 = vst.msk [vmem:[%s333 + $0x68] sm:$0xf0] %vm351, 0
      %359 = vst.msk [vmem:[%s333 + $0x78] sm:$0xf0] %vm351, 0
      %360 = vst.msk [vmem:[%s333 + $0x88] sm:$0xf0] %vm351, 0
      %361 = vst.msk [vmem:[%s333 + $0x98] sm:$0xf0] %vm351, 0
      %362 = vst.msk [vmem:[%s333 + $0xa8] sm:$0xf0] %vm351, 0
      %363 = vst.msk [vmem:[%s333 + $0xb8] sm:$0xf0] %vm351, 0
      %364 = vst.msk [vmem:[%s333 + $0xc8] sm:$0xf0] %vm351, 0
      %365 = vst.msk [vmem:[%s333 + $0xd8] sm:$0xf0] %vm351, 0
      %366 = vst.msk [vmem:[%s333 + $0xe8] sm:$0xf0] %vm351, 0
      %367 = vst.msk [vmem:[%s333 + $0xf8] sm:$0xf0] %vm351, 0
      %vm368 = vcmask 15360
      %369 = vst.msk [vmem:[#allocation3] sm:$0xff] %vm368, 0
      %370 = vst.msk [vmem:[#allocation3 + $0x8] sm:$0xff] %vm368, 0
      %s371 = scalar_lea.vmem [#allocation3], 272
      %372 = vst.msk [vmem:[%s371] sm:$0xff] %vm368, 0
      %373 = vst.msk [vmem:[%s371 + $0x8] sm:$0xff] %vm368, 0
      %s374 = scalar_lea.vmem [#allocation3], 16
      %vm375 = vcmask 11264
      %376 = vst.msk [vmem:[%s374] sm:$0xf] %vm375, 0
      %377 = vst.msk [vmem:[%s374 + $0x10] sm:$0xf] %vm375, 0
      %378 = vst.msk [vmem:[%s374 + $0x20] sm:$0xf] %vm375, 0
      %379 = vst.msk [vmem:[%s374 + $0x30] sm:$0xf] %vm375, 0
      %380 = vst.msk [vmem:[%s374 + $0x40] sm:$0xf] %vm375, 0
      %381 = vst.msk [vmem:[%s374 + $0x50] sm:$0xf] %vm375, 0
      %382 = vst.msk [vmem:[%s374 + $0x60] sm:$0xf] %vm375, 0
      %383 = vst.msk [vmem:[%s374 + $0x70] sm:$0xf] %vm375, 0
      %384 = vst.msk [vmem:[%s374 + $0x80] sm:$0xf] %vm375, 0
      %385 = vst.msk [vmem:[%s374 + $0x90] sm:$0xf] %vm375, 0
      %386 = vst.msk [vmem:[%s374 + $0xa0] sm:$0xf] %vm375, 0
      %387 = vst.msk [vmem:[%s374 + $0xb0] sm:$0xf] %vm375, 0
      %388 = vst.msk [vmem:[%s374 + $0xc0] sm:$0xf] %vm375, 0
      %389 = vst.msk [vmem:[%s374 + $0xd0] sm:$0xf] %vm375, 0
      %390 = vst.msk [vmem:[%s374 + $0xe0] sm:$0xf] %vm375, 0
      %391 = vst.msk [vmem:[%s374 + $0xf0] sm:$0xf] %vm375, 0
      %vm392 = vcmask 15364
      %393 = vst.msk [vmem:[%s374 + $0x8] sm:$0xf0] %vm392, 0
      %394 = vst.msk [vmem:[%s374 + $0x18] sm:$0xf0] %vm392, 0
      %395 = vst.msk [vmem:[%s374 + $0x28] sm:$0xf0] %vm392, 0
      %396 = vst.msk [vmem:[%s374 + $0x38] sm:$0xf0] %vm392, 0
      %397 = vst.msk [vmem:[%s374 + $0x48] sm:$0xf0] %vm392, 0
      %398 = vst.msk [vmem:[%s374 + $0x58] sm:$0xf0] %vm392, 0
      %399 = vst.msk [vmem:[%s374 + $0x68] sm:$0xf0] %vm392, 0
      %400 = vst.msk [vmem:[%s374 + $0x78] sm:$0xf0] %vm392, 0
      %401 = vst.msk [vmem:[%s374 + $0x88] sm:$0xf0] %vm392, 0
      %402 = vst.msk [vmem:[%s374 + $0x98] sm:$0xf0] %vm392, 0
      %403 = vst.msk [vmem:[%s374 + $0xa8] sm:$0xf0] %vm392, 0
      %404 = vst.msk [vmem:[%s374 + $0xb8] sm:$0xf0] %vm392, 0
      %405 = vst.msk [vmem:[%s374 + $0xc8] sm:$0xf0] %vm392, 0
      %406 = vst.msk [vmem:[%s374 + $0xd8] sm:$0xf0] %vm392, 0
      %407 = vst.msk [vmem:[%s374 + $0xe8] sm:$0xf0] %vm392, 0
      %408 = vst.msk [vmem:[%s374 + $0xf8] sm:$0xf0] %vm392, 0
      %v409 = vld [vmem:[%s315] sm:$0xf]
      %v410 = vld [vmem:[%s315 + $0x4] sm:$0xf]
      %v411 = vld [vmem:[%s315 + $0x8] sm:$0xf]
      %v412 = vld [vmem:[%s315 + $0xc] sm:$0xf]
      %v413 = vld [vmem:[%s315 + $0x10] sm:$0xf]
      %v414 = vld [vmem:[%s315 + $0x14] sm:$0xf]
      %v415 = vld [vmem:[%s315 + $0x18] sm:$0xf]
      %v416 = vld [vmem:[%s315 + $0x1c] sm:$0xf]
      %v417 = vld [vmem:[%s315 + $0x20] sm:$0xf]
      %v418 = vld [vmem:[%s315 + $0x24] sm:$0xf]
      %v419 = vld [vmem:[%s315 + $0x28] sm:$0xf]
      %v420 = vld [vmem:[%s315 + $0x2c] sm:$0xf]
      %v421 = vld [vmem:[%s315 + $0x30] sm:$0xf]
      %v422 = vld [vmem:[%s315 + $0x34] sm:$0xf]
      %v423 = vld [vmem:[%s315 + $0x38] sm:$0xf]
      %v424 = vld [vmem:[%s315 + $0x3c] sm:$0xf]
      %v425 = vld [vmem:[%s315 + $0x40] sm:$0xf]
      %v426 = vld [vmem:[%s315 + $0x44] sm:$0xf]
      %v427 = vld [vmem:[%s315 + $0x48] sm:$0xf]
      %v428 = vld [vmem:[%s315 + $0x4c] sm:$0xf]
      %v429 = vld [vmem:[%s315 + $0x50] sm:$0xf]
      %v430 = vld [vmem:[%s315 + $0x54] sm:$0xf]
      %v431 = vld [vmem:[%s315 + $0x58] sm:$0xf]
      %v432 = vld [vmem:[%s315 + $0x5c] sm:$0xf]
      %v433 = vld [vmem:[%s315 + $0x60] sm:$0xf]
      %v434 = vld [vmem:[%s315 + $0x64] sm:$0xf]
      %v435 = vld [vmem:[%s315 + $0x68] sm:$0xf]
      %v436 = vld [vmem:[%s315 + $0x6c] sm:$0xf]
      %v437 = vld [vmem:[%s315 + $0x70] sm:$0xf]
      %v438 = vld [vmem:[%s315 + $0x74] sm:$0xf]
      %v439 = vld [vmem:[%s315 + $0x78] sm:$0xf]
      %v440 = vld [vmem:[%s315 + $0x7c] sm:$0xf]
      %v473 = vunpack.c.l.b16 %v409
      %v474 = vunpack.c.l.b16 %v410
      %v475 = vunpack.c.l.b16 %v411
      %v476 = vunpack.c.l.b16 %v412
      %v477 = vunpack.c.l.b16 %v413
      %v478 = vunpack.c.l.b16 %v414
      %v479 = vunpack.c.l.b16 %v415
      %v480 = vunpack.c.l.b16 %v416
      %v481 = vunpack.c.l.b16 %v417
      %v482 = vunpack.c.l.b16 %v418
      %v483 = vunpack.c.l.b16 %v419
      %v484 = vunpack.c.l.b16 %v420
      %v485 = vunpack.c.l.b16 %v421
      %v486 = vunpack.c.l.b16 %v422
      %v487 = vunpack.c.l.b16 %v423
      %v488 = vunpack.c.l.b16 %v424
      %v489 = vunpack.c.l.b16 %v425
      %v490 = vunpack.c.l.b16 %v426
      %v491 = vunpack.c.l.b16 %v427
      %v492 = vunpack.c.l.b16 %v428
      %v493 = vunpack.c.l.b16 %v429
      %v494 = vunpack.c.l.b16 %v430
      %v495 = vunpack.c.l.b16 %v431
      %v496 = vunpack.c.l.b16 %v432
      %v497 = vunpack.c.l.b16 %v433
      %v498 = vunpack.c.l.b16 %v434
      %v499 = vunpack.c.l.b16 %v435
      %v500 = vunpack.c.l.b16 %v436
      %v501 = vunpack.c.l.b16 %v437
      %v502 = vunpack.c.l.b16 %v438
      %v503 = vunpack.c.l.b16 %v439
      %v504 = vunpack.c.l.b16 %v440
      %v505 = vpack.c.b16 %v473, %v473
      %v506 = vpack.c.b16 %v474, %v474
      %v507 = vpack.c.b16 %v475, %v475
      %v508 = vpack.c.b16 %v476, %v476
      %v509 = vpack.c.b16 %v477, %v477
      %v510 = vpack.c.b16 %v478, %v478
      %v511 = vpack.c.b16 %v479, %v479
      %v512 = vpack.c.b16 %v480, %v480
      %v513 = vpack.c.b16 %v481, %v481
      %v514 = vpack.c.b16 %v482, %v482
      %v515 = vpack.c.b16 %v483, %v483
      %v516 = vpack.c.b16 %v484, %v484
      %v517 = vpack.c.b16 %v485, %v485
      %v518 = vpack.c.b16 %v486, %v486
      %v519 = vpack.c.b16 %v487, %v487
      %v520 = vpack.c.b16 %v488, %v488
      %v521 = vpack.c.b16 %v489, %v489
      %v522 = vpack.c.b16 %v490, %v490
      %v523 = vpack.c.b16 %v491, %v491
      %v524 = vpack.c.b16 %v492, %v492
      %v525 = vpack.c.b16 %v493, %v493
      %v526 = vpack.c.b16 %v494, %v494
      %v527 = vpack.c.b16 %v495, %v495
      %v528 = vpack.c.b16 %v496, %v496
      %v529 = vpack.c.b16 %v497, %v497
      %v530 = vpack.c.b16 %v498, %v498
      %v531 = vpack.c.b16 %v499, %v499
      %v532 = vpack.c.b16 %v500, %v500
      %v533 = vpack.c.b16 %v501, %v501
      %v534 = vpack.c.b16 %v502, %v502
      %v535 = vpack.c.b16 %v503, %v503
      %v536 = vpack.c.b16 %v504, %v504
      %569 = vst.msk [vmem:[%s333] sm:$0xf0] %vm351, %v505
      %570 = vst.msk [vmem:[%s333 + $0x8] sm:$0xf] %vm334, %v506
      %571 = vst.msk [vmem:[%s333 + $0x10] sm:$0xf0] %vm351, %v507
      %572 = vst.msk [vmem:[%s333 + $0x18] sm:$0xf] %vm334, %v508
      %573 = vst.msk [vmem:[%s333 + $0x20] sm:$0xf0] %vm351, %v509
      %574 = vst.msk [vmem:[%s333 + $0x28] sm:$0xf] %vm334, %v510
      %575 = vst.msk [vmem:[%s333 + $0x30] sm:$0xf0] %vm351, %v511
      %576 = vst.msk [vmem:[%s333 + $0x38] sm:$0xf] %vm334, %v512
      %577 = vst.msk [vmem:[%s333 + $0x40] sm:$0xf0] %vm351, %v513
      %578 = vst.msk [vmem:[%s333 + $0x48] sm:$0xf] %vm334, %v514
      %579 = vst.msk [vmem:[%s333 + $0x50] sm:$0xf0] %vm351, %v515
      %580 = vst.msk [vmem:[%s333 + $0x58] sm:$0xf] %vm334, %v516
      %581 = vst.msk [vmem:[%s333 + $0x60] sm:$0xf0] %vm351, %v517
      %582 = vst.msk [vmem:[%s333 + $0x68] sm:$0xf] %vm334, %v518
      %583 = vst.msk [vmem:[%s333 + $0x70] sm:$0xf0] %vm351, %v519
      %584 = vst.msk [vmem:[%s333 + $0x78] sm:$0xf] %vm334, %v520
      %585 = vst.msk [vmem:[%s333 + $0x80] sm:$0xf0] %vm351, %v521
      %586 = vst.msk [vmem:[%s333 + $0x88] sm:$0xf] %vm334, %v522
      %587 = vst.msk [vmem:[%s333 + $0x90] sm:$0xf0] %vm351, %v523
      %588 = vst.msk [vmem:[%s333 + $0x98] sm:$0xf] %vm334, %v524
      %589 = vst.msk [vmem:[%s333 + $0xa0] sm:$0xf0] %vm351, %v525
      %590 = vst.msk [vmem:[%s333 + $0xa8] sm:$0xf] %vm334, %v526
      %591 = vst.msk [vmem:[%s333 + $0xb0] sm:$0xf0] %vm351, %v527
      %592 = vst.msk [vmem:[%s333 + $0xb8] sm:$0xf] %vm334, %v528
      %593 = vst.msk [vmem:[%s333 + $0xc0] sm:$0xf0] %vm351, %v529
      %594 = vst.msk [vmem:[%s333 + $0xc8] sm:$0xf] %vm334, %v530
      %595 = vst.msk [vmem:[%s333 + $0xd0] sm:$0xf0] %vm351, %v531
      %596 = vst.msk [vmem:[%s333 + $0xd8] sm:$0xf] %vm334, %v532
      %597 = vst.msk [vmem:[%s333 + $0xe0] sm:$0xf0] %vm351, %v533
      %598 = vst.msk [vmem:[%s333 + $0xe8] sm:$0xf] %vm334, %v534
      %599 = vst.msk [vmem:[%s333 + $0xf0] sm:$0xf0] %vm351, %v535
      %600 = vst.msk [vmem:[%s333 + $0xf8] sm:$0xf] %vm334, %v536
      %v601 = vld [vmem:[#allocation2] sm:$0xf8]
      %v602 = vld [vmem:[#allocation2 + $0x8] sm:$0xf]
      %v603 = vld [vmem:[#allocation2 + $0x10] sm:$0xf8]
      %v604 = vld [vmem:[#allocation2 + $0x18] sm:$0xf]
      %v605 = vld [vmem:[#allocation2 + $0x20] sm:$0xf8]
      %v606 = vld [vmem:[#allocation2 + $0x28] sm:$0xf]
      %v607 = vld [vmem:[#allocation2 + $0x30] sm:$0xf8]
      %v608 = vld [vmem:[#allocation2 + $0x38] sm:$0xf]
      %v609 = vld [vmem:[#allocation2 + $0x40] sm:$0xf8]
      %v610 = vld [vmem:[#allocation2 + $0x48] sm:$0xf]
      %v611 = vld [vmem:[#allocation2 + $0x50] sm:$0xf8]
      %v612 = vld [vmem:[#allocation2 + $0x58] sm:$0xf]
      %v613 = vld [vmem:[#allocation2 + $0x60] sm:$0xf8]
      %v614 = vld [vmem:[#allocation2 + $0x68] sm:$0xf]
      %v615 = vld [vmem:[#allocation2 + $0x70] sm:$0xf8]
      %v616 = vld [vmem:[#allocation2 + $0x78] sm:$0xf]
      %v617 = vld [vmem:[#allocation2 + $0x80] sm:$0xf8]
      %v618 = vld [vmem:[#allocation2 + $0x88] sm:$0xf]
      %v619 = vld [vmem:[#allocation2 + $0x90] sm:$0xf8]
      %v620 = vld [vmem:[#allocation2 + $0x98] sm:$0xf]
      %v621 = vld [vmem:[#allocation2 + $0xa0] sm:$0xf8]
      %v622 = vld [vmem:[#allocation2 + $0xa8] sm:$0xf]
      %v623 = vld [vmem:[#allocation2 + $0xb0] sm:$0xf8]
      %v624 = vld [vmem:[#allocation2 + $0xb8] sm:$0xf]
      %v625 = vld [vmem:[#allocation2 + $0xc0] sm:$0xf8]
      %v626 = vld [vmem:[#allocation2 + $0xc8] sm:$0xf]
      %v627 = vld [vmem:[#allocation2 + $0xd0] sm:$0xf8]
      %v628 = vld [vmem:[#allocation2 + $0xd8] sm:$0xf]
      %v629 = vld [vmem:[#allocation2 + $0xe0] sm:$0xf8]
      %v630 = vld [vmem:[#allocation2 + $0xe8] sm:$0xf]
      %v631 = vld [vmem:[#allocation2 + $0xf0] sm:$0xf8]
      %v632 = vld [vmem:[#allocation2 + $0xf8] sm:$0xf]
      %v633 = vld [vmem:[#allocation2] sm:$0xf0]
      %v634 = vld [vmem:[#allocation2 + $0x10] sm:$0xf0]
      %v635 = vld [vmem:[#allocation2 + $0x20] sm:$0xf0]
      %v636 = vld [vmem:[#allocation2 + $0x30] sm:$0xf0]
      %v637 = vld [vmem:[#allocation2 + $0x40] sm:$0xf0]
      %v638 = vld [vmem:[#allocation2 + $0x50] sm:$0xf0]
      %v639 = vld [vmem:[#allocation2 + $0x60] sm:$0xf0]
      %v640 = vld [vmem:[#allocation2 + $0x70] sm:$0xf0]
      %v641 = vld [vmem:[#allocation2 + $0x80] sm:$0xf0]
      %v642 = vld [vmem:[#allocation2 + $0x90] sm:$0xf0]
      %v643 = vld [vmem:[#allocation2 + $0xa0] sm:$0xf0]
      %v644 = vld [vmem:[#allocation2 + $0xb0] sm:$0xf0]
      %v645 = vld [vmem:[#allocation2 + $0xc0] sm:$0xf0]
      %v646 = vld [vmem:[#allocation2 + $0xd0] sm:$0xf0]
      %v647 = vld [vmem:[#allocation2 + $0xe0] sm:$0xf0]
      %v648 = vld [vmem:[#allocation2 + $0xf0] sm:$0xf0]
      %v649 = vld [vmem:[#allocation2 + $0x8] sm:$0x1f]
      %v650 = vld [vmem:[#allocation2 + $0x18] sm:$0x1f]
      %v651 = vld [vmem:[#allocation2 + $0x28] sm:$0x1f]
      %v652 = vld [vmem:[#allocation2 + $0x38] sm:$0x1f]
      %v653 = vld [vmem:[#allocation2 + $0x48] sm:$0x1f]
      %v654 = vld [vmem:[#allocation2 + $0x58] sm:$0x1f]
      %v655 = vld [vmem:[#allocation2 + $0x68] sm:$0x1f]
      %v656 = vld [vmem:[#allocation2 + $0x78] sm:$0x1f]
      %v657 = vld [vmem:[#allocation2 + $0x88] sm:$0x1f]
      %v658 = vld [vmem:[#allocation2 + $0x98] sm:$0x1f]
      %v659 = vld [vmem:[#allocation2 + $0xa8] sm:$0x1f]
      %v660 = vld [vmem:[#allocation2 + $0xb8] sm:$0x1f]
      %v661 = vld [vmem:[#allocation2 + $0xc8] sm:$0x1f]
      %v662 = vld [vmem:[#allocation2 + $0xd8] sm:$0x1f]
      %v663 = vld [vmem:[#allocation2 + $0xe8] sm:$0x1f]
      %v664 = vld [vmem:[#allocation2 + $0xf8] sm:$0x1f]
      %v665 = vld [vmem:[%s333] sm:$0xf8]
      %v666 = vld [vmem:[%s333 + $0x8] sm:$0xf]
      %v667 = vld [vmem:[%s333 + $0x10] sm:$0xf8]
      %v668 = vld [vmem:[%s333 + $0x18] sm:$0xf]
      %v669 = vld [vmem:[%s333 + $0x20] sm:$0xf8]
      %v670 = vld [vmem:[%s333 + $0x28] sm:$0xf]
      %v671 = vld [vmem:[%s333 + $0x30] sm:$0xf8]
      %v672 = vld [vmem:[%s333 + $0x38] sm:$0xf]
      %v673 = vld [vmem:[%s333 + $0x40] sm:$0xf8]
      %v674 = vld [vmem:[%s333 + $0x48] sm:$0xf]
      %v675 = vld [vmem:[%s333 + $0x50] sm:$0xf8]
      %v676 = vld [vmem:[%s333 + $0x58] sm:$0xf]
      %v677 = vld [vmem:[%s333 + $0x60] sm:$0xf8]
      %v678 = vld [vmem:[%s333 + $0x68] sm:$0xf]
      %v679 = vld [vmem:[%s333 + $0x70] sm:$0xf8]
      %v680 = vld [vmem:[%s333 + $0x78] sm:$0xf]
      %v681 = vld [vmem:[%s333 + $0x80] sm:$0xf8]
      %v682 = vld [vmem:[%s333 + $0x88] sm:$0xf]
      %v683 = vld [vmem:[%s333 + $0x90] sm:$0xf8]
      %v684 = vld [vmem:[%s333 + $0x98] sm:$0xf]
      %v685 = vld [vmem:[%s333 + $0xa0] sm:$0xf8]
      %v686 = vld [vmem:[%s333 + $0xa8] sm:$0xf]
      %v687 = vld [vmem:[%s333 + $0xb0] sm:$0xf8]
      %v688 = vld [vmem:[%s333 + $0xb8] sm:$0xf]
      %v689 = vld [vmem:[%s333 + $0xc0] sm:$0xf8]
      %v690 = vld [vmem:[%s333 + $0xc8] sm:$0xf]
      %v691 = vld [vmem:[%s333 + $0xd0] sm:$0xf8]
      %v692 = vld [vmem:[%s333 + $0xd8] sm:$0xf]
      %v693 = vld [vmem:[%s333 + $0xe0] sm:$0xf8]
      %v694 = vld [vmem:[%s333 + $0xe8] sm:$0xf]
      %v695 = vld [vmem:[%s333 + $0xf0] sm:$0xf8]
      %v696 = vld [vmem:[%s333 + $0xf8] sm:$0xf]
      %v697 = vld [vmem:[%s333] sm:$0xf0]
      %v698 = vld [vmem:[%s333 + $0x10] sm:$0xf0]
      %v699 = vld [vmem:[%s333 + $0x20] sm:$0xf0]
      %v700 = vld [vmem:[%s333 + $0x30] sm:$0xf0]
      %v701 = vld [vmem:[%s333 + $0x40] sm:$0xf0]
      %v702 = vld [vmem:[%s333 + $0x50] sm:$0xf0]
      %v703 = vld [vmem:[%s333 + $0x60] sm:$0xf0]
      %v704 = vld [vmem:[%s333 + $0x70] sm:$0xf0]
      %v705 = vld [vmem:[%s333 + $0x80] sm:$0xf0]
      %v706 = vld [vmem:[%s333 + $0x90] sm:$0xf0]
      %v707 = vld [vmem:[%s333 + $0xa0] sm:$0xf0]
      %v708 = vld [vmem:[%s333 + $0xb0] sm:$0xf0]
      %v709 = vld [vmem:[%s333 + $0xc0] sm:$0xf0]
      %v710 = vld [vmem:[%s333 + $0xd0] sm:$0xf0]
      %v711 = vld [vmem:[%s333 + $0xe0] sm:$0xf0]
      %v712 = vld [vmem:[%s333 + $0xf0] sm:$0xf0]
      %v713 = vld [vmem:[%s333 + $0x8] sm:$0x1f]
      %v714 = vld [vmem:[%s333 + $0x18] sm:$0x1f]
      %v715 = vld [vmem:[%s333 + $0x28] sm:$0x1f]
      %v716 = vld [vmem:[%s333 + $0x38] sm:$0x1f]
      %v717 = vld [vmem:[%s333 + $0x48] sm:$0x1f]
      %v718 = vld [vmem:[%s333 + $0x58] sm:$0x1f]
      %v719 = vld [vmem:[%s333 + $0x68] sm:$0x1f]
      %v720 = vld [vmem:[%s333 + $0x78] sm:$0x1f]
      %v721 = vld [vmem:[%s333 + $0x88] sm:$0x1f]
      %v722 = vld [vmem:[%s333 + $0x98] sm:$0x1f]
      %v723 = vld [vmem:[%s333 + $0xa8] sm:$0x1f]
      %v724 = vld [vmem:[%s333 + $0xb8] sm:$0x1f]
      %v725 = vld [vmem:[%s333 + $0xc8] sm:$0x1f]
      %v726 = vld [vmem:[%s333 + $0xd8] sm:$0x1f]
      %v727 = vld [vmem:[%s333 + $0xe8] sm:$0x1f]
      %v728 = vld [vmem:[%s333 + $0xf8] sm:$0x1f]
      %s729 = scalar_lea.vmem [#allocation2], 32
      %v730 = vld [vmem:[%s729] sm:$0xf8]
      %v731 = vld [vmem:[%s729 + $0x8] sm:$0xf]
      %v732 = vld [vmem:[%s729 + $0x10] sm:$0xf8]
      %v733 = vld [vmem:[%s729 + $0x18] sm:$0xf]
      %v734 = vld [vmem:[%s729 + $0x20] sm:$0xf8]
      %v735 = vld [vmem:[%s729 + $0x28] sm:$0xf]
      %v736 = vld [vmem:[%s729 + $0x30] sm:$0xf8]
      %v737 = vld [vmem:[%s729 + $0x38] sm:$0xf]
      %v738 = vld [vmem:[%s729 + $0x40] sm:$0xf8]
      %v739 = vld [vmem:[%s729 + $0x48] sm:$0xf]
      %v740 = vld [vmem:[%s729 + $0x50] sm:$0xf8]
      %v741 = vld [vmem:[%s729 + $0x58] sm:$0xf]
      %v742 = vld [vmem:[%s729 + $0x60] sm:$0xf8]
      %v743 = vld [vmem:[%s729 + $0x68] sm:$0xf]
      %v744 = vld [vmem:[%s729 + $0x70] sm:$0xf8]
      %v745 = vld [vmem:[%s729 + $0x78] sm:$0xf]
      %v746 = vld [vmem:[%s729 + $0x80] sm:$0xf8]
      %v747 = vld [vmem:[%s729 + $0x88] sm:$0xf]
      %v748 = vld [vmem:[%s729 + $0x90] sm:$0xf8]
      %v749 = vld [vmem:[%s729 + $0x98] sm:$0xf]
      %v750 = vld [vmem:[%s729 + $0xa0] sm:$0xf8]
      %v751 = vld [vmem:[%s729 + $0xa8] sm:$0xf]
      %v752 = vld [vmem:[%s729 + $0xb0] sm:$0xf8]
      %v753 = vld [vmem:[%s729 + $0xb8] sm:$0xf]
      %v754 = vld [vmem:[%s729 + $0xc0] sm:$0xf8]
      %v755 = vld [vmem:[%s729 + $0xc8] sm:$0xf]
      %v756 = vld [vmem:[%s729 + $0xd0] sm:$0xf8]
      %v757 = vld [vmem:[%s729 + $0xd8] sm:$0xf]
      %v758 = vld [vmem:[%s729 + $0xe0] sm:$0xf8]
      %v759 = vld [vmem:[%s729 + $0xe8] sm:$0xf]
      %v760 = vld [vmem:[%s729 + $0xf0] sm:$0xf8]
      %v761 = vld [vmem:[%s729 + $0xf8] sm:$0xf]
      %v762 = vld [vmem:[%s729] sm:$0xf0]
      %v763 = vld [vmem:[%s729 + $0x10] sm:$0xf0]
      %v764 = vld [vmem:[%s729 + $0x20] sm:$0xf0]
      %v765 = vld [vmem:[%s729 + $0x30] sm:$0xf0]
      %v766 = vld [vmem:[%s729 + $0x40] sm:$0xf0]
      %v767 = vld [vmem:[%s729 + $0x50] sm:$0xf0]
      %v768 = vld [vmem:[%s729 + $0x60] sm:$0xf0]
      %v769 = vld [vmem:[%s729 + $0x70] sm:$0xf0]
      %v770 = vld [vmem:[%s729 + $0x80] sm:$0xf0]
      %v771 = vld [vmem:[%s729 + $0x90] sm:$0xf0]
      %v772 = vld [vmem:[%s729 + $0xa0] sm:$0xf0]
      %v773 = vld [vmem:[%s729 + $0xb0] sm:$0xf0]
      %v774 = vld [vmem:[%s729 + $0xc0] sm:$0xf0]
      %v775 = vld [vmem:[%s729 + $0xd0] sm:$0xf0]
      %v776 = vld [vmem:[%s729 + $0xe0] sm:$0xf0]
      %v777 = vld [vmem:[%s729 + $0xf0] sm:$0xf0]
      %v778 = vld [vmem:[%s729 + $0x8] sm:$0x1f]
      %v779 = vld [vmem:[%s729 + $0x18] sm:$0x1f]
      %v780 = vld [vmem:[%s729 + $0x28] sm:$0x1f]
      %v781 = vld [vmem:[%s729 + $0x38] sm:$0x1f]
      %v782 = vld [vmem:[%s729 + $0x48] sm:$0x1f]
      %v783 = vld [vmem:[%s729 + $0x58] sm:$0x1f]
      %v784 = vld [vmem:[%s729 + $0x68] sm:$0x1f]
      %v785 = vld [vmem:[%s729 + $0x78] sm:$0x1f]
      %v786 = vld [vmem:[%s729 + $0x88] sm:$0x1f]
      %v787 = vld [vmem:[%s729 + $0x98] sm:$0x1f]
      %v788 = vld [vmem:[%s729 + $0xa8] sm:$0x1f]
      %v789 = vld [vmem:[%s729 + $0xb8] sm:$0x1f]
      %v790 = vld [vmem:[%s729 + $0xc8] sm:$0x1f]
      %v791 = vld [vmem:[%s729 + $0xd8] sm:$0x1f]
      %v792 = vld [vmem:[%s729 + $0xe8] sm:$0x1f]
      %v793 = vld [vmem:[%s729 + $0xf8] sm:$0x1f]
      %vm794 = vsmask.f32 7424
      %v796 = vshrl.u32 %v633, 16
      %v798 = vshll.u32 %v633, 16
      %v800 = vrot.slane %v798, 1
      %v801 = vor.u32 %v796, %v800
      %v803 = vshll.u32 %v602, 16
      %v805 = vrot.slane %v803, 1
      %v806 = vsel %vm794, %v801, %v805
      %v807 = vshrl.u32 %v602, 16
      %v809 = vor.u32 %v807, %v805
      %v811 = vshrl.u32 %v634, 16
      %v813 = vshll.u32 %v634, 16
      %v815 = vrot.slane %v813, 1
      %v816 = vor.u32 %v811, %v815
      %v818 = vshll.u32 %v604, 16
      %v820 = vrot.slane %v818, 1
      %v821 = vsel %vm794, %v816, %v820
      %v822 = vshrl.u32 %v604, 16
      %v824 = vor.u32 %v822, %v820
      %v826 = vshrl.u32 %v635, 16
      %v828 = vshll.u32 %v635, 16
      %v830 = vrot.slane %v828, 1
      %v831 = vor.u32 %v826, %v830
      %v833 = vshll.u32 %v606, 16
      %v835 = vrot.slane %v833, 1
      %v836 = vsel %vm794, %v831, %v835
      %v837 = vshrl.u32 %v606, 16
      %v839 = vor.u32 %v837, %v835
      %v841 = vshrl.u32 %v636, 16
      %v843 = vshll.u32 %v636, 16
      %v845 = vrot.slane %v843, 1
      %v846 = vor.u32 %v841, %v845
      %v848 = vshll.u32 %v608, 16
      %v850 = vrot.slane %v848, 1
      %v851 = vsel %vm794, %v846, %v850
      %v852 = vshrl.u32 %v608, 16
      %v854 = vor.u32 %v852, %v850
      %v856 = vshrl.u32 %v637, 16
      %v858 = vshll.u32 %v637, 16
      %v860 = vrot.slane %v858, 1
      %v861 = vor.u32 %v856, %v860
      %v863 = vshll.u32 %v610, 16
      %v865 = vrot.slane %v863, 1
      %v866 = vsel %vm794, %v861, %v865
      %v867 = vshrl.u32 %v610, 16
      %v869 = vor.u32 %v867, %v865
      %v871 = vshrl.u32 %v638, 16
      %v873 = vshll.u32 %v638, 16
      %v875 = vrot.slane %v873, 1
      %v876 = vor.u32 %v871, %v875
      %v878 = vshll.u32 %v612, 16
      %v880 = vrot.slane %v878, 1
      %v881 = vsel %vm794, %v876, %v880
      %v882 = vshrl.u32 %v612, 16
      %v884 = vor.u32 %v882, %v880
      %v886 = vshrl.u32 %v639, 16
      %v888 = vshll.u32 %v639, 16
      %v890 = vrot.slane %v888, 1
      %v891 = vor.u32 %v886, %v890
      %v893 = vshll.u32 %v614, 16
      %v895 = vrot.slane %v893, 1
      %v896 = vsel %vm794, %v891, %v895
      %v897 = vshrl.u32 %v614, 16
      %v899 = vor.u32 %v897, %v895
      %v901 = vshrl.u32 %v640, 16
      %v903 = vshll.u32 %v640, 16
      %v905 = vrot.slane %v903, 1
      %v906 = vor.u32 %v901, %v905
      %v908 = vshll.u32 %v616, 16
      %v910 = vrot.slane %v908, 1
      %v911 = vsel %vm794, %v906, %v910
      %v912 = vshrl.u32 %v616, 16
      %v914 = vor.u32 %v912, %v910
      %v916 = vshrl.u32 %v641, 16
      %v918 = vshll.u32 %v641, 16
      %v920 = vrot.slane %v918, 1
      %v921 = vor.u32 %v916, %v920
      %v923 = vshll.u32 %v618, 16
      %v925 = vrot.slane %v923, 1
      %v926 = vsel %vm794, %v921, %v925
      %v927 = vshrl.u32 %v618, 16
      %v929 = vor.u32 %v927, %v925
      %v931 = vshrl.u32 %v642, 16
      %v933 = vshll.u32 %v642, 16
      %v935 = vrot.slane %v933, 1
      %v936 = vor.u32 %v931, %v935
      %v938 = vshll.u32 %v620, 16
      %v940 = vrot.slane %v938, 1
      %v941 = vsel %vm794, %v936, %v940
      %v942 = vshrl.u32 %v620, 16
      %v944 = vor.u32 %v942, %v940
      %v946 = vshrl.u32 %v643, 16
      %v948 = vshll.u32 %v643, 16
      %v950 = vrot.slane %v948, 1
      %v951 = vor.u32 %v946, %v950
      %v953 = vshll.u32 %v622, 16
      %v955 = vrot.slane %v953, 1
      %v956 = vsel %vm794, %v951, %v955
      %v957 = vshrl.u32 %v622, 16
      %v959 = vor.u32 %v957, %v955
      %v961 = vshrl.u32 %v644, 16
      %v963 = vshll.u32 %v644, 16
      %v965 = vrot.slane %v963, 1
      %v966 = vor.u32 %v961, %v965
      %v968 = vshll.u32 %v624, 16
      %v970 = vrot.slane %v968, 1
      %v971 = vsel %vm794, %v966, %v970
      %v972 = vshrl.u32 %v624, 16
      %v974 = vor.u32 %v972, %v970
      %v976 = vshrl.u32 %v645, 16
      %v978 = vshll.u32 %v645, 16
      %v980 = vrot.slane %v978, 1
      %v981 = vor.u32 %v976, %v980
      %v983 = vshll.u32 %v626, 16
      %v985 = vrot.slane %v983, 1
      %v986 = vsel %vm794, %v981, %v985
      %v987 = vshrl.u32 %v626, 16
      %v989 = vor.u32 %v987, %v985
      %v991 = vshrl.u32 %v646, 16
      %v993 = vshll.u32 %v646, 16
      %v995 = vrot.slane %v993, 1
      %v996 = vor.u32 %v991, %v995
      %v998 = vshll.u32 %v628, 16
      %v1000 = vrot.slane %v998, 1
      %v1001 = vsel %vm794, %v996, %v1000
      %v1002 = vshrl.u32 %v628, 16
      %v1004 = vor.u32 %v1002, %v1000
      %v1006 = vshrl.u32 %v647, 16
      %v1008 = vshll.u32 %v647, 16
      %v1010 = vrot.slane %v1008, 1
      %v1011 = vor.u32 %v1006, %v1010
      %v1013 = vshll.u32 %v630, 16
      %v1015 = vrot.slane %v1013, 1
      %v1016 = vsel %vm794, %v1011, %v1015
      %v1017 = vshrl.u32 %v630, 16
      %v1019 = vor.u32 %v1017, %v1015
      %v1021 = vshrl.u32 %v648, 16
      %v1023 = vshll.u32 %v648, 16
      %v1025 = vrot.slane %v1023, 1
      %v1026 = vor.u32 %v1021, %v1025
      %v1028 = vshll.u32 %v632, 16
      %v1030 = vrot.slane %v1028, 1
      %v1031 = vsel %vm794, %v1026, %v1030
      %v1032 = vshrl.u32 %v632, 16
      %v1034 = vor.u32 %v1032, %v1030
      %1035 = vrot.lane.b32.xlu0 %v806, 4
      %v1036 = vpop.permute.xlu0 %1035
      %1037 = vrot.lane.b32.xlu0 %v809, 4
      %v1038 = vpop.permute.xlu0 %1037
      %1039 = vrot.lane.b32.xlu0 %v821, 4
      %v1040 = vpop.permute.xlu0 %1039
      %1041 = vrot.lane.b32.xlu0 %v824, 4
      %v1042 = vpop.permute.xlu0 %1041
      %1043 = vrot.lane.b32.xlu0 %v836, 4
      %v1044 = vpop.permute.xlu0 %1043
      %1045 = vrot.lane.b32.xlu0 %v839, 4
      %v1046 = vpop.permute.xlu0 %1045
      %1047 = vrot.lane.b32.xlu0 %v851, 4
      %v1048 = vpop.permute.xlu0 %1047
      %1049 = vrot.lane.b32.xlu0 %v854, 4
      %v1050 = vpop.permute.xlu0 %1049
      %1051 = vrot.lane.b32.xlu0 %v866, 4
      %v1052 = vpop.permute.xlu0 %1051
      %1053 = vrot.lane.b32.xlu0 %v869, 4
      %v1054 = vpop.permute.xlu0 %1053
      %1055 = vrot.lane.b32.xlu0 %v881, 4
      %v1056 = vpop.permute.xlu0 %1055
      %1057 = vrot.lane.b32.xlu0 %v884, 4
      %v1058 = vpop.permute.xlu0 %1057
      %1059 = vrot.lane.b32.xlu0 %v896, 4
      %v1060 = vpop.permute.xlu0 %1059
      %1061 = vrot.lane.b32.xlu0 %v899, 4
      %v1062 = vpop.permute.xlu0 %1061
      %1063 = vrot.lane.b32.xlu0 %v911, 4
      %v1064 = vpop.permute.xlu0 %1063
      %1065 = vrot.lane.b32.xlu0 %v914, 4
      %v1066 = vpop.permute.xlu0 %1065
      %1067 = vrot.lane.b32.xlu0 %v926, 4
      %v1068 = vpop.permute.xlu0 %1067
      %1069 = vrot.lane.b32.xlu0 %v929, 4
      %v1070 = vpop.permute.xlu0 %1069
      %1071 = vrot.lane.b32.xlu0 %v941, 4
      %v1072 = vpop.permute.xlu0 %1071
      %1073 = vrot.lane.b32.xlu0 %v944, 4
      %v1074 = vpop.permute.xlu0 %1073
      %1075 = vrot.lane.b32.xlu0 %v956, 4
      %v1076 = vpop.permute.xlu0 %1075
      %1077 = vrot.lane.b32.xlu0 %v959, 4
      %v1078 = vpop.permute.xlu0 %1077
      %1079 = vrot.lane.b32.xlu0 %v971, 4
      %v1080 = vpop.permute.xlu0 %1079
      %1081 = vrot.lane.b32.xlu0 %v974, 4
      %v1082 = vpop.permute.xlu0 %1081
      %1083 = vrot.lane.b32.xlu0 %v986, 4
      %v1084 = vpop.permute.xlu0 %1083
      %1085 = vrot.lane.b32.xlu0 %v989, 4
      %v1086 = vpop.permute.xlu0 %1085
      %1087 = vrot.lane.b32.xlu0 %v1001, 4
      %v1088 = vpop.permute.xlu0 %1087
      %1089 = vrot.lane.b32.xlu0 %v1004, 4
      %v1090 = vpop.permute.xlu0 %1089
      %1091 = vrot.lane.b32.xlu0 %v1016, 4
      %v1092 = vpop.permute.xlu0 %1091
      %1093 = vrot.lane.b32.xlu0 %v1019, 4
      %v1094 = vpop.permute.xlu0 %1093
      %1095 = vrot.lane.b32.xlu0 %v1031, 4
      %v1096 = vpop.permute.xlu0 %1095
      %1097 = vrot.lane.b32.xlu0 %v1034, 4
      %v1098 = vpop.permute.xlu0 %1097
      %vm1131 = vcmask 1046528
      %v1132 = vrot.slane %v633, 1
      %v1133 = vrot.slane %v649, 1
      %v1134 = vsel %vm1131, %v1132, %v1133
      %v1135 = vrot.slane %v634, 1
      %v1136 = vrot.slane %v650, 1
      %v1137 = vsel %vm1131, %v1135, %v1136
      %v1138 = vrot.slane %v635, 1
      %v1139 = vrot.slane %v651, 1
      %v1140 = vsel %vm1131, %v1138, %v1139
      %v1141 = vrot.slane %v636, 1
      %v1142 = vrot.slane %v652, 1
      %v1143 = vsel %vm1131, %v1141, %v1142
      %v1144 = vrot.slane %v637, 1
      %v1145 = vrot.slane %v653, 1
      %v1146 = vsel %vm1131, %v1144, %v1145
      %v1147 = vrot.slane %v638, 1
      %v1148 = vrot.slane %v654, 1
      %v1149 = vsel %vm1131, %v1147, %v1148
      %v1150 = vrot.slane %v639, 1
      %v1151 = vrot.slane %v655, 1
      %v1152 = vsel %vm1131, %v1150, %v1151
      %v1153 = vrot.slane %v640, 1
      %v1154 = vrot.slane %v656, 1
      %v1155 = vsel %vm1131, %v1153, %v1154
      %v1156 = vrot.slane %v641, 1
      %v1157 = vrot.slane %v657, 1
      %v1158 = vsel %vm1131, %v1156, %v1157
      %v1159 = vrot.slane %v642, 1
      %v1160 = vrot.slane %v658, 1
      %v1161 = vsel %vm1131, %v1159, %v1160
      %v1162 = vrot.slane %v643, 1
      %v1163 = vrot.slane %v659, 1
      %v1164 = vsel %vm1131, %v1162, %v1163
      %v1165 = vrot.slane %v644, 1
      %v1166 = vrot.slane %v660, 1
      %v1167 = vsel %vm1131, %v1165, %v1166
      %v1168 = vrot.slane %v645, 1
      %v1169 = vrot.slane %v661, 1
      %v1170 = vsel %vm1131, %v1168, %v1169
      %v1171 = vrot.slane %v646, 1
      %v1172 = vrot.slane %v662, 1
      %v1173 = vsel %vm1131, %v1171, %v1172
      %v1174 = vrot.slane %v647, 1
      %v1175 = vrot.slane %v663, 1
      %v1176 = vsel %vm1131, %v1174, %v1175
      %v1177 = vrot.slane %v648, 1
      %v1178 = vrot.slane %v664, 1
      %v1179 = vsel %vm1131, %v1177, %v1178
      %1180 = vrot.lane.b32.xlu0 %v1134, 8
      %v1181 = vpop.permute.xlu0 %1180
      %1182 = vrot.lane.b32.xlu0 %v1133, 8
      %v1183 = vpop.permute.xlu0 %1182
      %1184 = vrot.lane.b32.xlu0 %v1137, 8
      %v1185 = vpop.permute.xlu0 %1184
      %1186 = vrot.lane.b32.xlu0 %v1136, 8
      %v1187 = vpop.permute.xlu0 %1186
      %1188 = vrot.lane.b32.xlu0 %v1140, 8
      %v1189 = vpop.permute.xlu0 %1188
      %1190 = vrot.lane.b32.xlu0 %v1139, 8
      %v1191 = vpop.permute.xlu0 %1190
      %1192 = vrot.lane.b32.xlu0 %v1143, 8
      %v1193 = vpop.permute.xlu0 %1192
      %1194 = vrot.lane.b32.xlu0 %v1142, 8
      %v1195 = vpop.permute.xlu0 %1194
      %1196 = vrot.lane.b32.xlu0 %v1146, 8
      %v1197 = vpop.permute.xlu0 %1196
      %1198 = vrot.lane.b32.xlu0 %v1145, 8
      %v1199 = vpop.permute.xlu0 %1198
      %1200 = vrot.lane.b32.xlu0 %v1149, 8
      %v1201 = vpop.permute.xlu0 %1200
      %1202 = vrot.lane.b32.xlu0 %v1148, 8
      %v1203 = vpop.permute.xlu0 %1202
      %1204 = vrot.lane.b32.xlu0 %v1152, 8
      %v1205 = vpop.permute.xlu0 %1204
      %1206 = vrot.lane.b32.xlu0 %v1151, 8
      %v1207 = vpop.permute.xlu0 %1206
      %1208 = vrot.lane.b32.xlu0 %v1155, 8
      %v1209 = vpop.permute.xlu0 %1208
      %1210 = vrot.lane.b32.xlu0 %v1154, 8
      %v1211 = vpop.permute.xlu0 %1210
      %1212 = vrot.lane.b32.xlu0 %v1158, 8
      %v1213 = vpop.permute.xlu0 %1212
      %1214 = vrot.lane.b32.xlu0 %v1157, 8
      %v1215 = vpop.permute.xlu0 %1214
      %1216 = vrot.lane.b32.xlu0 %v1161, 8
      %v1217 = vpop.permute.xlu0 %1216
      %1218 = vrot.lane.b32.xlu0 %v1160, 8
      %v1219 = vpop.permute.xlu0 %1218
      %1220 = vrot.lane.b32.xlu0 %v1164, 8
      %v1221 = vpop.permute.xlu0 %1220
      %1222 = vrot.lane.b32.xlu0 %v1163, 8
      %v1223 = vpop.permute.xlu0 %1222
      %1224 = vrot.lane.b32.xlu0 %v1167, 8
      %v1225 = vpop.permute.xlu0 %1224
      %1226 = vrot.lane.b32.xlu0 %v1166, 8
      %v1227 = vpop.permute.xlu0 %1226
      %1228 = vrot.lane.b32.xlu0 %v1170, 8
      %v1229 = vpop.permute.xlu0 %1228
      %1230 = vrot.lane.b32.xlu0 %v1169, 8
      %v1231 = vpop.permute.xlu0 %1230
      %1232 = vrot.lane.b32.xlu0 %v1173, 8
      %v1233 = vpop.permute.xlu0 %1232
      %1234 = vrot.lane.b32.xlu0 %v1172, 8
      %v1235 = vpop.permute.xlu0 %1234
      %1236 = vrot.lane.b32.xlu0 %v1176, 8
      %v1237 = vpop.permute.xlu0 %1236
      %1238 = vrot.lane.b32.xlu0 %v1175, 8
      %v1239 = vpop.permute.xlu0 %1238
      %1240 = vrot.lane.b32.xlu0 %v1179, 8
      %v1241 = vpop.permute.xlu0 %1240
      %1242 = vrot.lane.b32.xlu0 %v1178, 8
      %v1243 = vpop.permute.xlu0 %1242
      %1276 = vrot.lane.b32.xlu0 %v665, 12
      %v1277 = vpop.permute.xlu0 %1276
      %1278 = vrot.lane.b32.xlu0 %v666, 12
      %v1279 = vpop.permute.xlu0 %1278
      %1280 = vrot.lane.b32.xlu0 %v667, 12
      %v1281 = vpop.permute.xlu0 %1280
      %1282 = vrot.lane.b32.xlu0 %v668, 12
      %v1283 = vpop.permute.xlu0 %1282
      %1284 = vrot.lane.b32.xlu0 %v669, 12
      %v1285 = vpop.permute.xlu0 %1284
      %1286 = vrot.lane.b32.xlu0 %v670, 12
      %v1287 = vpop.permute.xlu0 %1286
      %1288 = vrot.lane.b32.xlu0 %v671, 12
      %v1289 = vpop.permute.xlu0 %1288
      %1290 = vrot.lane.b32.xlu0 %v672, 12
      %v1291 = vpop.permute.xlu0 %1290
      %1292 = vrot.lane.b32.xlu0 %v673, 12
      %v1293 = vpop.permute.xlu0 %1292
      %1294 = vrot.lane.b32.xlu0 %v674, 12
      %v1295 = vpop.permute.xlu0 %1294
      %1296 = vrot.lane.b32.xlu0 %v675, 12
      %v1297 = vpop.permute.xlu0 %1296
      %1298 = vrot.lane.b32.xlu0 %v676, 12
      %v1299 = vpop.permute.xlu0 %1298
      %1300 = vrot.lane.b32.xlu0 %v677, 12
      %v1301 = vpop.permute.xlu0 %1300
      %1302 = vrot.lane.b32.xlu0 %v678, 12
      %v1303 = vpop.permute.xlu0 %1302
      %1304 = vrot.lane.b32.xlu0 %v679, 12
      %v1305 = vpop.permute.xlu0 %1304
      %1306 = vrot.lane.b32.xlu0 %v680, 12
      %v1307 = vpop.permute.xlu0 %1306
      %1308 = vrot.lane.b32.xlu0 %v681, 12
      %v1309 = vpop.permute.xlu0 %1308
      %1310 = vrot.lane.b32.xlu0 %v682, 12
      %v1311 = vpop.permute.xlu0 %1310
      %1312 = vrot.lane.b32.xlu0 %v683, 12
      %v1313 = vpop.permute.xlu0 %1312
      %1314 = vrot.lane.b32.xlu0 %v684, 12
      %v1315 = vpop.permute.xlu0 %1314
      %1316 = vrot.lane.b32.xlu0 %v685, 12
      %v1317 = vpop.permute.xlu0 %1316
      %1318 = vrot.lane.b32.xlu0 %v686, 12
      %v1319 = vpop.permute.xlu0 %1318
      %1320 = vrot.lane.b32.xlu0 %v687, 12
      %v1321 = vpop.permute.xlu0 %1320
      %1322 = vrot.lane.b32.xlu0 %v688, 12
      %v1323 = vpop.permute.xlu0 %1322
      %1324 = vrot.lane.b32.xlu0 %v689, 12
      %v1325 = vpop.permute.xlu0 %1324
      %1326 = vrot.lane.b32.xlu0 %v690, 12
      %v1327 = vpop.permute.xlu0 %1326
      %1328 = vrot.lane.b32.xlu0 %v691, 12
      %v1329 = vpop.permute.xlu0 %1328
      %1330 = vrot.lane.b32.xlu0 %v692, 12
      %v1331 = vpop.permute.xlu0 %1330
      %1332 = vrot.lane.b32.xlu0 %v693, 12
      %v1333 = vpop.permute.xlu0 %1332
      %1334 = vrot.lane.b32.xlu0 %v694, 12
      %v1335 = vpop.permute.xlu0 %1334
      %1336 = vrot.lane.b32.xlu0 %v695, 12
      %v1337 = vpop.permute.xlu0 %1336
      %1338 = vrot.lane.b32.xlu0 %v696, 12
      %v1339 = vpop.permute.xlu0 %1338
      %v1341 = vshrl.u32 %v697, 16
      %v1343 = vshll.u32 %v697, 16
      %v1345 = vrot.slane %v1343, 1
      %v1346 = vor.u32 %v1341, %v1345
      %v1348 = vshll.u32 %v666, 16
      %v1350 = vrot.slane %v1348, 1
      %v1351 = vsel %vm794, %v1346, %v1350
      %v1352 = vshrl.u32 %v666, 16
      %v1354 = vor.u32 %v1352, %v1350
      %v1356 = vshrl.u32 %v698, 16
      %v1358 = vshll.u32 %v698, 16
      %v1360 = vrot.slane %v1358, 1
      %v1361 = vor.u32 %v1356, %v1360
      %v1363 = vshll.u32 %v668, 16
      %v1365 = vrot.slane %v1363, 1
      %v1366 = vsel %vm794, %v1361, %v1365
      %v1367 = vshrl.u32 %v668, 16
      %v1369 = vor.u32 %v1367, %v1365
      %v1371 = vshrl.u32 %v699, 16
      %v1373 = vshll.u32 %v699, 16
      %v1375 = vrot.slane %v1373, 1
      %v1376 = vor.u32 %v1371, %v1375
      %v1378 = vshll.u32 %v670, 16
      %v1380 = vrot.slane %v1378, 1
      %v1381 = vsel %vm794, %v1376, %v1380
      %v1382 = vshrl.u32 %v670, 16
      %v1384 = vor.u32 %v1382, %v1380
      %v1386 = vshrl.u32 %v700, 16
      %v1388 = vshll.u32 %v700, 16
      %v1390 = vrot.slane %v1388, 1
      %v1391 = vor.u32 %v1386, %v1390
      %v1393 = vshll.u32 %v672, 16
      %v1395 = vrot.slane %v1393, 1
      %v1396 = vsel %vm794, %v1391, %v1395
      %v1397 = vshrl.u32 %v672, 16
      %v1399 = vor.u32 %v1397, %v1395
      %v1401 = vshrl.u32 %v701, 16
      %v1403 = vshll.u32 %v701, 16
      %v1405 = vrot.slane %v1403, 1
      %v1406 = vor.u32 %v1401, %v1405
      %v1408 = vshll.u32 %v674, 16
      %v1410 = vrot.slane %v1408, 1
      %v1411 = vsel %vm794, %v1406, %v1410
      %v1412 = vshrl.u32 %v674, 16
      %v1414 = vor.u32 %v1412, %v1410
      %v1416 = vshrl.u32 %v702, 16
      %v1418 = vshll.u32 %v702, 16
      %v1420 = vrot.slane %v1418, 1
      %v1421 = vor.u32 %v1416, %v1420
      %v1423 = vshll.u32 %v676, 16
      %v1425 = vrot.slane %v1423, 1
      %v1426 = vsel %vm794, %v1421, %v1425
      %v1427 = vshrl.u32 %v676, 16
      %v1429 = vor.u32 %v1427, %v1425
      %v1431 = vshrl.u32 %v703, 16
      %v1433 = vshll.u32 %v703, 16
      %v1435 = vrot.slane %v1433, 1
      %v1436 = vor.u32 %v1431, %v1435
      %v1438 = vshll.u32 %v678, 16
      %v1440 = vrot.slane %v1438, 1
      %v1441 = vsel %vm794, %v1436, %v1440
      %v1442 = vshrl.u32 %v678, 16
      %v1444 = vor.u32 %v1442, %v1440
      %v1446 = vshrl.u32 %v704, 16
      %v1448 = vshll.u32 %v704, 16
      %v1450 = vrot.slane %v1448, 1
      %v1451 = vor.u32 %v1446, %v1450
      %v1453 = vshll.u32 %v680, 16
      %v1455 = vrot.slane %v1453, 1
      %v1456 = vsel %vm794, %v1451, %v1455
      %v1457 = vshrl.u32 %v680, 16
      %v1459 = vor.u32 %v1457, %v1455
      %v1461 = vshrl.u32 %v705, 16
      %v1463 = vshll.u32 %v705, 16
      %v1465 = vrot.slane %v1463, 1
      %v1466 = vor.u32 %v1461, %v1465
      %v1468 = vshll.u32 %v682, 16
      %v1470 = vrot.slane %v1468, 1
      %v1471 = vsel %vm794, %v1466, %v1470
      %v1472 = vshrl.u32 %v682, 16
      %v1474 = vor.u32 %v1472, %v1470
      %v1476 = vshrl.u32 %v706, 16
      %v1478 = vshll.u32 %v706, 16
      %v1480 = vrot.slane %v1478, 1
      %v1481 = vor.u32 %v1476, %v1480
      %v1483 = vshll.u32 %v684, 16
      %v1485 = vrot.slane %v1483, 1
      %v1486 = vsel %vm794, %v1481, %v1485
      %v1487 = vshrl.u32 %v684, 16
      %v1489 = vor.u32 %v1487, %v1485
      %v1491 = vshrl.u32 %v707, 16
      %v1493 = vshll.u32 %v707, 16
      %v1495 = vrot.slane %v1493, 1
      %v1496 = vor.u32 %v1491, %v1495
      %v1498 = vshll.u32 %v686, 16
      %v1500 = vrot.slane %v1498, 1
      %v1501 = vsel %vm794, %v1496, %v1500
      %v1502 = vshrl.u32 %v686, 16
      %v1504 = vor.u32 %v1502, %v1500
      %v1506 = vshrl.u32 %v708, 16
      %v1508 = vshll.u32 %v708, 16
      %v1510 = vrot.slane %v1508, 1
      %v1511 = vor.u32 %v1506, %v1510
      %v1513 = vshll.u32 %v688, 16
      %v1515 = vrot.slane %v1513, 1
      %v1516 = vsel %vm794, %v1511, %v1515
      %v1517 = vshrl.u32 %v688, 16
      %v1519 = vor.u32 %v1517, %v1515
      %v1521 = vshrl.u32 %v709, 16
      %v1523 = vshll.u32 %v709, 16
      %v1525 = vrot.slane %v1523, 1
      %v1526 = vor.u32 %v1521, %v1525
      %v1528 = vshll.u32 %v690, 16
      %v1530 = vrot.slane %v1528, 1
      %v1531 = vsel %vm794, %v1526, %v1530
      %v1532 = vshrl.u32 %v690, 16
      %v1534 = vor.u32 %v1532, %v1530
      %v1536 = vshrl.u32 %v710, 16
      %v1538 = vshll.u32 %v710, 16
      %v1540 = vrot.slane %v1538, 1
      %v1541 = vor.u32 %v1536, %v1540
      %v1543 = vshll.u32 %v692, 16
      %v1545 = vrot.slane %v1543, 1
      %v1546 = vsel %vm794, %v1541, %v1545
      %v1547 = vshrl.u32 %v692, 16
      %v1549 = vor.u32 %v1547, %v1545
      %v1551 = vshrl.u32 %v711, 16
      %v1553 = vshll.u32 %v711, 16
      %v1555 = vrot.slane %v1553, 1
      %v1556 = vor.u32 %v1551, %v1555
      %v1558 = vshll.u32 %v694, 16
      %v1560 = vrot.slane %v1558, 1
      %v1561 = vsel %vm794, %v1556, %v1560
      %v1562 = vshrl.u32 %v694, 16
      %v1564 = vor.u32 %v1562, %v1560
      %v1566 = vshrl.u32 %v712, 16
      %v1568 = vshll.u32 %v712, 16
      %v1570 = vrot.slane %v1568, 1
      %v1571 = vor.u32 %v1566, %v1570
      %v1573 = vshll.u32 %v696, 16
      %v1575 = vrot.slane %v1573, 1
      %v1576 = vsel %vm794, %v1571, %v1575
      %v1577 = vshrl.u32 %v696, 16
      %v1579 = vor.u32 %v1577, %v1575
      %1580 = vrot.lane.b32.xlu0 %v1351, 16
      %v1581 = vpop.permute.xlu0 %1580
      %1582 = vrot.lane.b32.xlu0 %v1354, 16
      %v1583 = vpop.permute.xlu0 %1582
      %1584 = vrot.lane.b32.xlu0 %v1366, 16
      %v1585 = vpop.permute.xlu0 %1584
      %1586 = vrot.lane.b32.xlu0 %v1369, 16
      %v1587 = vpop.permute.xlu0 %1586
      %1588 = vrot.lane.b32.xlu0 %v1381, 16
      %v1589 = vpop.permute.xlu0 %1588
      %1590 = vrot.lane.b32.xlu0 %v1384, 16
      %v1591 = vpop.permute.xlu0 %1590
      %1592 = vrot.lane.b32.xlu0 %v1396, 16
      %v1593 = vpop.permute.xlu0 %1592
      %1594 = vrot.lane.b32.xlu0 %v1399, 16
      %v1595 = vpop.permute.xlu0 %1594
      %1596 = vrot.lane.b32.xlu0 %v1411, 16
      %v1597 = vpop.permute.xlu0 %1596
      %1598 = vrot.lane.b32.xlu0 %v1414, 16
      %v1599 = vpop.permute.xlu0 %1598
      %1600 = vrot.lane.b32.xlu0 %v1426, 16
      %v1601 = vpop.permute.xlu0 %1600
      %1602 = vrot.lane.b32.xlu0 %v1429, 16
      %v1603 = vpop.permute.xlu0 %1602
      %1604 = vrot.lane.b32.xlu0 %v1441, 16
      %v1605 = vpop.permute.xlu0 %1604
      %1606 = vrot.lane.b32.xlu0 %v1444, 16
      %v1607 = vpop.permute.xlu0 %1606
      %1608 = vrot.lane.b32.xlu0 %v1456, 16
      %v1609 = vpop.permute.xlu0 %1608
      %1610 = vrot.lane.b32.xlu0 %v1459, 16
      %v1611 = vpop.permute.xlu0 %1610
      %1612 = vrot.lane.b32.xlu0 %v1471, 16
      %v1613 = vpop.permute.xlu0 %1612
      %1614 = vrot.lane.b32.xlu0 %v1474, 16
      %v1615 = vpop.permute.xlu0 %1614
      %1616 = vrot.lane.b32.xlu0 %v1486, 16
      %v1617 = vpop.permute.xlu0 %1616
      %1618 = vrot.lane.b32.xlu0 %v1489, 16
      %v1619 = vpop.permute.xlu0 %1618
      %1620 = vrot.lane.b32.xlu0 %v1501, 16
      %v1621 = vpop.permute.xlu0 %1620
      %1622 = vrot.lane.b32.xlu0 %v1504, 16
      %v1623 = vpop.permute.xlu0 %1622
      %1624 = vrot.lane.b32.xlu0 %v1516, 16
      %v1625 = vpop.permute.xlu0 %1624
      %1626 = vrot.lane.b32.xlu0 %v1519, 16
      %v1627 = vpop.permute.xlu0 %1626
      %1628 = vrot.lane.b32.xlu0 %v1531, 16
      %v1629 = vpop.permute.xlu0 %1628
      %1630 = vrot.lane.b32.xlu0 %v1534, 16
      %v1631 = vpop.permute.xlu0 %1630
      %1632 = vrot.lane.b32.xlu0 %v1546, 16
      %v1633 = vpop.permute.xlu0 %1632
      %1634 = vrot.lane.b32.xlu0 %v1549, 16
      %v1635 = vpop.permute.xlu0 %1634
      %1636 = vrot.lane.b32.xlu0 %v1561, 16
      %v1637 = vpop.permute.xlu0 %1636
      %1638 = vrot.lane.b32.xlu0 %v1564, 16
      %v1639 = vpop.permute.xlu0 %1638
      %1640 = vrot.lane.b32.xlu0 %v1576, 16
      %v1641 = vpop.permute.xlu0 %1640
      %1642 = vrot.lane.b32.xlu0 %v1579, 16
      %v1643 = vpop.permute.xlu0 %1642
      %v1676 = vrot.slane %v697, 1
      %v1677 = vrot.slane %v713, 1
      %v1678 = vsel %vm1131, %v1676, %v1677
      %v1679 = vrot.slane %v698, 1
      %v1680 = vrot.slane %v714, 1
      %v1681 = vsel %vm1131, %v1679, %v1680
      %v1682 = vrot.slane %v699, 1
      %v1683 = vrot.slane %v715, 1
      %v1684 = vsel %vm1131, %v1682, %v1683
      %v1685 = vrot.slane %v700, 1
      %v1686 = vrot.slane %v716, 1
      %v1687 = vsel %vm1131, %v1685, %v1686
      %v1688 = vrot.slane %v701, 1
      %v1689 = vrot.slane %v717, 1
      %v1690 = vsel %vm1131, %v1688, %v1689
      %v1691 = vrot.slane %v702, 1
      %v1692 = vrot.slane %v718, 1
      %v1693 = vsel %vm1131, %v1691, %v1692
      %v1694 = vrot.slane %v703, 1
      %v1695 = vrot.slane %v719, 1
      %v1696 = vsel %vm1131, %v1694, %v1695
      %v1697 = vrot.slane %v704, 1
      %v1698 = vrot.slane %v720, 1
      %v1699 = vsel %vm1131, %v1697, %v1698
      %v1700 = vrot.slane %v705, 1
      %v1701 = vrot.slane %v721, 1
      %v1702 = vsel %vm1131, %v1700, %v1701
      %v1703 = vrot.slane %v706, 1
      %v1704 = vrot.slane %v722, 1
      %v1705 = vsel %vm1131, %v1703, %v1704
      %v1706 = vrot.slane %v707, 1
      %v1707 = vrot.slane %v723, 1
      %v1708 = vsel %vm1131, %v1706, %v1707
      %v1709 = vrot.slane %v708, 1
      %v1710 = vrot.slane %v724, 1
      %v1711 = vsel %vm1131, %v1709, %v1710
      %v1712 = vrot.slane %v709, 1
      %v1713 = vrot.slane %v725, 1
      %v1714 = vsel %vm1131, %v1712, %v1713
      %v1715 = vrot.slane %v710, 1
      %v1716 = vrot.slane %v726, 1
      %v1717 = vsel %vm1131, %v1715, %v1716
      %v1718 = vrot.slane %v711, 1
      %v1719 = vrot.slane %v727, 1
      %v1720 = vsel %vm1131, %v1718, %v1719
      %v1721 = vrot.slane %v712, 1
      %v1722 = vrot.slane %v728, 1
      %v1723 = vsel %vm1131, %v1721, %v1722
      %1724 = vrot.lane.b32.xlu0 %v1678, 20
      %v1725 = vpop.permute.xlu0 %1724
      %1726 = vrot.lane.b32.xlu0 %v1677, 20
      %v1727 = vpop.permute.xlu0 %1726
      %1728 = vrot.lane.b32.xlu0 %v1681, 20
      %v1729 = vpop.permute.xlu0 %1728
      %1730 = vrot.lane.b32.xlu0 %v1680, 20
      %v1731 = vpop.permute.xlu0 %1730
      %1732 = vrot.lane.b32.xlu0 %v1684, 20
      %v1733 = vpop.permute.xlu0 %1732
      %1734 = vrot.lane.b32.xlu0 %v1683, 20
      %v1735 = vpop.permute.xlu0 %1734
      %1736 = vrot.lane.b32.xlu0 %v1687, 20
      %v1737 = vpop.permute.xlu0 %1736
      %1738 = vrot.lane.b32.xlu0 %v1686, 20
      %v1739 = vpop.permute.xlu0 %1738
      %1740 = vrot.lane.b32.xlu0 %v1690, 20
      %v1741 = vpop.permute.xlu0 %1740
      %1742 = vrot.lane.b32.xlu0 %v1689, 20
      %v1743 = vpop.permute.xlu0 %1742
      %1744 = vrot.lane.b32.xlu0 %v1693, 20
      %v1745 = vpop.permute.xlu0 %1744
      %1746 = vrot.lane.b32.xlu0 %v1692, 20
      %v1747 = vpop.permute.xlu0 %1746
      %1748 = vrot.lane.b32.xlu0 %v1696, 20
      %v1749 = vpop.permute.xlu0 %1748
      %1750 = vrot.lane.b32.xlu0 %v1695, 20
      %v1751 = vpop.permute.xlu0 %1750
      %1752 = vrot.lane.b32.xlu0 %v1699, 20
      %v1753 = vpop.permute.xlu0 %1752
      %1754 = vrot.lane.b32.xlu0 %v1698, 20
      %v1755 = vpop.permute.xlu0 %1754
      %1756 = vrot.lane.b32.xlu0 %v1702, 20
      %v1757 = vpop.permute.xlu0 %1756
      %1758 = vrot.lane.b32.xlu0 %v1701, 20
      %v1759 = vpop.permute.xlu0 %1758
      %1760 = vrot.lane.b32.xlu0 %v1705, 20
      %v1761 = vpop.permute.xlu0 %1760
      %1762 = vrot.lane.b32.xlu0 %v1704, 20
      %v1763 = vpop.permute.xlu0 %1762
      %1764 = vrot.lane.b32.xlu0 %v1708, 20
      %v1765 = vpop.permute.xlu0 %1764
      %1766 = vrot.lane.b32.xlu0 %v1707, 20
      %v1767 = vpop.permute.xlu0 %1766
      %1768 = vrot.lane.b32.xlu0 %v1711, 20
      %v1769 = vpop.permute.xlu0 %1768
      %1770 = vrot.lane.b32.xlu0 %v1710, 20
      %v1771 = vpop.permute.xlu0 %1770
      %1772 = vrot.lane.b32.xlu0 %v1714, 20
      %v1773 = vpop.permute.xlu0 %1772
      %1774 = vrot.lane.b32.xlu0 %v1713, 20
      %v1775 = vpop.permute.xlu0 %1774
      %1776 = vrot.lane.b32.xlu0 %v1717, 20
      %v1777 = vpop.permute.xlu0 %1776
      %1778 = vrot.lane.b32.xlu0 %v1716, 20
      %v1779 = vpop.permute.xlu0 %1778
      %1780 = vrot.lane.b32.xlu0 %v1720, 20
      %v1781 = vpop.permute.xlu0 %1780
      %1782 = vrot.lane.b32.xlu0 %v1719, 20
      %v1783 = vpop.permute.xlu0 %1782
      %1784 = vrot.lane.b32.xlu0 %v1723, 20
      %v1785 = vpop.permute.xlu0 %1784
      %1786 = vrot.lane.b32.xlu0 %v1722, 20
      %v1787 = vpop.permute.xlu0 %1786
      %1820 = vrot.lane.b32.xlu0 %v730, 24
      %v1821 = vpop.permute.xlu0 %1820
      %1822 = vrot.lane.b32.xlu0 %v731, 24
      %v1823 = vpop.permute.xlu0 %1822
      %1824 = vrot.lane.b32.xlu0 %v732, 24
      %v1825 = vpop.permute.xlu0 %1824
      %1826 = vrot.lane.b32.xlu0 %v733, 24
      %v1827 = vpop.permute.xlu0 %1826
      %1828 = vrot.lane.b32.xlu0 %v734, 24
      %v1829 = vpop.permute.xlu0 %1828
      %1830 = vrot.lane.b32.xlu0 %v735, 24
      %v1831 = vpop.permute.xlu0 %1830
      %1832 = vrot.lane.b32.xlu0 %v736, 24
      %v1833 = vpop.permute.xlu0 %1832
      %1834 = vrot.lane.b32.xlu0 %v737, 24
      %v1835 = vpop.permute.xlu0 %1834
      %1836 = vrot.lane.b32.xlu0 %v738, 24
      %v1837 = vpop.permute.xlu0 %1836
      %1838 = vrot.lane.b32.xlu0 %v739, 24
      %v1839 = vpop.permute.xlu0 %1838
      %1840 = vrot.lane.b32.xlu0 %v740, 24
      %v1841 = vpop.permute.xlu0 %1840
      %1842 = vrot.lane.b32.xlu0 %v741, 24
      %v1843 = vpop.permute.xlu0 %1842
      %1844 = vrot.lane.b32.xlu0 %v742, 24
      %v1845 = vpop.permute.xlu0 %1844
      %1846 = vrot.lane.b32.xlu0 %v743, 24
      %v1847 = vpop.permute.xlu0 %1846
      %1848 = vrot.lane.b32.xlu0 %v744, 24
      %v1849 = vpop.permute.xlu0 %1848
      %1850 = vrot.lane.b32.xlu0 %v745, 24
      %v1851 = vpop.permute.xlu0 %1850
      %1852 = vrot.lane.b32.xlu0 %v746, 24
      %v1853 = vpop.permute.xlu0 %1852
      %1854 = vrot.lane.b32.xlu0 %v747, 24
      %v1855 = vpop.permute.xlu0 %1854
      %1856 = vrot.lane.b32.xlu0 %v748, 24
      %v1857 = vpop.permute.xlu0 %1856
      %1858 = vrot.lane.b32.xlu0 %v749, 24
      %v1859 = vpop.permute.xlu0 %1858
      %1860 = vrot.lane.b32.xlu0 %v750, 24
      %v1861 = vpop.permute.xlu0 %1860
      %1862 = vrot.lane.b32.xlu0 %v751, 24
      %v1863 = vpop.permute.xlu0 %1862
      %1864 = vrot.lane.b32.xlu0 %v752, 24
      %v1865 = vpop.permute.xlu0 %1864
      %1866 = vrot.lane.b32.xlu0 %v753, 24
      %v1867 = vpop.permute.xlu0 %1866
      %1868 = vrot.lane.b32.xlu0 %v754, 24
      %v1869 = vpop.permute.xlu0 %1868
      %1870 = vrot.lane.b32.xlu0 %v755, 24
      %v1871 = vpop.permute.xlu0 %1870
      %1872 = vrot.lane.b32.xlu0 %v756, 24
      %v1873 = vpop.permute.xlu0 %1872
      %1874 = vrot.lane.b32.xlu0 %v757, 24
      %v1875 = vpop.permute.xlu0 %1874
      %1876 = vrot.lane.b32.xlu0 %v758, 24
      %v1877 = vpop.permute.xlu0 %1876
      %1878 = vrot.lane.b32.xlu0 %v759, 24
      %v1879 = vpop.permute.xlu0 %1878
      %1880 = vrot.lane.b32.xlu0 %v760, 24
      %v1881 = vpop.permute.xlu0 %1880
      %1882 = vrot.lane.b32.xlu0 %v761, 24
      %v1883 = vpop.permute.xlu0 %1882
      %v1885 = vshrl.u32 %v762, 16
      %v1887 = vshll.u32 %v762, 16
      %v1889 = vrot.slane %v1887, 1
      %v1890 = vor.u32 %v1885, %v1889
      %v1892 = vshll.u32 %v731, 16
      %v1894 = vrot.slane %v1892, 1
      %v1895 = vsel %vm794, %v1890, %v1894
      %v1896 = vshrl.u32 %v731, 16
      %v1898 = vor.u32 %v1896, %v1894
      %v1900 = vshrl.u32 %v763, 16
      %v1902 = vshll.u32 %v763, 16
      %v1904 = vrot.slane %v1902, 1
      %v1905 = vor.u32 %v1900, %v1904
      %v1907 = vshll.u32 %v733, 16
      %v1909 = vrot.slane %v1907, 1
      %v1910 = vsel %vm794, %v1905, %v1909
      %v1911 = vshrl.u32 %v733, 16
      %v1913 = vor.u32 %v1911, %v1909
      %v1915 = vshrl.u32 %v764, 16
      %v1917 = vshll.u32 %v764, 16
      %v1919 = vrot.slane %v1917, 1
      %v1920 = vor.u32 %v1915, %v1919
      %v1922 = vshll.u32 %v735, 16
      %v1924 = vrot.slane %v1922, 1
      %v1925 = vsel %vm794, %v1920, %v1924
      %v1926 = vshrl.u32 %v735, 16
      %v1928 = vor.u32 %v1926, %v1924
      %v1930 = vshrl.u32 %v765, 16
      %v1932 = vshll.u32 %v765, 16
      %v1934 = vrot.slane %v1932, 1
      %v1935 = vor.u32 %v1930, %v1934
      %v1937 = vshll.u32 %v737, 16
      %v1939 = vrot.slane %v1937, 1
      %v1940 = vsel %vm794, %v1935, %v1939
      %v1941 = vshrl.u32 %v737, 16
      %v1943 = vor.u32 %v1941, %v1939
      %v1945 = vshrl.u32 %v766, 16
      %v1947 = vshll.u32 %v766, 16
      %v1949 = vrot.slane %v1947, 1
      %v1950 = vor.u32 %v1945, %v1949
      %v1952 = vshll.u32 %v739, 16
      %v1954 = vrot.slane %v1952, 1
      %v1955 = vsel %vm794, %v1950, %v1954
      %v1956 = vshrl.u32 %v739, 16
      %v1958 = vor.u32 %v1956, %v1954
      %v1960 = vshrl.u32 %v767, 16
      %v1962 = vshll.u32 %v767, 16
      %v1964 = vrot.slane %v1962, 1
      %v1965 = vor.u32 %v1960, %v1964
      %v1967 = vshll.u32 %v741, 16
      %v1969 = vrot.slane %v1967, 1
      %v1970 = vsel %vm794, %v1965, %v1969
      %v1971 = vshrl.u32 %v741, 16
      %v1973 = vor.u32 %v1971, %v1969
      %v1975 = vshrl.u32 %v768, 16
      %v1977 = vshll.u32 %v768, 16
      %v1979 = vrot.slane %v1977, 1
      %v1980 = vor.u32 %v1975, %v1979
      %v1982 = vshll.u32 %v743, 16
      %v1984 = vrot.slane %v1982, 1
      %v1985 = vsel %vm794, %v1980, %v1984
      %v1986 = vshrl.u32 %v743, 16
      %v1988 = vor.u32 %v1986, %v1984
      %v1990 = vshrl.u32 %v769, 16
      %v1992 = vshll.u32 %v769, 16
      %v1994 = vrot.slane %v1992, 1
      %v1995 = vor.u32 %v1990, %v1994
      %v1997 = vshll.u32 %v745, 16
      %v1999 = vrot.slane %v1997, 1
      %v2000 = vsel %vm794, %v1995, %v1999
      %v2001 = vshrl.u32 %v745, 16
      %v2003 = vor.u32 %v2001, %v1999
      %v2005 = vshrl.u32 %v770, 16
      %v2007 = vshll.u32 %v770, 16
      %v2009 = vrot.slane %v2007, 1
      %v2010 = vor.u32 %v2005, %v2009
      %v2012 = vshll.u32 %v747, 16
      %v2014 = vrot.slane %v2012, 1
      %v2015 = vsel %vm794, %v2010, %v2014
      %v2016 = vshrl.u32 %v747, 16
      %v2018 = vor.u32 %v2016, %v2014
      %v2020 = vshrl.u32 %v771, 16
      %v2022 = vshll.u32 %v771, 16
      %v2024 = vrot.slane %v2022, 1
      %v2025 = vor.u32 %v2020, %v2024
      %v2027 = vshll.u32 %v749, 16
      %v2029 = vrot.slane %v2027, 1
      %v2030 = vsel %vm794, %v2025, %v2029
      %v2031 = vshrl.u32 %v749, 16
      %v2033 = vor.u32 %v2031, %v2029
      %v2035 = vshrl.u32 %v772, 16
      %v2037 = vshll.u32 %v772, 16
      %v2039 = vrot.slane %v2037, 1
      %v2040 = vor.u32 %v2035, %v2039
      %v2042 = vshll.u32 %v751, 16
      %v2044 = vrot.slane %v2042, 1
      %v2045 = vsel %vm794, %v2040, %v2044
      %v2046 = vshrl.u32 %v751, 16
      %v2048 = vor.u32 %v2046, %v2044
      %v2050 = vshrl.u32 %v773, 16
      %v2052 = vshll.u32 %v773, 16
      %v2054 = vrot.slane %v2052, 1
      %v2055 = vor.u32 %v2050, %v2054
      %v2057 = vshll.u32 %v753, 16
      %v2059 = vrot.slane %v2057, 1
      %v2060 = vsel %vm794, %v2055, %v2059
      %v2061 = vshrl.u32 %v753, 16
      %v2063 = vor.u32 %v2061, %v2059
      %v2065 = vshrl.u32 %v774, 16
      %v2067 = vshll.u32 %v774, 16
      %v2069 = vrot.slane %v2067, 1
      %v2070 = vor.u32 %v2065, %v2069
      %v2072 = vshll.u32 %v755, 16
      %v2074 = vrot.slane %v2072, 1
      %v2075 = vsel %vm794, %v2070, %v2074
      %v2076 = vshrl.u32 %v755, 16
      %v2078 = vor.u32 %v2076, %v2074
      %v2080 = vshrl.u32 %v775, 16
      %v2082 = vshll.u32 %v775, 16
      %v2084 = vrot.slane %v2082, 1
      %v2085 = vor.u32 %v2080, %v2084
      %v2087 = vshll.u32 %v757, 16
      %v2089 = vrot.slane %v2087, 1
      %v2090 = vsel %vm794, %v2085, %v2089
      %v2091 = vshrl.u32 %v757, 16
      %v2093 = vor.u32 %v2091, %v2089
      %v2095 = vshrl.u32 %v776, 16
      %v2097 = vshll.u32 %v776, 16
      %v2099 = vrot.slane %v2097, 1
      %v2100 = vor.u32 %v2095, %v2099
      %v2102 = vshll.u32 %v759, 16
      %v2104 = vrot.slane %v2102, 1
      %v2105 = vsel %vm794, %v2100, %v2104
      %v2106 = vshrl.u32 %v759, 16
      %v2108 = vor.u32 %v2106, %v2104
      %v2110 = vshrl.u32 %v777, 16
      %v2112 = vshll.u32 %v777, 16
      %v2114 = vrot.slane %v2112, 1
      %v2115 = vor.u32 %v2110, %v2114
      %v2117 = vshll.u32 %v761, 16
      %v2119 = vrot.slane %v2117, 1
      %v2120 = vsel %vm794, %v2115, %v2119
      %v2121 = vshrl.u32 %v761, 16
      %v2123 = vor.u32 %v2121, %v2119
      %2124 = vrot.lane.b32.xlu0 %v1895, 28
      %v2125 = vpop.permute.xlu0 %2124
      %2126 = vrot.lane.b32.xlu0 %v1898, 28
      %v2127 = vpop.permute.xlu0 %2126
      %2128 = vrot.lane.b32.xlu0 %v1910, 28
      %v2129 = vpop.permute.xlu0 %2128
      %2130 = vrot.lane.b32.xlu0 %v1913, 28
      %v2131 = vpop.permute.xlu0 %2130
      %2132 = vrot.lane.b32.xlu0 %v1925, 28
      %v2133 = vpop.permute.xlu0 %2132
      %2134 = vrot.lane.b32.xlu0 %v1928, 28
      %v2135 = vpop.permute.xlu0 %2134
      %2136 = vrot.lane.b32.xlu0 %v1940, 28
      %v2137 = vpop.permute.xlu0 %2136
      %2138 = vrot.lane.b32.xlu0 %v1943, 28
      %v2139 = vpop.permute.xlu0 %2138
      %2140 = vrot.lane.b32.xlu0 %v1955, 28
      %v2141 = vpop.permute.xlu0 %2140
      %2142 = vrot.lane.b32.xlu0 %v1958, 28
      %v2143 = vpop.permute.xlu0 %2142
      %2144 = vrot.lane.b32.xlu0 %v1970, 28
      %v2145 = vpop.permute.xlu0 %2144
      %2146 = vrot.lane.b32.xlu0 %v1973, 28
      %v2147 = vpop.permute.xlu0 %2146
      %2148 = vrot.lane.b32.xlu0 %v1985, 28
      %v2149 = vpop.permute.xlu0 %2148
      %2150 = vrot.lane.b32.xlu0 %v1988, 28
      %v2151 = vpop.permute.xlu0 %2150
      %2152 = vrot.lane.b32.xlu0 %v2000, 28
      %v2153 = vpop.permute.xlu0 %2152
      %2154 = vrot.lane.b32.xlu0 %v2003, 28
      %v2155 = vpop.permute.xlu0 %2154
      %2156 = vrot.lane.b32.xlu0 %v2015, 28
      %v2157 = vpop.permute.xlu0 %2156
      %2158 = vrot.lane.b32.xlu0 %v2018, 28
      %v2159 = vpop.permute.xlu0 %2158
      %2160 = vrot.lane.b32.xlu0 %v2030, 28
      %v2161 = vpop.permute.xlu0 %2160
      %2162 = vrot.lane.b32.xlu0 %v2033, 28
      %v2163 = vpop.permute.xlu0 %2162
      %2164 = vrot.lane.b32.xlu0 %v2045, 28
      %v2165 = vpop.permute.xlu0 %2164
      %2166 = vrot.lane.b32.xlu0 %v2048, 28
      %v2167 = vpop.permute.xlu0 %2166
      %2168 = vrot.lane.b32.xlu0 %v2060, 28
      %v2169 = vpop.permute.xlu0 %2168
      %2170 = vrot.lane.b32.xlu0 %v2063, 28
      %v2171 = vpop.permute.xlu0 %2170
      %2172 = vrot.lane.b32.xlu0 %v2075, 28
      %v2173 = vpop.permute.xlu0 %2172
      %2174 = vrot.lane.b32.xlu0 %v2078, 28
      %v2175 = vpop.permute.xlu0 %2174
      %2176 = vrot.lane.b32.xlu0 %v2090, 28
      %v2177 = vpop.permute.xlu0 %2176
      %2178 = vrot.lane.b32.xlu0 %v2093, 28
      %v2179 = vpop.permute.xlu0 %2178
      %2180 = vrot.lane.b32.xlu0 %v2105, 28
      %v2181 = vpop.permute.xlu0 %2180
      %2182 = vrot.lane.b32.xlu0 %v2108, 28
      %v2183 = vpop.permute.xlu0 %2182
      %2184 = vrot.lane.b32.xlu0 %v2120, 28
      %v2185 = vpop.permute.xlu0 %2184
      %2186 = vrot.lane.b32.xlu0 %v2123, 28
      %v2187 = vpop.permute.xlu0 %2186
      %v2220 = vrot.slane %v762, 1
      %v2221 = vrot.slane %v778, 1
      %v2222 = vsel %vm1131, %v2220, %v2221
      %v2223 = vrot.slane %v763, 1
      %v2224 = vrot.slane %v779, 1
      %v2225 = vsel %vm1131, %v2223, %v2224
      %v2226 = vrot.slane %v764, 1
      %v2227 = vrot.slane %v780, 1
      %v2228 = vsel %vm1131, %v2226, %v2227
      %v2229 = vrot.slane %v765, 1
      %v2230 = vrot.slane %v781, 1
      %v2231 = vsel %vm1131, %v2229, %v2230
      %v2232 = vrot.slane %v766, 1
      %v2233 = vrot.slane %v782, 1
      %v2234 = vsel %vm1131, %v2232, %v2233
      %v2235 = vrot.slane %v767, 1
      %v2236 = vrot.slane %v783, 1
      %v2237 = vsel %vm1131, %v2235, %v2236
      %v2238 = vrot.slane %v768, 1
      %v2239 = vrot.slane %v784, 1
      %v2240 = vsel %vm1131, %v2238, %v2239
      %v2241 = vrot.slane %v769, 1
      %v2242 = vrot.slane %v785, 1
      %v2243 = vsel %vm1131, %v2241, %v2242
      %v2244 = vrot.slane %v770, 1
      %v2245 = vrot.slane %v786, 1
      %v2246 = vsel %vm1131, %v2244, %v2245
      %v2247 = vrot.slane %v771, 1
      %v2248 = vrot.slane %v787, 1
      %v2249 = vsel %vm1131, %v2247, %v2248
      %v2250 = vrot.slane %v772, 1
      %v2251 = vrot.slane %v788, 1
      %v2252 = vsel %vm1131, %v2250, %v2251
      %v2253 = vrot.slane %v773, 1
      %v2254 = vrot.slane %v789, 1
      %v2255 = vsel %vm1131, %v2253, %v2254
      %v2256 = vrot.slane %v774, 1
      %v2257 = vrot.slane %v790, 1
      %v2258 = vsel %vm1131, %v2256, %v2257
      %v2259 = vrot.slane %v775, 1
      %v2260 = vrot.slane %v791, 1
      %v2261 = vsel %vm1131, %v2259, %v2260
      %v2262 = vrot.slane %v776, 1
      %v2263 = vrot.slane %v792, 1
      %v2264 = vsel %vm1131, %v2262, %v2263
      %v2265 = vrot.slane %v777, 1
      %v2266 = vrot.slane %v793, 1
      %v2267 = vsel %vm1131, %v2265, %v2266
      %2268 = vrot.lane.b32.xlu0 %v2222, 32
      %v2269 = vpop.permute.xlu0 %2268
      %2270 = vrot.lane.b32.xlu0 %v2221, 32
      %v2271 = vpop.permute.xlu0 %2270
      %2272 = vrot.lane.b32.xlu0 %v2225, 32
      %v2273 = vpop.permute.xlu0 %2272
      %2274 = vrot.lane.b32.xlu0 %v2224, 32
      %v2275 = vpop.permute.xlu0 %2274
      %2276 = vrot.lane.b32.xlu0 %v2228, 32
      %v2277 = vpop.permute.xlu0 %2276
      %2278 = vrot.lane.b32.xlu0 %v2227, 32
      %v2279 = vpop.permute.xlu0 %2278
      %2280 = vrot.lane.b32.xlu0 %v2231, 32
      %v2281 = vpop.permute.xlu0 %2280
      %2282 = vrot.lane.b32.xlu0 %v2230, 32
      %v2283 = vpop.permute.xlu0 %2282
      %2284 = vrot.lane.b32.xlu0 %v2234, 32
      %v2285 = vpop.permute.xlu0 %2284
      %2286 = vrot.lane.b32.xlu0 %v2233, 32
      %v2287 = vpop.permute.xlu0 %2286
      %2288 = vrot.lane.b32.xlu0 %v2237, 32
      %v2289 = vpop.permute.xlu0 %2288
      %2290 = vrot.lane.b32.xlu0 %v2236, 32
      %v2291 = vpop.permute.xlu0 %2290
      %2292 = vrot.lane.b32.xlu0 %v2240, 32
      %v2293 = vpop.permute.xlu0 %2292
      %2294 = vrot.lane.b32.xlu0 %v2239, 32
      %v2295 = vpop.permute.xlu0 %2294
      %2296 = vrot.lane.b32.xlu0 %v2243, 32
      %v2297 = vpop.permute.xlu0 %2296
      %2298 = vrot.lane.b32.xlu0 %v2242, 32
      %v2299 = vpop.permute.xlu0 %2298
      %2300 = vrot.lane.b32.xlu0 %v2246, 32
      %v2301 = vpop.permute.xlu0 %2300
      %2302 = vrot.lane.b32.xlu0 %v2245, 32
      %v2303 = vpop.permute.xlu0 %2302
      %2304 = vrot.lane.b32.xlu0 %v2249, 32
      %v2305 = vpop.permute.xlu0 %2304
      %2306 = vrot.lane.b32.xlu0 %v2248, 32
      %v2307 = vpop.permute.xlu0 %2306
      %2308 = vrot.lane.b32.xlu0 %v2252, 32
      %v2309 = vpop.permute.xlu0 %2308
      %2310 = vrot.lane.b32.xlu0 %v2251, 32
      %v2311 = vpop.permute.xlu0 %2310
      %2312 = vrot.lane.b32.xlu0 %v2255, 32
      %v2313 = vpop.permute.xlu0 %2312
      %2314 = vrot.lane.b32.xlu0 %v2254, 32
      %v2315 = vpop.permute.xlu0 %2314
      %2316 = vrot.lane.b32.xlu0 %v2258, 32
      %v2317 = vpop.permute.xlu0 %2316
      %2318 = vrot.lane.b32.xlu0 %v2257, 32
      %v2319 = vpop.permute.xlu0 %2318
      %2320 = vrot.lane.b32.xlu0 %v2261, 32
      %v2321 = vpop.permute.xlu0 %2320
      %2322 = vrot.lane.b32.xlu0 %v2260, 32
      %v2323 = vpop.permute.xlu0 %2322
      %2324 = vrot.lane.b32.xlu0 %v2264, 32
      %v2325 = vpop.permute.xlu0 %2324
      %2326 = vrot.lane.b32.xlu0 %v2263, 32
      %v2327 = vpop.permute.xlu0 %2326
      %2328 = vrot.lane.b32.xlu0 %v2267, 32
      %v2329 = vpop.permute.xlu0 %2328
      %2330 = vrot.lane.b32.xlu0 %v2266, 32
      %v2331 = vpop.permute.xlu0 %2330
      %v2334 = vsel %vm327, %v601, %v1036
      %v2336 = vsel %vm327, %v602, %v1038
      %v2339 = vsel %vm327, %v603, %v1040
      %v2341 = vsel %vm327, %v604, %v1042
      %v2344 = vsel %vm327, %v605, %v1044
      %v2346 = vsel %vm327, %v606, %v1046
      %v2349 = vsel %vm327, %v607, %v1048
      %v2351 = vsel %vm327, %v608, %v1050
      %v2354 = vsel %vm327, %v609, %v1052
      %v2356 = vsel %vm327, %v610, %v1054
      %v2359 = vsel %vm327, %v611, %v1056
      %v2361 = vsel %vm327, %v612, %v1058
      %v2364 = vsel %vm327, %v613, %v1060
      %v2366 = vsel %vm327, %v614, %v1062
      %v2369 = vsel %vm327, %v615, %v1064
      %v2371 = vsel %vm327, %v616, %v1066
      %v2374 = vsel %vm327, %v617, %v1068
      %v2376 = vsel %vm327, %v618, %v1070
      %v2379 = vsel %vm327, %v619, %v1072
      %v2381 = vsel %vm327, %v620, %v1074
      %v2384 = vsel %vm327, %v621, %v1076
      %v2386 = vsel %vm327, %v622, %v1078
      %v2389 = vsel %vm327, %v623, %v1080
      %v2391 = vsel %vm327, %v624, %v1082
      %v2394 = vsel %vm327, %v625, %v1084
      %v2396 = vsel %vm327, %v626, %v1086
      %v2399 = vsel %vm327, %v627, %v1088
      %v2401 = vsel %vm327, %v628, %v1090
      %v2404 = vsel %vm327, %v629, %v1092
      %v2406 = vsel %vm327, %v630, %v1094
      %v2409 = vsel %vm327, %v631, %v1096
      %v2411 = vsel %vm327, %v632, %v1098
      %vm2412 = vcmask 64512
      %v2414 = vsel %vm2412, %v2334, %v1181
      %v2416 = vsel %vm2412, %v2336, %v1183
      %v2418 = vsel %vm2412, %v2339, %v1185
      %v2420 = vsel %vm2412, %v2341, %v1187
      %v2422 = vsel %vm2412, %v2344, %v1189
      %v2424 = vsel %vm2412, %v2346, %v1191
      %v2426 = vsel %vm2412, %v2349, %v1193
      %v2428 = vsel %vm2412, %v2351, %v1195
      %v2430 = vsel %vm2412, %v2354, %v1197
      %v2432 = vsel %vm2412, %v2356, %v1199
      %v2434 = vsel %vm2412, %v2359, %v1201
      %v2436 = vsel %vm2412, %v2361, %v1203
      %v2438 = vsel %vm2412, %v2364, %v1205
      %v2440 = vsel %vm2412, %v2366, %v1207
      %v2442 = vsel %vm2412, %v2369, %v1209
      %v2444 = vsel %vm2412, %v2371, %v1211
      %v2446 = vsel %vm2412, %v2374, %v1213
      %v2448 = vsel %vm2412, %v2376, %v1215
      %v2450 = vsel %vm2412, %v2379, %v1217
      %v2452 = vsel %vm2412, %v2381, %v1219
      %v2454 = vsel %vm2412, %v2384, %v1221
      %v2456 = vsel %vm2412, %v2386, %v1223
      %v2458 = vsel %vm2412, %v2389, %v1225
      %v2460 = vsel %vm2412, %v2391, %v1227
      %v2462 = vsel %vm2412, %v2394, %v1229
      %v2464 = vsel %vm2412, %v2396, %v1231
      %v2466 = vsel %vm2412, %v2399, %v1233
      %v2468 = vsel %vm2412, %v2401, %v1235
      %v2470 = vsel %vm2412, %v2404, %v1237
      %v2472 = vsel %vm2412, %v2406, %v1239
      %v2474 = vsel %vm2412, %v2409, %v1241
      %v2476 = vsel %vm2412, %v2411, %v1243
      %vm2477 = vcmask 97280
      %v2479 = vsel %vm2477, %v2414, %v1277
      %v2481 = vsel %vm2477, %v2416, %v1279
      %v2483 = vsel %vm2477, %v2418, %v1281
      %v2485 = vsel %vm2477, %v2420, %v1283
      %v2487 = vsel %vm2477, %v2422, %v1285
      %v2489 = vsel %vm2477, %v2424, %v1287
      %v2491 = vsel %vm2477, %v2426, %v1289
      %v2493 = vsel %vm2477, %v2428, %v1291
      %v2495 = vsel %vm2477, %v2430, %v1293
      %v2497 = vsel %vm2477, %v2432, %v1295
      %v2499 = vsel %vm2477, %v2434, %v1297
      %v2501 = vsel %vm2477, %v2436, %v1299
      %v2503 = vsel %vm2477, %v2438, %v1301
      %v2505 = vsel %vm2477, %v2440, %v1303
      %v2507 = vsel %vm2477, %v2442, %v1305
      %v2509 = vsel %vm2477, %v2444, %v1307
      %v2511 = vsel %vm2477, %v2446, %v1309
      %v2513 = vsel %vm2477, %v2448, %v1311
      %v2515 = vsel %vm2477, %v2450, %v1313
      %v2517 = vsel %vm2477, %v2452, %v1315
      %v2519 = vsel %vm2477, %v2454, %v1317
      %v2521 = vsel %vm2477, %v2456, %v1319
      %v2523 = vsel %vm2477, %v2458, %v1321
      %v2525 = vsel %vm2477, %v2460, %v1323
      %v2527 = vsel %vm2477, %v2462, %v1325
      %v2529 = vsel %vm2477, %v2464, %v1327
      %v2531 = vsel %vm2477, %v2466, %v1329
      %v2533 = vsel %vm2477, %v2468, %v1331
      %v2535 = vsel %vm2477, %v2470, %v1333
      %v2537 = vsel %vm2477, %v2472, %v1335
      %v2539 = vsel %vm2477, %v2474, %v1337
      %v2541 = vsel %vm2477, %v2476, %v1339
      %vm2542 = vcmask 130048
      %v2544 = vsel %vm2542, %v2479, %v1581
      %v2546 = vsel %vm2542, %v2481, %v1583
      %v2548 = vsel %vm2542, %v2483, %v1585
      %v2550 = vsel %vm2542, %v2485, %v1587
      %v2552 = vsel %vm2542, %v2487, %v1589
      %v2554 = vsel %vm2542, %v2489, %v1591
      %v2556 = vsel %vm2542, %v2491, %v1593
      %v2558 = vsel %vm2542, %v2493, %v1595
      %v2560 = vsel %vm2542, %v2495, %v1597
      %v2562 = vsel %vm2542, %v2497, %v1599
      %v2564 = vsel %vm2542, %v2499, %v1601
      %v2566 = vsel %vm2542, %v2501, %v1603
      %v2568 = vsel %vm2542, %v2503, %v1605
      %v2570 = vsel %vm2542, %v2505, %v1607
      %v2572 = vsel %vm2542, %v2507, %v1609
      %v2574 = vsel %vm2542, %v2509, %v1611
      %v2576 = vsel %vm2542, %v2511, %v1613
      %v2578 = vsel %vm2542, %v2513, %v1615
      %v2580 = vsel %vm2542, %v2515, %v1617
      %v2582 = vsel %vm2542, %v2517, %v1619
      %v2584 = vsel %vm2542, %v2519, %v1621
      %v2586 = vsel %vm2542, %v2521, %v1623
      %v2588 = vsel %vm2542, %v2523, %v1625
      %v2590 = vsel %vm2542, %v2525, %v1627
      %v2592 = vsel %vm2542, %v2527, %v1629
      %v2594 = vsel %vm2542, %v2529, %v1631
      %v2596 = vsel %vm2542, %v2531, %v1633
      %v2598 = vsel %vm2542, %v2533, %v1635
      %v2600 = vsel %vm2542, %v2535, %v1637
      %v2602 = vsel %vm2542, %v2537, %v1639
      %v2604 = vsel %vm2542, %v2539, %v1641
      %v2606 = vsel %vm2542, %v2541, %v1643
      %vm2607 = vcmask 162816
      %v2609 = vsel %vm2607, %v2544, %v1725
      %v2611 = vsel %vm2607, %v2546, %v1727
      %v2613 = vsel %vm2607, %v2548, %v1729
      %v2615 = vsel %vm2607, %v2550, %v1731
      %v2617 = vsel %vm2607, %v2552, %v1733
      %v2619 = vsel %vm2607, %v2554, %v1735
      %v2621 = vsel %vm2607, %v2556, %v1737
      %v2623 = vsel %vm2607, %v2558, %v1739
      %v2625 = vsel %vm2607, %v2560, %v1741
      %v2627 = vsel %vm2607, %v2562, %v1743
      %v2629 = vsel %vm2607, %v2564, %v1745
      %v2631 = vsel %vm2607, %v2566, %v1747
      %v2633 = vsel %vm2607, %v2568, %v1749
      %v2635 = vsel %vm2607, %v2570, %v1751
      %v2637 = vsel %vm2607, %v2572, %v1753
      %v2639 = vsel %vm2607, %v2574, %v1755
      %v2641 = vsel %vm2607, %v2576, %v1757
      %v2643 = vsel %vm2607, %v2578, %v1759
      %v2645 = vsel %vm2607, %v2580, %v1761
      %v2647 = vsel %vm2607, %v2582, %v1763
      %v2649 = vsel %vm2607, %v2584, %v1765
      %v2651 = vsel %vm2607, %v2586, %v1767
      %v2653 = vsel %vm2607, %v2588, %v1769
      %v2655 = vsel %vm2607, %v2590, %v1771
      %v2657 = vsel %vm2607, %v2592, %v1773
      %v2659 = vsel %vm2607, %v2594, %v1775
      %v2661 = vsel %vm2607, %v2596, %v1777
      %v2663 = vsel %vm2607, %v2598, %v1779
      %v2665 = vsel %vm2607, %v2600, %v1781
      %v2667 = vsel %vm2607, %v2602, %v1783
      %v2669 = vsel %vm2607, %v2604, %v1785
      %v2671 = vsel %vm2607, %v2606, %v1787
      %vm2672 = vcmask 195584
      %v2674 = vsel %vm2672, %v2609, %v1821
      %v2676 = vsel %vm2672, %v2611, %v1823
      %v2678 = vsel %vm2672, %v2613, %v1825
      %v2680 = vsel %vm2672, %v2615, %v1827
      %v2682 = vsel %vm2672, %v2617, %v1829
      %v2684 = vsel %vm2672, %v2619, %v1831
      %v2686 = vsel %vm2672, %v2621, %v1833
      %v2688 = vsel %vm2672, %v2623, %v1835
      %v2690 = vsel %vm2672, %v2625, %v1837
      %v2692 = vsel %vm2672, %v2627, %v1839
      %v2694 = vsel %vm2672, %v2629, %v1841
      %v2696 = vsel %vm2672, %v2631, %v1843
      %v2698 = vsel %vm2672, %v2633, %v1845
      %v2700 = vsel %vm2672, %v2635, %v1847
      %v2702 = vsel %vm2672, %v2637, %v1849
      %v2704 = vsel %vm2672, %v2639, %v1851
      %v2706 = vsel %vm2672, %v2641, %v1853
      %v2708 = vsel %vm2672, %v2643, %v1855
      %v2710 = vsel %vm2672, %v2645, %v1857
      %v2712 = vsel %vm2672, %v2647, %v1859
      %v2714 = vsel %vm2672, %v2649, %v1861
      %v2716 = vsel %vm2672, %v2651, %v1863
      %v2718 = vsel %vm2672, %v2653, %v1865
      %v2720 = vsel %vm2672, %v2655, %v1867
      %v2722 = vsel %vm2672, %v2657, %v1869
      %v2724 = vsel %vm2672, %v2659, %v1871
      %v2726 = vsel %vm2672, %v2661, %v1873
      %v2728 = vsel %vm2672, %v2663, %v1875
      %v2730 = vsel %vm2672, %v2665, %v1877
      %v2732 = vsel %vm2672, %v2667, %v1879
      %v2734 = vsel %vm2672, %v2669, %v1881
      %v2736 = vsel %vm2672, %v2671, %v1883
      %vm2737 = vcmask 228352
      %v2739 = vsel %vm2737, %v2674, %v2125
      %v2741 = vsel %vm2737, %v2676, %v2127
      %v2743 = vsel %vm2737, %v2678, %v2129
      %v2745 = vsel %vm2737, %v2680, %v2131
      %v2747 = vsel %vm2737, %v2682, %v2133
      %v2749 = vsel %vm2737, %v2684, %v2135
      %v2751 = vsel %vm2737, %v2686, %v2137
      %v2753 = vsel %vm2737, %v2688, %v2139
      %v2755 = vsel %vm2737, %v2690, %v2141
      %v2757 = vsel %vm2737, %v2692, %v2143
      %v2759 = vsel %vm2737, %v2694, %v2145
      %v2761 = vsel %vm2737, %v2696, %v2147
      %v2763 = vsel %vm2737, %v2698, %v2149
      %v2765 = vsel %vm2737, %v2700, %v2151
      %v2767 = vsel %vm2737, %v2702, %v2153
      %v2769 = vsel %vm2737, %v2704, %v2155
      %v2771 = vsel %vm2737, %v2706, %v2157
      %v2773 = vsel %vm2737, %v2708, %v2159
      %v2775 = vsel %vm2737, %v2710, %v2161
      %v2777 = vsel %vm2737, %v2712, %v2163
      %v2779 = vsel %vm2737, %v2714, %v2165
      %v2781 = vsel %vm2737, %v2716, %v2167
      %v2783 = vsel %vm2737, %v2718, %v2169
      %v2785 = vsel %vm2737, %v2720, %v2171
      %v2787 = vsel %vm2737, %v2722, %v2173
      %v2789 = vsel %vm2737, %v2724, %v2175
      %v2791 = vsel %vm2737, %v2726, %v2177
      %v2793 = vsel %vm2737, %v2728, %v2179
      %v2795 = vsel %vm2737, %v2730, %v2181
      %v2797 = vsel %vm2737, %v2732, %v2183
      %v2799 = vsel %vm2737, %v2734, %v2185
      %v2801 = vsel %vm2737, %v2736, %v2187
      %vm2802 = vcmask 261120
      %v2804 = vsel %vm2802, %v2739, %v2269
      %v2806 = vsel %vm2802, %v2741, %v2271
      %v2808 = vsel %vm2802, %v2743, %v2273
      %v2810 = vsel %vm2802, %v2745, %v2275
      %v2812 = vsel %vm2802, %v2747, %v2277
      %v2814 = vsel %vm2802, %v2749, %v2279
      %v2816 = vsel %vm2802, %v2751, %v2281
      %v2818 = vsel %vm2802, %v2753, %v2283
      %v2820 = vsel %vm2802, %v2755, %v2285
      %v2822 = vsel %vm2802, %v2757, %v2287
      %v2824 = vsel %vm2802, %v2759, %v2289
      %v2826 = vsel %vm2802, %v2761, %v2291
      %v2828 = vsel %vm2802, %v2763, %v2293
      %v2830 = vsel %vm2802, %v2765, %v2295
      %v2832 = vsel %vm2802, %v2767, %v2297
      %v2834 = vsel %vm2802, %v2769, %v2299
      %v2836 = vsel %vm2802, %v2771, %v2301
      %v2838 = vsel %vm2802, %v2773, %v2303
      %v2840 = vsel %vm2802, %v2775, %v2305
      %v2842 = vsel %vm2802, %v2777, %v2307
      %v2844 = vsel %vm2802, %v2779, %v2309
      %v2846 = vsel %vm2802, %v2781, %v2311
      %v2848 = vsel %vm2802, %v2783, %v2313
      %v2850 = vsel %vm2802, %v2785, %v2315
      %v2852 = vsel %vm2802, %v2787, %v2317
      %v2854 = vsel %vm2802, %v2789, %v2319
      %v2856 = vsel %vm2802, %v2791, %v2321
      %v2858 = vsel %vm2802, %v2793, %v2323
      %v2860 = vsel %vm2802, %v2795, %v2325
      %v2862 = vsel %vm2802, %v2797, %v2327
      %v2864 = vsel %vm2802, %v2799, %v2329
      %v2866 = vsel %vm2802, %v2801, %v2331
      %vm2867 = vsmask.f32 4352
      %v2868 = vshrl.u32 %v2804, 16
      %v2870 = vrot.slane %v2868, 3
      %v2871 = vshll.u32 %v2804, 16
      %v2873 = vrot.slane %v2871, 4
      %v2874 = vor.u32 %v2870, %v2873
      %v2875 = vshrl.u32 %v2806, 16
      %v2877 = vrot.slane %v2875, 3
      %v2878 = vshll.u32 %v2806, 16
      %v2880 = vrot.slane %v2878, 4
      %v2881 = vor.u32 %v2877, %v2880
      %v2882 = vsel %vm2867, %v2874, %v2881
      %v2883 = vshrl.u32 %v2808, 16
      %v2885 = vrot.slane %v2883, 3
      %v2886 = vshll.u32 %v2808, 16
      %v2888 = vrot.slane %v2886, 4
      %v2889 = vor.u32 %v2885, %v2888
      %v2890 = vshrl.u32 %v2810, 16
      %v2892 = vrot.slane %v2890, 3
      %v2893 = vshll.u32 %v2810, 16
      %v2895 = vrot.slane %v2893, 4
      %v2896 = vor.u32 %v2892, %v2895
      %v2897 = vsel %vm2867, %v2889, %v2896
      %v2898 = vshrl.u32 %v2812, 16
      %v2900 = vrot.slane %v2898, 3
      %v2901 = vshll.u32 %v2812, 16
      %v2903 = vrot.slane %v2901, 4
      %v2904 = vor.u32 %v2900, %v2903
      %v2905 = vshrl.u32 %v2814, 16
      %v2907 = vrot.slane %v2905, 3
      %v2908 = vshll.u32 %v2814, 16
      %v2910 = vrot.slane %v2908, 4
      %v2911 = vor.u32 %v2907, %v2910
      %v2912 = vsel %vm2867, %v2904, %v2911
      %v2913 = vshrl.u32 %v2816, 16
      %v2915 = vrot.slane %v2913, 3
      %v2916 = vshll.u32 %v2816, 16
      %v2918 = vrot.slane %v2916, 4
      %v2919 = vor.u32 %v2915, %v2918
      %v2920 = vshrl.u32 %v2818, 16
      %v2922 = vrot.slane %v2920, 3
      %v2923 = vshll.u32 %v2818, 16
      %v2925 = vrot.slane %v2923, 4
      %v2926 = vor.u32 %v2922, %v2925
      %v2927 = vsel %vm2867, %v2919, %v2926
      %v2928 = vshrl.u32 %v2820, 16
      %v2930 = vrot.slane %v2928, 3
      %v2931 = vshll.u32 %v2820, 16
      %v2933 = vrot.slane %v2931, 4
      %v2934 = vor.u32 %v2930, %v2933
      %v2935 = vshrl.u32 %v2822, 16
      %v2937 = vrot.slane %v2935, 3
      %v2938 = vshll.u32 %v2822, 16
      %v2940 = vrot.slane %v2938, 4
      %v2941 = vor.u32 %v2937, %v2940
      %v2942 = vsel %vm2867, %v2934, %v2941
      %v2943 = vshrl.u32 %v2824, 16
      %v2945 = vrot.slane %v2943, 3
      %v2946 = vshll.u32 %v2824, 16
      %v2948 = vrot.slane %v2946, 4
      %v2949 = vor.u32 %v2945, %v2948
      %v2950 = vshrl.u32 %v2826, 16
      %v2952 = vrot.slane %v2950, 3
      %v2953 = vshll.u32 %v2826, 16
      %v2955 = vrot.slane %v2953, 4
      %v2956 = vor.u32 %v2952, %v2955
      %v2957 = vsel %vm2867, %v2949, %v2956
      %v2958 = vshrl.u32 %v2828, 16
      %v2960 = vrot.slane %v2958, 3
      %v2961 = vshll.u32 %v2828, 16
      %v2963 = vrot.slane %v2961, 4
      %v2964 = vor.u32 %v2960, %v2963
      %v2965 = vshrl.u32 %v2830, 16
      %v2967 = vrot.slane %v2965, 3
      %v2968 = vshll.u32 %v2830, 16
      %v2970 = vrot.slane %v2968, 4
      %v2971 = vor.u32 %v2967, %v2970
      %v2972 = vsel %vm2867, %v2964, %v2971
      %v2973 = vshrl.u32 %v2832, 16
      %v2975 = vrot.slane %v2973, 3
      %v2976 = vshll.u32 %v2832, 16
      %v2978 = vrot.slane %v2976, 4
      %v2979 = vor.u32 %v2975, %v2978
      %v2980 = vshrl.u32 %v2834, 16
      %v2982 = vrot.slane %v2980, 3
      %v2983 = vshll.u32 %v2834, 16
      %v2985 = vrot.slane %v2983, 4
      %v2986 = vor.u32 %v2982, %v2985
      %v2987 = vsel %vm2867, %v2979, %v2986
      %v2988 = vshrl.u32 %v2836, 16
      %v2990 = vrot.slane %v2988, 3
      %v2991 = vshll.u32 %v2836, 16
      %v2993 = vrot.slane %v2991, 4
      %v2994 = vor.u32 %v2990, %v2993
      %v2995 = vshrl.u32 %v2838, 16
      %v2997 = vrot.slane %v2995, 3
      %v2998 = vshll.u32 %v2838, 16
      %v3000 = vrot.slane %v2998, 4
      %v3001 = vor.u32 %v2997, %v3000
      %v3002 = vsel %vm2867, %v2994, %v3001
      %v3003 = vshrl.u32 %v2840, 16
      %v3005 = vrot.slane %v3003, 3
      %v3006 = vshll.u32 %v2840, 16
      %v3008 = vrot.slane %v3006, 4
      %v3009 = vor.u32 %v3005, %v3008
      %v3010 = vshrl.u32 %v2842, 16
      %v3012 = vrot.slane %v3010, 3
      %v3013 = vshll.u32 %v2842, 16
      %v3015 = vrot.slane %v3013, 4
      %v3016 = vor.u32 %v3012, %v3015
      %v3017 = vsel %vm2867, %v3009, %v3016
      %v3018 = vshrl.u32 %v2844, 16
      %v3020 = vrot.slane %v3018, 3
      %v3021 = vshll.u32 %v2844, 16
      %v3023 = vrot.slane %v3021, 4
      %v3024 = vor.u32 %v3020, %v3023
      %v3025 = vshrl.u32 %v2846, 16
      %v3027 = vrot.slane %v3025, 3
      %v3028 = vshll.u32 %v2846, 16
      %v3030 = vrot.slane %v3028, 4
      %v3031 = vor.u32 %v3027, %v3030
      %v3032 = vsel %vm2867, %v3024, %v3031
      %v3033 = vshrl.u32 %v2848, 16
      %v3035 = vrot.slane %v3033, 3
      %v3036 = vshll.u32 %v2848, 16
      %v3038 = vrot.slane %v3036, 4
      %v3039 = vor.u32 %v3035, %v3038
      %v3040 = vshrl.u32 %v2850, 16
      %v3042 = vrot.slane %v3040, 3
      %v3043 = vshll.u32 %v2850, 16
      %v3045 = vrot.slane %v3043, 4
      %v3046 = vor.u32 %v3042, %v3045
      %v3047 = vsel %vm2867, %v3039, %v3046
      %v3048 = vshrl.u32 %v2852, 16
      %v3050 = vrot.slane %v3048, 3
      %v3051 = vshll.u32 %v2852, 16
      %v3053 = vrot.slane %v3051, 4
      %v3054 = vor.u32 %v3050, %v3053
      %v3055 = vshrl.u32 %v2854, 16
      %v3057 = vrot.slane %v3055, 3
      %v3058 = vshll.u32 %v2854, 16
      %v3060 = vrot.slane %v3058, 4
      %v3061 = vor.u32 %v3057, %v3060
      %v3062 = vsel %vm2867, %v3054, %v3061
      %v3063 = vshrl.u32 %v2856, 16
      %v3065 = vrot.slane %v3063, 3
      %v3066 = vshll.u32 %v2856, 16
      %v3068 = vrot.slane %v3066, 4
      %v3069 = vor.u32 %v3065, %v3068
      %v3070 = vshrl.u32 %v2858, 16
      %v3072 = vrot.slane %v3070, 3
      %v3073 = vshll.u32 %v2858, 16
      %v3075 = vrot.slane %v3073, 4
      %v3076 = vor.u32 %v3072, %v3075
      %v3077 = vsel %vm2867, %v3069, %v3076
      %v3078 = vshrl.u32 %v2860, 16
      %v3080 = vrot.slane %v3078, 3
      %v3081 = vshll.u32 %v2860, 16
      %v3083 = vrot.slane %v3081, 4
      %v3084 = vor.u32 %v3080, %v3083
      %v3085 = vshrl.u32 %v2862, 16
      %v3087 = vrot.slane %v3085, 3
      %v3088 = vshll.u32 %v2862, 16
      %v3090 = vrot.slane %v3088, 4
      %v3091 = vor.u32 %v3087, %v3090
      %v3092 = vsel %vm2867, %v3084, %v3091
      %v3093 = vshrl.u32 %v2864, 16
      %v3095 = vrot.slane %v3093, 3
      %v3096 = vshll.u32 %v2864, 16
      %v3098 = vrot.slane %v3096, 4
      %v3099 = vor.u32 %v3095, %v3098
      %v3100 = vshrl.u32 %v2866, 16
      %v3102 = vrot.slane %v3100, 3
      %v3103 = vshll.u32 %v2866, 16
      %v3105 = vrot.slane %v3103, 4
      %v3106 = vor.u32 %v3102, %v3105
      %v3107 = vsel %vm2867, %v3099, %v3106
      %v3108 = vld [vmem:[%s1] sm:$0xf]
      %v3109 = vld [vmem:[%s1 + $0x4] sm:$0xf]
      %v3110 = vld [vmem:[%s1 + $0x8] sm:$0xf]
      %v3111 = vld [vmem:[%s1 + $0xc] sm:$0xf]
      %v3112 = vld [vmem:[%s1 + $0x10] sm:$0x3]
      %v3118 = vunpack.c.l.b16 %v3108
      %v3119 = vunpack.c.l.b16 %v3109
      %v3120 = vunpack.c.l.b16 %v3110
      %v3121 = vunpack.c.l.b16 %v3111
      %v3122 = vunpack.c.l.b16 %v3112
      %v3123 = vpack.c.b16 %v3119, %v3118
      %v3124 = vpack.c.b16 %v3121, %v3120
      %v3125 = vpack.c.b16 %v3122, %v3122
      %vm3128 = vcmask 293888
      %v3130 = vsel %vm3128, %v2882, 0
      %v3133 = vsel %vm3128, %v2897, 0
      %v3136 = vsel %vm3128, %v2912, 0
      %v3139 = vsel %vm3128, %v2927, 0
      %v3142 = vsel %vm3128, %v2942, 0
      %v3145 = vsel %vm3128, %v2957, 0
      %v3148 = vsel %vm3128, %v2972, 0
      %v3151 = vsel %vm3128, %v2987, 0
      %v3154 = vsel %vm3128, %v3002, 0
      %v3157 = vsel %vm3128, %v3017, 0
      %v3160 = vsel %vm3128, %v3032, 0
      %v3163 = vsel %vm3128, %v3047, 0
      %v3166 = vsel %vm3128, %v3062, 0
      %v3169 = vsel %vm3128, %v3077, 0
      %v3172 = vsel %vm3128, %v3092, 0
      %v3175 = vsel %vm3128, %v3107, 0
      %vm3177 = vcmask 1041408
      %v3179 = vsel %vm3177, %v3125, 0
      %3181 = vmatprep.subr.bf16.mxu0 0
      %3182 = vmatpush1.bf16.msra.mxu0 %v3123
      %3183 = vmatprep.subr.bf16.mxu0 0
      %3184 = vmatpush1.bf16.msra.mxu0 %v3124
      %3185 = vmatprep.subr.bf16.mxu0 0
      %3186 = vmatpush1.bf16.msra.mxu0 %v3179
      %3187 = vmatprep.subr.bf16.mxu0 0
      %3188 = vmatpush1.bf16.msra.mxu0 0
      %3189 = vmatprep.subr.bf16.mxu0 0
      %3190 = vmatpush1.bf16.msra.mxu0 0
      %3191 = vmatprep.subr.bf16.mxu0 0
      %3192 = vmatpush1.bf16.msra.mxu0 0
      %3193 = vmatprep.subr.bf16.mxu0 0
      %3194 = vmatpush1.bf16.msra.mxu0 0
      %3195 = vmatprep.subr.bf16.mxu0 0
      %3196 = vmatpush1.bf16.msra.mxu0 0
      %3197 = vmatprep.subr.bf16.mxu0 0
      %3198 = vmatpush1.bf16.msra.mxu0 0
      %3199 = vmatprep.subr.bf16.mxu0 0
      %3200 = vmatpush1.bf16.msra.mxu0 0
      %3201 = vmatprep.subr.bf16.mxu0 0
      %3202 = vmatpush1.bf16.msra.mxu0 0
      %3203 = vmatprep.subr.bf16.mxu0 0
      %3204 = vmatpush1.bf16.msra.mxu0 0
      %3205 = vmatprep.subr.bf16.mxu0 0
      %3206 = vmatpush1.bf16.msra.mxu0 0
      %3207 = vmatprep.subr.bf16.mxu0 0
      %3208 = vmatpush1.bf16.msra.mxu0 0
      %3209 = vmatprep.subr.bf16.mxu0 0
      %3210 = vmatpush1.bf16.msra.mxu0 0
      %3211 = vmatprep.subr.bf16.mxu0 0
      %3212 = vmatpush1.bf16.msra.mxu0 0
      %3213 = vmatprep.mubr.bf16.mxu0 0
      %3214 = vmatmul.mubr.bf16.gmra.mrb[0].mxu0 %v3130
      %v3215 = vpop.f32.mrb[0].mxu0
      %v3216 = vadd.f32 0.0, %v3215
      %v3217 = vpop.f32.mrb[0].mxu0
      %v3218 = vpop.f32.mrb[0].mxu0
      %v3219 = vadd.f32 0.0, %v3218
      %v3220 = vpop.f32.mrb[0].mxu0
      %3221 = vmatprep.mubr.bf16.mxu0 0
      %3222 = vmatmul.mubr.bf16.gmra.mrb[0].mxu0 %v3133
      %v3223 = vpop.f32.mrb[0].mxu0
      %v3224 = vadd.f32 0.0, %v3223
      %v3225 = vpop.f32.mrb[0].mxu0
      %v3226 = vpop.f32.mrb[0].mxu0
      %v3227 = vadd.f32 0.0, %v3226
      %v3228 = vpop.f32.mrb[0].mxu0
      %3229 = vmatprep.mubr.bf16.mxu0 0
      %3230 = vmatmul.mubr.bf16.gmra.mrb[0].mxu0 %v3136
      %v3231 = vpop.f32.mrb[0].mxu0
      %v3232 = vadd.f32 0.0, %v3231
      %v3233 = vpop.f32.mrb[0].mxu0
      %v3234 = vpop.f32.mrb[0].mxu0
      %v3235 = vadd.f32 0.0, %v3234
      %v3236 = vpop.f32.mrb[0].mxu0
      %3237 = vmatprep.mubr.bf16.mxu0 0
      %3238 = vmatmul.mubr.bf16.gmra.mrb[0].mxu0 %v3139
      %v3239 = vpop.f32.mrb[0].mxu0
      %v3240 = vadd.f32 0.0, %v3239
      %v3241 = vpop.f32.mrb[0].mxu0
      %v3242 = vpop.f32.mrb[0].mxu0
      %v3243 = vadd.f32 0.0, %v3242
      %v3244 = vpop.f32.mrb[0].mxu0
      %3245 = vmatprep.mubr.bf16.mxu0 0
      %3246 = vmatmul.mubr.bf16.gmra.mrb[0].mxu0 %v3142
      %v3247 = vpop.f32.mrb[0].mxu0
      %v3248 = vadd.f32 0.0, %v3247
      %v3249 = vpop.f32.mrb[0].mxu0
      %v3250 = vpop.f32.mrb[0].mxu0
      %v3251 = vadd.f32 0.0, %v3250
      %v3252 = vpop.f32.mrb[0].mxu0
      %3253 = vmatprep.mubr.bf16.mxu0 0
      %3254 = vmatmul.mubr.bf16.gmra.mrb[0].mxu0 %v3145
      %v3255 = vpop.f32.mrb[0].mxu0
      %v3256 = vadd.f32 0.0, %v3255
      %v3257 = vpop.f32.mrb[0].mxu0
      %v3258 = vpop.f32.mrb[0].mxu0
      %v3259 = vadd.f32 0.0, %v3258
      %v3260 = vpop.f32.mrb[0].mxu0
      %3261 = vmatprep.mubr.bf16.mxu0 0
      %3262 = vmatmul.mubr.bf16.gmra.mrb[0].mxu0 %v3148
      %v3263 = vpop.f32.mrb[0].mxu0
      %v3264 = vadd.f32 0.0, %v3263
      %v3265 = vpop.f32.mrb[0].mxu0
      %v3266 = vpop.f32.mrb[0].mxu0
      %v3267 = vadd.f32 0.0, %v3266
      %v3268 = vpop.f32.mrb[0].mxu0
      %3269 = vmatprep.mubr.bf16.mxu0 0
      %3270 = vmatmul.mubr.bf16.gmra.mrb[0].mxu0 %v3151
      %v3271 = vpop.f32.mrb[0].mxu0
      %v3272 = vadd.f32 0.0, %v3271
      %v3273 = vpop.f32.mrb[0].mxu0
      %v3274 = vpop.f32.mrb[0].mxu0
      %v3275 = vadd.f32 0.0, %v3274
      %v3276 = vpop.f32.mrb[0].mxu0
      %3277 = vmatprep.mubr.bf16.mxu0 0
      %3278 = vmatmul.mubr.bf16.gmra.mrb[0].mxu0 %v3154
      %v3279 = vpop.f32.mrb[0].mxu0
      %v3280 = vadd.f32 0.0, %v3279
      %v3281 = vpop.f32.mrb[0].mxu0
      %v3282 = vpop.f32.mrb[0].mxu0
      %v3283 = vadd.f32 0.0, %v3282
      %v3284 = vpop.f32.mrb[0].mxu0
      %3285 = vmatprep.mubr.bf16.mxu0 0
      %3286 = vmatmul.mubr.bf16.gmra.mrb[0].mxu0 %v3157
      %v3287 = vpop.f32.mrb[0].mxu0
      %v3288 = vadd.f32 0.0, %v3287
      %v3289 = vpop.f32.mrb[0].mxu0
      %v3290 = vpop.f32.mrb[0].mxu0
      %v3291 = vadd.f32 0.0, %v3290
      %v3292 = vpop.f32.mrb[0].mxu0
      %3293 = vmatprep.mubr.bf16.mxu0 0
      %3294 = vmatmul.mubr.bf16.gmra.mrb[0].mxu0 %v3160
      %v3295 = vpop.f32.mrb[0].mxu0
      %v3296 = vadd.f32 0.0, %v3295
      %v3297 = vpop.f32.mrb[0].mxu0
      %v3298 = vpop.f32.mrb[0].mxu0
      %v3299 = vadd.f32 0.0, %v3298
      %v3300 = vpop.f32.mrb[0].mxu0
      %3301 = vmatprep.mubr.bf16.mxu0 0
      %3302 = vmatmul.mubr.bf16.gmra.mrb[0].mxu0 %v3163
      %v3303 = vpop.f32.mrb[0].mxu0
      %v3304 = vadd.f32 0.0, %v3303
      %v3305 = vpop.f32.mrb[0].mxu0
      %v3306 = vpop.f32.mrb[0].mxu0
      %v3307 = vadd.f32 0.0, %v3306
      %v3308 = vpop.f32.mrb[0].mxu0
      %3309 = vmatprep.mubr.bf16.mxu0 0
      %3310 = vmatmul.mubr.bf16.gmra.mrb[0].mxu0 %v3166
      %v3311 = vpop.f32.mrb[0].mxu0
      %v3312 = vadd.f32 0.0, %v3311
      %v3313 = vpop.f32.mrb[0].mxu0
      %v3314 = vpop.f32.mrb[0].mxu0
      %v3315 = vadd.f32 0.0, %v3314
      %v3316 = vpop.f32.mrb[0].mxu0
      %3317 = vmatprep.mubr.bf16.mxu0 0
      %3318 = vmatmul.mubr.bf16.gmra.mrb[0].mxu0 %v3169
      %v3319 = vpop.f32.mrb[0].mxu0
      %v3320 = vadd.f32 0.0, %v3319
      %v3321 = vpop.f32.mrb[0].mxu0
      %v3322 = vpop.f32.mrb[0].mxu0
      %v3323 = vadd.f32 0.0, %v3322
      %v3324 = vpop.f32.mrb[0].mxu0
      %3325 = vmatprep.mubr.bf16.mxu0 0
      %3326 = vmatmul.mubr.bf16.gmra.mrb[0].mxu0 %v3172
      %v3327 = vpop.f32.mrb[0].mxu0
      %v3328 = vadd.f32 0.0, %v3327
      %v3329 = vpop.f32.mrb[0].mxu0
      %v3330 = vpop.f32.mrb[0].mxu0
      %v3331 = vadd.f32 0.0, %v3330
      %v3332 = vpop.f32.mrb[0].mxu0
      %3333 = vmatprep.mubr.bf16.mxu0 0
      %3334 = vmatmul.mubr.bf16.gmra.mrb[0].mxu0 %v3175
      %v3335 = vpop.f32.mrb[0].mxu0
      %v3336 = vadd.f32 0.0, %v3335
      %v3337 = vpop.f32.mrb[0].mxu0
      %v3338 = vpop.f32.mrb[0].mxu0
      %v3339 = vadd.f32 0.0, %v3338
      %v3340 = vpop.f32.mrb[0].mxu0
      %3341 = vdwg.mxu0
      %v3342 = vld [vmem:[%s3] sm:$0x1]
      %v3344 = vlaneseq
      %v3345 = vshrl.u32 %v3344, 7
      %v3346 = vsub.s32 0, %v3345
      %v3347 = vrot.slane %v3342, %v3346
      %v3349 = vmul.f32 %v3216, %v3347
      %v3350 = vmul.f32 %v3219, %v3347
      %v3351 = vmul.f32 %v3224, %v3347
      %v3352 = vmul.f32 %v3227, %v3347
      %v3353 = vmul.f32 %v3232, %v3347
      %v3354 = vmul.f32 %v3235, %v3347
      %v3355 = vmul.f32 %v3240, %v3347
      %v3356 = vmul.f32 %v3243, %v3347
      %v3357 = vmul.f32 %v3248, %v3347
      %v3358 = vmul.f32 %v3251, %v3347
      %v3359 = vmul.f32 %v3256, %v3347
      %v3360 = vmul.f32 %v3259, %v3347
      %v3361 = vmul.f32 %v3264, %v3347
      %v3362 = vmul.f32 %v3267, %v3347
      %v3363 = vmul.f32 %v3272, %v3347
      %v3364 = vmul.f32 %v3275, %v3347
      %v3365 = vmul.f32 %v3280, %v3347
      %v3366 = vmul.f32 %v3283, %v3347
      %v3367 = vmul.f32 %v3288, %v3347
      %v3368 = vmul.f32 %v3291, %v3347
      %v3369 = vmul.f32 %v3296, %v3347
      %v3370 = vmul.f32 %v3299, %v3347
      %v3371 = vmul.f32 %v3304, %v3347
      %v3372 = vmul.f32 %v3307, %v3347
      %v3373 = vmul.f32 %v3312, %v3347
      %v3374 = vmul.f32 %v3315, %v3347
      %v3375 = vmul.f32 %v3320, %v3347
      %v3376 = vmul.f32 %v3323, %v3347
      %v3377 = vmul.f32 %v3328, %v3347
      %v3378 = vmul.f32 %v3331, %v3347
      %v3379 = vmul.f32 %v3336, %v3347
      %v3380 = vmul.f32 %v3339, %v3347
      %v3381 = vld [vmem:[%s4] sm:$0x1]
      %v3383 = vlaneseq
      %v3384 = vshrl.u32 %v3383, 7
      %v3385 = vsub.s32 0, %v3384
      %v3386 = vrot.slane %v3381, %v3385
      %v3388 = vadd.f32 %v3349, %v3386
      %v3389 = vadd.f32 %v3350, %v3386
      %v3390 = vadd.f32 %v3351, %v3386
      %v3391 = vadd.f32 %v3352, %v3386
      %v3392 = vadd.f32 %v3353, %v3386
      %v3393 = vadd.f32 %v3354, %v3386
      %v3394 = vadd.f32 %v3355, %v3386
      %v3395 = vadd.f32 %v3356, %v3386
      %v3396 = vadd.f32 %v3357, %v3386
      %v3397 = vadd.f32 %v3358, %v3386
      %v3398 = vadd.f32 %v3359, %v3386
      %v3399 = vadd.f32 %v3360, %v3386
      %v3400 = vadd.f32 %v3361, %v3386
      %v3401 = vadd.f32 %v3362, %v3386
      %v3402 = vadd.f32 %v3363, %v3386
      %v3403 = vadd.f32 %v3364, %v3386
      %v3404 = vadd.f32 %v3365, %v3386
      %v3405 = vadd.f32 %v3366, %v3386
      %v3406 = vadd.f32 %v3367, %v3386
      %v3407 = vadd.f32 %v3368, %v3386
      %v3408 = vadd.f32 %v3369, %v3386
      %v3409 = vadd.f32 %v3370, %v3386
      %v3410 = vadd.f32 %v3371, %v3386
      %v3411 = vadd.f32 %v3372, %v3386
      %v3412 = vadd.f32 %v3373, %v3386
      %v3413 = vadd.f32 %v3374, %v3386
      %v3414 = vadd.f32 %v3375, %v3386
      %v3415 = vadd.f32 %v3376, %v3386
      %v3416 = vadd.f32 %v3377, %v3386
      %v3417 = vadd.f32 %v3378, %v3386
      %v3418 = vadd.f32 %v3379, %v3386
      %v3419 = vadd.f32 %v3380, %v3386
      %v3420 = vxor.u32 %v3388, 2147483648
      %v3421 = vxor.u32 %v3389, 2147483648
      %v3422 = vxor.u32 %v3390, 2147483648
      %v3423 = vxor.u32 %v3391, 2147483648
      %v3424 = vxor.u32 %v3392, 2147483648
      %v3425 = vxor.u32 %v3393, 2147483648
      %v3426 = vxor.u32 %v3394, 2147483648
      %v3427 = vxor.u32 %v3395, 2147483648
      %v3428 = vxor.u32 %v3396, 2147483648
      %v3429 = vxor.u32 %v3397, 2147483648
      %v3430 = vxor.u32 %v3398, 2147483648
      %v3431 = vxor.u32 %v3399, 2147483648
      %v3432 = vxor.u32 %v3400, 2147483648
      %v3433 = vxor.u32 %v3401, 2147483648
      %v3434 = vxor.u32 %v3402, 2147483648
      %v3435 = vxor.u32 %v3403, 2147483648
      %v3436 = vxor.u32 %v3404, 2147483648
      %v3437 = vxor.u32 %v3405, 2147483648
      %v3438 = vxor.u32 %v3406, 2147483648
      %v3439 = vxor.u32 %v3407, 2147483648
      %v3440 = vxor.u32 %v3408, 2147483648
      %v3441 = vxor.u32 %v3409, 2147483648
      %v3442 = vxor.u32 %v3410, 2147483648
      %v3443 = vxor.u32 %v3411, 2147483648
      %v3444 = vxor.u32 %v3412, 2147483648
      %v3445 = vxor.u32 %v3413, 2147483648
      %v3446 = vxor.u32 %v3414, 2147483648
      %v3447 = vxor.u32 %v3415, 2147483648
      %v3448 = vxor.u32 %v3416, 2147483648
      %v3449 = vxor.u32 %v3417, 2147483648
      %v3450 = vxor.u32 %v3418, 2147483648
      %v3451 = vxor.u32 %v3419, 2147483648
      %v3452 = vmul.f32 %v3420, 1.442695
      %v3453 = vpow.pop %v3452
      %v3454 = vmul.f32 %v3421, 1.442695
      %v3455 = vpow.pop %v3454
      %v3456 = vmul.f32 %v3422, 1.442695
      %v3457 = vpow.pop %v3456
      %v3458 = vmul.f32 %v3423, 1.442695
      %v3459 = vpow.pop %v3458
      %v3460 = vmul.f32 %v3424, 1.442695
      %v3461 = vpow.pop %v3460
      %v3462 = vmul.f32 %v3425, 1.442695
      %v3463 = vpow.pop %v3462
      %v3464 = vmul.f32 %v3426, 1.442695
      %v3465 = vpow.pop %v3464
      %v3466 = vmul.f32 %v3427, 1.442695
      %v3467 = vpow.pop %v3466
      %v3468 = vmul.f32 %v3428, 1.442695
      %v3469 = vpow.pop %v3468
      %v3470 = vmul.f32 %v3429, 1.442695
      %v3471 = vpow.pop %v3470
      %v3472 = vmul.f32 %v3430, 1.442695
      %v3473 = vpow.pop %v3472
      %v3474 = vmul.f32 %v3431, 1.442695
      %v3475 = vpow.pop %v3474
      %v3476 = vmul.f32 %v3432, 1.442695
      %v3477 = vpow.pop %v3476
      %v3478 = vmul.f32 %v3433, 1.442695
      %v3479 = vpow.pop %v3478
      %v3480 = vmul.f32 %v3434, 1.442695
      %v3481 = vpow.pop %v3480
      %v3482 = vmul.f32 %v3435, 1.442695
      %v3483 = vpow.pop %v3482
      %v3484 = vmul.f32 %v3436, 1.442695
      %v3485 = vpow.pop %v3484
      %v3486 = vmul.f32 %v3437, 1.442695
      %v3487 = vpow.pop %v3486
      %v3488 = vmul.f32 %v3438, 1.442695
      %v3489 = vpow.pop %v3488
      %v3490 = vmul.f32 %v3439, 1.442695
      %v3491 = vpow.pop %v3490
      %v3492 = vmul.f32 %v3440, 1.442695
      %v3493 = vpow.pop %v3492
      %v3494 = vmul.f32 %v3441, 1.442695
      %v3495 = vpow.pop %v3494
      %v3496 = vmul.f32 %v3442, 1.442695
      %v3497 = vpow.pop %v3496
      %v3498 = vmul.f32 %v3443, 1.442695
      %v3499 = vpow.pop %v3498
      %v3500 = vmul.f32 %v3444, 1.442695
      %v3501 = vpow.pop %v3500
      %v3502 = vmul.f32 %v3445, 1.442695
      %v3503 = vpow.pop %v3502
      %v3504 = vmul.f32 %v3446, 1.442695
      %v3505 = vpow.pop %v3504
      %v3506 = vmul.f32 %v3447, 1.442695
      %v3507 = vpow.pop %v3506
      %v3508 = vmul.f32 %v3448, 1.442695
      %v3509 = vpow.pop %v3508
      %v3510 = vmul.f32 %v3449, 1.442695
      %v3511 = vpow.pop %v3510
      %v3512 = vmul.f32 %v3450, 1.442695
      %v3513 = vpow.pop %v3512
      %v3514 = vmul.f32 %v3451, 1.442695
      %v3515 = vpow.pop %v3514
      %v3516 = vadd.f32 %v3453, 1.0
      %v3517 = vadd.f32 %v3455, 1.0
      %v3518 = vadd.f32 %v3457, 1.0
      %v3519 = vadd.f32 %v3459, 1.0
      %v3520 = vadd.f32 %v3461, 1.0
      %v3521 = vadd.f32 %v3463, 1.0
      %v3522 = vadd.f32 %v3465, 1.0
      %v3523 = vadd.f32 %v3467, 1.0
      %v3524 = vadd.f32 %v3469, 1.0
      %v3525 = vadd.f32 %v3471, 1.0
      %v3526 = vadd.f32 %v3473, 1.0
      %v3527 = vadd.f32 %v3475, 1.0
      %v3528 = vadd.f32 %v3477, 1.0
      %v3529 = vadd.f32 %v3479, 1.0
      %v3530 = vadd.f32 %v3481, 1.0
      %v3531 = vadd.f32 %v3483, 1.0
      %v3532 = vadd.f32 %v3485, 1.0
      %v3533 = vadd.f32 %v3487, 1.0
      %v3534 = vadd.f32 %v3489, 1.0
      %v3535 = vadd.f32 %v3491, 1.0
      %v3536 = vadd.f32 %v3493, 1.0
      %v3537 = vadd.f32 %v3495, 1.0
      %v3538 = vadd.f32 %v3497, 1.0
      %v3539 = vadd.f32 %v3499, 1.0
      %v3540 = vadd.f32 %v3501, 1.0
      %v3541 = vadd.f32 %v3503, 1.0
      %v3542 = vadd.f32 %v3505, 1.0
      %v3543 = vadd.f32 %v3507, 1.0
      %v3544 = vadd.f32 %v3509, 1.0
      %v3545 = vadd.f32 %v3511, 1.0
      %v3546 = vadd.f32 %v3513, 1.0
      %v3547 = vadd.f32 %v3515, 1.0
      %v3548 = vrcp.pop %v3516
      %v3549 = vmul.f32 1.0, %v3548
      %v3550 = vrcp.pop %v3517
      %v3551 = vmul.f32 1.0, %v3550
      %v3552 = vrcp.pop %v3518
      %v3553 = vmul.f32 1.0, %v3552
      %v3554 = vrcp.pop %v3519
      %v3555 = vmul.f32 1.0, %v3554
      %v3556 = vrcp.pop %v3520
      %v3557 = vmul.f32 1.0, %v3556
      %v3558 = vrcp.pop %v3521
      %v3559 = vmul.f32 1.0, %v3558
      %v3560 = vrcp.pop %v3522
      %v3561 = vmul.f32 1.0, %v3560
      %v3562 = vrcp.pop %v3523
      %v3563 = vmul.f32 1.0, %v3562
      %v3564 = vrcp.pop %v3524
      %v3565 = vmul.f32 1.0, %v3564
      %v3566 = vrcp.pop %v3525
      %v3567 = vmul.f32 1.0, %v3566
      %v3568 = vrcp.pop %v3526
      %v3569 = vmul.f32 1.0, %v3568
      %v3570 = vrcp.pop %v3527
      %v3571 = vmul.f32 1.0, %v3570
      %v3572 = vrcp.pop %v3528
      %v3573 = vmul.f32 1.0, %v3572
      %v3574 = vrcp.pop %v3529
      %v3575 = vmul.f32 1.0, %v3574
      %v3576 = vrcp.pop %v3530
      %v3577 = vmul.f32 1.0, %v3576
      %v3578 = vrcp.pop %v3531
      %v3579 = vmul.f32 1.0, %v3578
      %v3580 = vrcp.pop %v3532
      %v3581 = vmul.f32 1.0, %v3580
      %v3582 = vrcp.pop %v3533
      %v3583 = vmul.f32 1.0, %v3582
      %v3584 = vrcp.pop %v3534
      %v3585 = vmul.f32 1.0, %v3584
      %v3586 = vrcp.pop %v3535
      %v3587 = vmul.f32 1.0, %v3586
      %v3588 = vrcp.pop %v3536
      %v3589 = vmul.f32 1.0, %v3588
      %v3590 = vrcp.pop %v3537
      %v3591 = vmul.f32 1.0, %v3590
      %v3592 = vrcp.pop %v3538
      %v3593 = vmul.f32 1.0, %v3592
      %v3594 = vrcp.pop %v3539
      %v3595 = vmul.f32 1.0, %v3594
      %v3596 = vrcp.pop %v3540
      %v3597 = vmul.f32 1.0, %v3596
      %v3598 = vrcp.pop %v3541
      %v3599 = vmul.f32 1.0, %v3598
      %v3600 = vrcp.pop %v3542
      %v3601 = vmul.f32 1.0, %v3600
      %v3602 = vrcp.pop %v3543
      %v3603 = vmul.f32 1.0, %v3602
      %v3604 = vrcp.pop %v3544
      %v3605 = vmul.f32 1.0, %v3604
      %v3606 = vrcp.pop %v3545
      %v3607 = vmul.f32 1.0, %v3606
      %v3608 = vrcp.pop %v3546
      %v3609 = vmul.f32 1.0, %v3608
      %v3610 = vrcp.pop %v3547
      %v3611 = vmul.f32 1.0, %v3610
      %v3612 = vmul.f32 %v3388, %v3549
      %v3613 = vmul.f32 %v3389, %v3551
      %v3614 = vmul.f32 %v3390, %v3553
      %v3615 = vmul.f32 %v3391, %v3555
      %v3616 = vmul.f32 %v3392, %v3557
      %v3617 = vmul.f32 %v3393, %v3559
      %v3618 = vmul.f32 %v3394, %v3561
      %v3619 = vmul.f32 %v3395, %v3563
      %v3620 = vmul.f32 %v3396, %v3565
      %v3621 = vmul.f32 %v3397, %v3567
      %v3622 = vmul.f32 %v3398, %v3569
      %v3623 = vmul.f32 %v3399, %v3571
      %v3624 = vmul.f32 %v3400, %v3573
      %v3625 = vmul.f32 %v3401, %v3575
      %v3626 = vmul.f32 %v3402, %v3577
      %v3627 = vmul.f32 %v3403, %v3579
      %v3628 = vmul.f32 %v3404, %v3581
      %v3629 = vmul.f32 %v3405, %v3583
      %v3630 = vmul.f32 %v3406, %v3585
      %v3631 = vmul.f32 %v3407, %v3587
      %v3632 = vmul.f32 %v3408, %v3589
      %v3633 = vmul.f32 %v3409, %v3591
      %v3634 = vmul.f32 %v3410, %v3593
      %v3635 = vmul.f32 %v3411, %v3595
      %v3636 = vmul.f32 %v3412, %v3597
      %v3637 = vmul.f32 %v3413, %v3599
      %v3638 = vmul.f32 %v3414, %v3601
      %v3639 = vmul.f32 %v3415, %v3603
      %v3640 = vmul.f32 %v3416, %v3605
      %v3641 = vmul.f32 %v3417, %v3607
      %v3642 = vmul.f32 %v3418, %v3609
      %v3643 = vmul.f32 %v3419, %v3611
      %v3644 = vpack.c.bf16 %v3613, %v3612
      %v3645 = vpack.c.bf16 %v3615, %v3614
      %v3646 = vpack.c.bf16 %v3617, %v3616
      %v3647 = vpack.c.bf16 %v3619, %v3618
      %v3648 = vpack.c.bf16 %v3621, %v3620
      %v3649 = vpack.c.bf16 %v3623, %v3622
      %v3650 = vpack.c.bf16 %v3625, %v3624
      %v3651 = vpack.c.bf16 %v3627, %v3626
      %v3652 = vpack.c.bf16 %v3629, %v3628
      %v3653 = vpack.c.bf16 %v3631, %v3630
      %v3654 = vpack.c.bf16 %v3633, %v3632
      %v3655 = vpack.c.bf16 %v3635, %v3634
      %v3656 = vpack.c.bf16 %v3637, %v3636
      %v3657 = vpack.c.bf16 %v3639, %v3638
      %v3658 = vpack.c.bf16 %v3641, %v3640
      %v3659 = vpack.c.bf16 %v3643, %v3642
      %v3676 = vrot.slane %v3644, 4
      %v3677 = vrot.slane %v3645, 4
      %v3678 = vrot.slane %v3646, 4
      %v3679 = vrot.slane %v3647, 4
      %v3680 = vrot.slane %v3648, 4
      %v3681 = vrot.slane %v3649, 4
      %v3682 = vrot.slane %v3650, 4
      %v3683 = vrot.slane %v3651, 4
      %v3684 = vrot.slane %v3652, 4
      %v3685 = vrot.slane %v3653, 4
      %v3686 = vrot.slane %v3654, 4
      %v3687 = vrot.slane %v3655, 4
      %v3688 = vrot.slane %v3656, 4
      %v3689 = vrot.slane %v3657, 4
      %v3690 = vrot.slane %v3658, 4
      %v3691 = vrot.slane %v3659, 4
      %3708 = vst.msk [vmem:[%s374] sm:$0xf0] %vm392, %v3676
      %3709 = vst.msk [vmem:[%s374 + $0x8] sm:$0xf] %vm375, %v3676
      %3710 = vst.msk [vmem:[%s374 + $0x10] sm:$0xf0] %vm392, %v3677
      %3711 = vst.msk [vmem:[%s374 + $0x18] sm:$0xf] %vm375, %v3677
      %3712 = vst.msk [vmem:[%s374 + $0x20] sm:$0xf0] %vm392, %v3678
      %3713 = vst.msk [vmem:[%s374 + $0x28] sm:$0xf] %vm375, %v3678
      %3714 = vst.msk [vmem:[%s374 + $0x30] sm:$0xf0] %vm392, %v3679
      %3715 = vst.msk [vmem:[%s374 + $0x38] sm:$0xf] %vm375, %v3679
      %3716 = vst.msk [vmem:[%s374 + $0x40] sm:$0xf0] %vm392, %v3680
      %3717 = vst.msk [vmem:[%s374 + $0x48] sm:$0xf] %vm375, %v3680
      %3718 = vst.msk [vmem:[%s374 + $0x50] sm:$0xf0] %vm392, %v3681
      %3719 = vst.msk [vmem:[%s374 + $0x58] sm:$0xf] %vm375, %v3681
      %3720 = vst.msk [vmem:[%s374 + $0x60] sm:$0xf0] %vm392, %v3682
      %3721 = vst.msk [vmem:[%s374 + $0x68] sm:$0xf] %vm375, %v3682
      %3722 = vst.msk [vmem:[%s374 + $0x70] sm:$0xf0] %vm392, %v3683
      %3723 = vst.msk [vmem:[%s374 + $0x78] sm:$0xf] %vm375, %v3683
      %3724 = vst.msk [vmem:[%s374 + $0x80] sm:$0xf0] %vm392, %v3684
      %3725 = vst.msk [vmem:[%s374 + $0x88] sm:$0xf] %vm375, %v3684
      %3726 = vst.msk [vmem:[%s374 + $0x90] sm:$0xf0] %vm392, %v3685
      %3727 = vst.msk [vmem:[%s374 + $0x98] sm:$0xf] %vm375, %v3685
      %3728 = vst.msk [vmem:[%s374 + $0xa0] sm:$0xf0] %vm392, %v3686
      %3729 = vst.msk [vmem:[%s374 + $0xa8] sm:$0xf] %vm375, %v3686
      %3730 = vst.msk [vmem:[%s374 + $0xb0] sm:$0xf0] %vm392, %v3687
      %3731 = vst.msk [vmem:[%s374 + $0xb8] sm:$0xf] %vm375, %v3687
      %3732 = vst.msk [vmem:[%s374 + $0xc0] sm:$0xf0] %vm392, %v3688
      %3733 = vst.msk [vmem:[%s374 + $0xc8] sm:$0xf] %vm375, %v3688
      %3734 = vst.msk [vmem:[%s374 + $0xd0] sm:$0xf0] %vm392, %v3689
      %3735 = vst.msk [vmem:[%s374 + $0xd8] sm:$0xf] %vm375, %v3689
      %3736 = vst.msk [vmem:[%s374 + $0xe0] sm:$0xf0] %vm392, %v3690
      %3737 = vst.msk [vmem:[%s374 + $0xe8] sm:$0xf] %vm375, %v3690
      %3738 = vst.msk [vmem:[%s374 + $0xf0] sm:$0xf0] %vm392, %v3691
      %3739 = vst.msk [vmem:[%s374 + $0xf8] sm:$0xf] %vm375, %v3691
      %v3740 = vld [vmem:[#allocation3] sm:$0xf8]
      %v3741 = vld [vmem:[#allocation3 + $0x8] sm:$0xf]
      %v3742 = vld [vmem:[#allocation3 + $0x10] sm:$0xf8]
      %v3743 = vld [vmem:[#allocation3 + $0x18] sm:$0xf]
      %v3744 = vld [vmem:[#allocation3 + $0x20] sm:$0xf8]
      %v3745 = vld [vmem:[#allocation3 + $0x28] sm:$0xf]
      %v3746 = vld [vmem:[#allocation3 + $0x30] sm:$0xf8]
      %v3747 = vld [vmem:[#allocation3 + $0x38] sm:$0xf]
      %v3748 = vld [vmem:[#allocation3 + $0x40] sm:$0xf8]
      %v3749 = vld [vmem:[#allocation3 + $0x48] sm:$0xf]
      %v3750 = vld [vmem:[#allocation3 + $0x50] sm:$0xf8]
      %v3751 = vld [vmem:[#allocation3 + $0x58] sm:$0xf]
      %v3752 = vld [vmem:[#allocation3 + $0x60] sm:$0xf8]
      %v3753 = vld [vmem:[#allocation3 + $0x68] sm:$0xf]
      %v3754 = vld [vmem:[#allocation3 + $0x70] sm:$0xf8]
      %v3755 = vld [vmem:[#allocation3 + $0x78] sm:$0xf]
      %v3756 = vld [vmem:[#allocation3 + $0x80] sm:$0xf8]
      %v3757 = vld [vmem:[#allocation3 + $0x88] sm:$0xf]
      %v3758 = vld [vmem:[#allocation3 + $0x90] sm:$0xf8]
      %v3759 = vld [vmem:[#allocation3 + $0x98] sm:$0xf]
      %v3760 = vld [vmem:[#allocation3 + $0xa0] sm:$0xf8]
      %v3761 = vld [vmem:[#allocation3 + $0xa8] sm:$0xf]
      %v3762 = vld [vmem:[#allocation3 + $0xb0] sm:$0xf8]
      %v3763 = vld [vmem:[#allocation3 + $0xb8] sm:$0xf]
      %v3764 = vld [vmem:[#allocation3 + $0xc0] sm:$0xf8]
      %v3765 = vld [vmem:[#allocation3 + $0xc8] sm:$0xf]
      %v3766 = vld [vmem:[#allocation3 + $0xd0] sm:$0xf8]
      %v3767 = vld [vmem:[#allocation3 + $0xd8] sm:$0xf]
      %v3768 = vld [vmem:[#allocation3 + $0xe0] sm:$0xf8]
      %v3769 = vld [vmem:[#allocation3 + $0xe8] sm:$0xf]
      %v3770 = vld [vmem:[#allocation3 + $0xf0] sm:$0xf8]
      %v3771 = vld [vmem:[#allocation3 + $0xf8] sm:$0xf]
      %v3772 = vld [vmem:[#allocation3] sm:$0xf0]
      %v3773 = vld [vmem:[#allocation3 + $0x10] sm:$0xf0]
      %v3774 = vld [vmem:[#allocation3 + $0x20] sm:$0xf0]
      %v3775 = vld [vmem:[#allocation3 + $0x30] sm:$0xf0]
      %v3776 = vld [vmem:[#allocation3 + $0x40] sm:$0xf0]
      %v3777 = vld [vmem:[#allocation3 + $0x50] sm:$0xf0]
      %v3778 = vld [vmem:[#allocation3 + $0x60] sm:$0xf0]
      %v3779 = vld [vmem:[#allocation3 + $0x70] sm:$0xf0]
      %v3780 = vld [vmem:[#allocation3 + $0x80] sm:$0xf0]
      %v3781 = vld [vmem:[#allocation3 + $0x90] sm:$0xf0]
      %v3782 = vld [vmem:[#allocation3 + $0xa0] sm:$0xf0]
      %v3783 = vld [vmem:[#allocation3 + $0xb0] sm:$0xf0]
      %v3784 = vld [vmem:[#allocation3 + $0xc0] sm:$0xf0]
      %v3785 = vld [vmem:[#allocation3 + $0xd0] sm:$0xf0]
      %v3786 = vld [vmem:[#allocation3 + $0xe0] sm:$0xf0]
      %v3787 = vld [vmem:[#allocation3 + $0xf0] sm:$0xf0]
      %v3788 = vld [vmem:[#allocation3 + $0x8] sm:$0x1f]
      %v3789 = vld [vmem:[#allocation3 + $0x18] sm:$0x1f]
      %v3790 = vld [vmem:[#allocation3 + $0x28] sm:$0x1f]
      %v3791 = vld [vmem:[#allocation3 + $0x38] sm:$0x1f]
      %v3792 = vld [vmem:[#allocation3 + $0x48] sm:$0x1f]
      %v3793 = vld [vmem:[#allocation3 + $0x58] sm:$0x1f]
      %v3794 = vld [vmem:[#allocation3 + $0x68] sm:$0x1f]
      %v3795 = vld [vmem:[#allocation3 + $0x78] sm:$0x1f]
      %v3796 = vld [vmem:[#allocation3 + $0x88] sm:$0x1f]
      %v3797 = vld [vmem:[#allocation3 + $0x98] sm:$0x1f]
      %v3798 = vld [vmem:[#allocation3 + $0xa8] sm:$0x1f]
      %v3799 = vld [vmem:[#allocation3 + $0xb8] sm:$0x1f]
      %v3800 = vld [vmem:[#allocation3 + $0xc8] sm:$0x1f]
      %v3801 = vld [vmem:[#allocation3 + $0xd8] sm:$0x1f]
      %v3802 = vld [vmem:[#allocation3 + $0xe8] sm:$0x1f]
      %v3803 = vld [vmem:[#allocation3 + $0xf8] sm:$0x1f]
      %v3804 = vld [vmem:[%s374] sm:$0xf8]
      %v3805 = vld [vmem:[%s374 + $0x8] sm:$0xf]
      %v3806 = vld [vmem:[%s374 + $0x10] sm:$0xf8]
      %v3807 = vld [vmem:[%s374 + $0x18] sm:$0xf]
      %v3808 = vld [vmem:[%s374 + $0x20] sm:$0xf8]
      %v3809 = vld [vmem:[%s374 + $0x28] sm:$0xf]
      %v3810 = vld [vmem:[%s374 + $0x30] sm:$0xf8]
      %v3811 = vld [vmem:[%s374 + $0x38] sm:$0xf]
      %v3812 = vld [vmem:[%s374 + $0x40] sm:$0xf8]
      %v3813 = vld [vmem:[%s374 + $0x48] sm:$0xf]
      %v3814 = vld [vmem:[%s374 + $0x50] sm:$0xf8]
      %v3815 = vld [vmem:[%s374 + $0x58] sm:$0xf]
      %v3816 = vld [vmem:[%s374 + $0x60] sm:$0xf8]
      %v3817 = vld [vmem:[%s374 + $0x68] sm:$0xf]
      %v3818 = vld [vmem:[%s374 + $0x70] sm:$0xf8]
      %v3819 = vld [vmem:[%s374 + $0x78] sm:$0xf]
      %v3820 = vld [vmem:[%s374 + $0x80] sm:$0xf8]
      %v3821 = vld [vmem:[%s374 + $0x88] sm:$0xf]
      %v3822 = vld [vmem:[%s374 + $0x90] sm:$0xf8]
      %v3823 = vld [vmem:[%s374 + $0x98] sm:$0xf]
      %v3824 = vld [vmem:[%s374 + $0xa0] sm:$0xf8]
      %v3825 = vld [vmem:[%s374 + $0xa8] sm:$0xf]
      %v3826 = vld [vmem:[%s374 + $0xb0] sm:$0xf8]
      %v3827 = vld [vmem:[%s374 + $0xb8] sm:$0xf]
      %v3828 = vld [vmem:[%s374 + $0xc0] sm:$0xf8]
      %v3829 = vld [vmem:[%s374 + $0xc8] sm:$0xf]
      %v3830 = vld [vmem:[%s374 + $0xd0] sm:$0xf8]
      %v3831 = vld [vmem:[%s374 + $0xd8] sm:$0xf]
      %v3832 = vld [vmem:[%s374 + $0xe0] sm:$0xf8]
      %v3833 = vld [vmem:[%s374 + $0xe8] sm:$0xf]
      %v3834 = vld [vmem:[%s374 + $0xf0] sm:$0xf8]
      %v3835 = vld [vmem:[%s374 + $0xf8] sm:$0xf]
      %v3836 = vld [vmem:[%s374] sm:$0xf0]
      %v3837 = vld [vmem:[%s374 + $0x10] sm:$0xf0]
      %v3838 = vld [vmem:[%s374 + $0x20] sm:$0xf0]
      %v3839 = vld [vmem:[%s374 + $0x30] sm:$0xf0]
      %v3840 = vld [vmem:[%s374 + $0x40] sm:$0xf0]
      %v3841 = vld [vmem:[%s374 + $0x50] sm:$0xf0]
      %v3842 = vld [vmem:[%s374 + $0x60] sm:$0xf0]
      %v3843 = vld [vmem:[%s374 + $0x70] sm:$0xf0]
      %v3844 = vld [vmem:[%s374 + $0x80] sm:$0xf0]
      %v3845 = vld [vmem:[%s374 + $0x90] sm:$0xf0]
      %v3846 = vld [vmem:[%s374 + $0xa0] sm:$0xf0]
      %v3847 = vld [vmem:[%s374 + $0xb0] sm:$0xf0]
      %v3848 = vld [vmem:[%s374 + $0xc0] sm:$0xf0]
      %v3849 = vld [vmem:[%s374 + $0xd0] sm:$0xf0]
      %v3850 = vld [vmem:[%s374 + $0xe0] sm:$0xf0]
      %v3851 = vld [vmem:[%s374 + $0xf0] sm:$0xf0]
      %v3852 = vld [vmem:[%s374 + $0x8] sm:$0x1f]
      %v3853 = vld [vmem:[%s374 + $0x18] sm:$0x1f]
      %v3854 = vld [vmem:[%s374 + $0x28] sm:$0x1f]
      %v3855 = vld [vmem:[%s374 + $0x38] sm:$0x1f]
      %v3856 = vld [vmem:[%s374 + $0x48] sm:$0x1f]
      %v3857 = vld [vmem:[%s374 + $0x58] sm:$0x1f]
      %v3858 = vld [vmem:[%s374 + $0x68] sm:$0x1f]
      %v3859 = vld [vmem:[%s374 + $0x78] sm:$0x1f]
      %v3860 = vld [vmem:[%s374 + $0x88] sm:$0x1f]
      %v3861 = vld [vmem:[%s374 + $0x98] sm:$0x1f]
      %v3862 = vld [vmem:[%s374 + $0xa8] sm:$0x1f]
      %v3863 = vld [vmem:[%s374 + $0xb8] sm:$0x1f]
      %v3864 = vld [vmem:[%s374 + $0xc8] sm:$0x1f]
      %v3865 = vld [vmem:[%s374 + $0xd8] sm:$0x1f]
      %v3866 = vld [vmem:[%s374 + $0xe8] sm:$0x1f]
      %v3867 = vld [vmem:[%s374 + $0xf8] sm:$0x1f]
      %s3868 = scalar_lea.vmem [#allocation3], 32
      %v3869 = vld [vmem:[%s3868] sm:$0xf8]
      %v3870 = vld [vmem:[%s3868 + $0x8] sm:$0xf]
      %v3871 = vld [vmem:[%s3868 + $0x10] sm:$0xf8]
      %v3872 = vld [vmem:[%s3868 + $0x18] sm:$0xf]
      %v3873 = vld [vmem:[%s3868 + $0x20] sm:$0xf8]
      %v3874 = vld [vmem:[%s3868 + $0x28] sm:$0xf]
      %v3875 = vld [vmem:[%s3868 + $0x30] sm:$0xf8]
      %v3876 = vld [vmem:[%s3868 + $0x38] sm:$0xf]
      %v3877 = vld [vmem:[%s3868 + $0x40] sm:$0xf8]
      %v3878 = vld [vmem:[%s3868 + $0x48] sm:$0xf]
      %v3879 = vld [vmem:[%s3868 + $0x50] sm:$0xf8]
      %v3880 = vld [vmem:[%s3868 + $0x58] sm:$0xf]
      %v3881 = vld [vmem:[%s3868 + $0x60] sm:$0xf8]
      %v3882 = vld [vmem:[%s3868 + $0x68] sm:$0xf]
      %v3883 = vld [vmem:[%s3868 + $0x70] sm:$0xf8]
      %v3884 = vld [vmem:[%s3868 + $0x78] sm:$0xf]
      %v3885 = vld [vmem:[%s3868 + $0x80] sm:$0xf8]
      %v3886 = vld [vmem:[%s3868 + $0x88] sm:$0xf]
      %v3887 = vld [vmem:[%s3868 + $0x90] sm:$0xf8]
      %v3888 = vld [vmem:[%s3868 + $0x98] sm:$0xf]
      %v3889 = vld [vmem:[%s3868 + $0xa0] sm:$0xf8]
      %v3890 = vld [vmem:[%s3868 + $0xa8] sm:$0xf]
      %v3891 = vld [vmem:[%s3868 + $0xb0] sm:$0xf8]
      %v3892 = vld [vmem:[%s3868 + $0xb8] sm:$0xf]
      %v3893 = vld [vmem:[%s3868 + $0xc0] sm:$0xf8]
      %v3894 = vld [vmem:[%s3868 + $0xc8] sm:$0xf]
      %v3895 = vld [vmem:[%s3868 + $0xd0] sm:$0xf8]
      %v3896 = vld [vmem:[%s3868 + $0xd8] sm:$0xf]
      %v3897 = vld [vmem:[%s3868 + $0xe0] sm:$0xf8]
      %v3898 = vld [vmem:[%s3868 + $0xe8] sm:$0xf]
      %v3899 = vld [vmem:[%s3868 + $0xf0] sm:$0xf8]
      %v3900 = vld [vmem:[%s3868 + $0xf8] sm:$0xf]
      %v3901 = vld [vmem:[%s3868] sm:$0xf0]
      %v3902 = vld [vmem:[%s3868 + $0x10] sm:$0xf0]
      %v3903 = vld [vmem:[%s3868 + $0x20] sm:$0xf0]
      %v3904 = vld [vmem:[%s3868 + $0x30] sm:$0xf0]
      %v3905 = vld [vmem:[%s3868 + $0x40] sm:$0xf0]
      %v3906 = vld [vmem:[%s3868 + $0x50] sm:$0xf0]
      %v3907 = vld [vmem:[%s3868 + $0x60] sm:$0xf0]
      %v3908 = vld [vmem:[%s3868 + $0x70] sm:$0xf0]
      %v3909 = vld [vmem:[%s3868 + $0x80] sm:$0xf0]
      %v3910 = vld [vmem:[%s3868 + $0x90] sm:$0xf0]
      %v3911 = vld [vmem:[%s3868 + $0xa0] sm:$0xf0]
      %v3912 = vld [vmem:[%s3868 + $0xb0] sm:$0xf0]
      %v3913 = vld [vmem:[%s3868 + $0xc0] sm:$0xf0]
      %v3914 = vld [vmem:[%s3868 + $0xd0] sm:$0xf0]
      %v3915 = vld [vmem:[%s3868 + $0xe0] sm:$0xf0]
      %v3916 = vld [vmem:[%s3868 + $0xf0] sm:$0xf0]
      %v3917 = vld [vmem:[%s3868 + $0x8] sm:$0x1f]
      %v3918 = vld [vmem:[%s3868 + $0x18] sm:$0x1f]
      %v3919 = vld [vmem:[%s3868 + $0x28] sm:$0x1f]
      %v3920 = vld [vmem:[%s3868 + $0x38] sm:$0x1f]
      %v3921 = vld [vmem:[%s3868 + $0x48] sm:$0x1f]
      %v3922 = vld [vmem:[%s3868 + $0x58] sm:$0x1f]
      %v3923 = vld [vmem:[%s3868 + $0x68] sm:$0x1f]
      %v3924 = vld [vmem:[%s3868 + $0x78] sm:$0x1f]
      %v3925 = vld [vmem:[%s3868 + $0x88] sm:$0x1f]
      %v3926 = vld [vmem:[%s3868 + $0x98] sm:$0x1f]
      %v3927 = vld [vmem:[%s3868 + $0xa8] sm:$0x1f]
      %v3928 = vld [vmem:[%s3868 + $0xb8] sm:$0x1f]
      %v3929 = vld [vmem:[%s3868 + $0xc8] sm:$0x1f]
      %v3930 = vld [vmem:[%s3868 + $0xd8] sm:$0x1f]
      %v3931 = vld [vmem:[%s3868 + $0xe8] sm:$0x1f]
      %v3932 = vld [vmem:[%s3868 + $0xf8] sm:$0x1f]
      %v3934 = vshrl.u32 %v3772, 16
      %v3936 = vshll.u32 %v3772, 16
      %v3938 = vrot.slane %v3936, 1
      %v3939 = vor.u32 %v3934, %v3938
      %v3941 = vshll.u32 %v3741, 16
      %v3943 = vrot.slane %v3941, 1
      %v3944 = vsel %vm794, %v3939, %v3943
      %v3945 = vshrl.u32 %v3741, 16
      %v3947 = vor.u32 %v3945, %v3943
      %v3949 = vshrl.u32 %v3773, 16
      %v3951 = vshll.u32 %v3773, 16
      %v3953 = vrot.slane %v3951, 1
      %v3954 = vor.u32 %v3949, %v3953
      %v3956 = vshll.u32 %v3743, 16
      %v3958 = vrot.slane %v3956, 1
      %v3959 = vsel %vm794, %v3954, %v3958
      %v3960 = vshrl.u32 %v3743, 16
      %v3962 = vor.u32 %v3960, %v3958
      %v3964 = vshrl.u32 %v3774, 16
      %v3966 = vshll.u32 %v3774, 16
      %v3968 = vrot.slane %v3966, 1
      %v3969 = vor.u32 %v3964, %v3968
      %v3971 = vshll.u32 %v3745, 16
      %v3973 = vrot.slane %v3971, 1
      %v3974 = vsel %vm794, %v3969, %v3973
      %v3975 = vshrl.u32 %v3745, 16
      %v3977 = vor.u32 %v3975, %v3973
      %v3979 = vshrl.u32 %v3775, 16
      %v3981 = vshll.u32 %v3775, 16
      %v3983 = vrot.slane %v3981, 1
      %v3984 = vor.u32 %v3979, %v3983
      %v3986 = vshll.u32 %v3747, 16
      %v3988 = vrot.slane %v3986, 1
      %v3989 = vsel %vm794, %v3984, %v3988
      %v3990 = vshrl.u32 %v3747, 16
      %v3992 = vor.u32 %v3990, %v3988
      %v3994 = vshrl.u32 %v3776, 16
      %v3996 = vshll.u32 %v3776, 16
      %v3998 = vrot.slane %v3996, 1
      %v3999 = vor.u32 %v3994, %v3998
      %v4001 = vshll.u32 %v3749, 16
      %v4003 = vrot.slane %v4001, 1
      %v4004 = vsel %vm794, %v3999, %v4003
      %v4005 = vshrl.u32 %v3749, 16
      %v4007 = vor.u32 %v4005, %v4003
      %v4009 = vshrl.u32 %v3777, 16
      %v4011 = vshll.u32 %v3777, 16
      %v4013 = vrot.slane %v4011, 1
      %v4014 = vor.u32 %v4009, %v4013
      %v4016 = vshll.u32 %v3751, 16
      %v4018 = vrot.slane %v4016, 1
      %v4019 = vsel %vm794, %v4014, %v4018
      %v4020 = vshrl.u32 %v3751, 16
      %v4022 = vor.u32 %v4020, %v4018
      %v4024 = vshrl.u32 %v3778, 16
      %v4026 = vshll.u32 %v3778, 16
      %v4028 = vrot.slane %v4026, 1
      %v4029 = vor.u32 %v4024, %v4028
      %v4031 = vshll.u32 %v3753, 16
      %v4033 = vrot.slane %v4031, 1
      %v4034 = vsel %vm794, %v4029, %v4033
      %v4035 = vshrl.u32 %v3753, 16
      %v4037 = vor.u32 %v4035, %v4033
      %v4039 = vshrl.u32 %v3779, 16
      %v4041 = vshll.u32 %v3779, 16
      %v4043 = vrot.slane %v4041, 1
      %v4044 = vor.u32 %v4039, %v4043
      %v4046 = vshll.u32 %v3755, 16
      %v4048 = vrot.slane %v4046, 1
      %v4049 = vsel %vm794, %v4044, %v4048
      %v4050 = vshrl.u32 %v3755, 16
      %v4052 = vor.u32 %v4050, %v4048
      %v4054 = vshrl.u32 %v3780, 16
      %v4056 = vshll.u32 %v3780, 16
      %v4058 = vrot.slane %v4056, 1
      %v4059 = vor.u32 %v4054, %v4058
      %v4061 = vshll.u32 %v3757, 16
      %v4063 = vrot.slane %v4061, 1
      %v4064 = vsel %vm794, %v4059, %v4063
      %v4065 = vshrl.u32 %v3757, 16
      %v4067 = vor.u32 %v4065, %v4063
      %v4069 = vshrl.u32 %v3781, 16
      %v4071 = vshll.u32 %v3781, 16
      %v4073 = vrot.slane %v4071, 1
      %v4074 = vor.u32 %v4069, %v4073
      %v4076 = vshll.u32 %v3759, 16
      %v4078 = vrot.slane %v4076, 1
      %v4079 = vsel %vm794, %v4074, %v4078
      %v4080 = vshrl.u32 %v3759, 16
      %v4082 = vor.u32 %v4080, %v4078
      %v4084 = vshrl.u32 %v3782, 16
      %v4086 = vshll.u32 %v3782, 16
      %v4088 = vrot.slane %v4086, 1
      %v4089 = vor.u32 %v4084, %v4088
      %v4091 = vshll.u32 %v3761, 16
      %v4093 = vrot.slane %v4091, 1
      %v4094 = vsel %vm794, %v4089, %v4093
      %v4095 = vshrl.u32 %v3761, 16
      %v4097 = vor.u32 %v4095, %v4093
      %v4099 = vshrl.u32 %v3783, 16
      %v4101 = vshll.u32 %v3783, 16
      %v4103 = vrot.slane %v4101, 1
      %v4104 = vor.u32 %v4099, %v4103
      %v4106 = vshll.u32 %v3763, 16
      %v4108 = vrot.slane %v4106, 1
      %v4109 = vsel %vm794, %v4104, %v4108
      %v4110 = vshrl.u32 %v3763, 16
      %v4112 = vor.u32 %v4110, %v4108
      %v4114 = vshrl.u32 %v3784, 16
      %v4116 = vshll.u32 %v3784, 16
      %v4118 = vrot.slane %v4116, 1
      %v4119 = vor.u32 %v4114, %v4118
      %v4121 = vshll.u32 %v3765, 16
      %v4123 = vrot.slane %v4121, 1
      %v4124 = vsel %vm794, %v4119, %v4123
      %v4125 = vshrl.u32 %v3765, 16
      %v4127 = vor.u32 %v4125, %v4123
      %v4129 = vshrl.u32 %v3785, 16
      %v4131 = vshll.u32 %v3785, 16
      %v4133 = vrot.slane %v4131, 1
      %v4134 = vor.u32 %v4129, %v4133
      %v4136 = vshll.u32 %v3767, 16
      %v4138 = vrot.slane %v4136, 1
      %v4139 = vsel %vm794, %v4134, %v4138
      %v4140 = vshrl.u32 %v3767, 16
      %v4142 = vor.u32 %v4140, %v4138
      %v4144 = vshrl.u32 %v3786, 16
      %v4146 = vshll.u32 %v3786, 16
      %v4148 = vrot.slane %v4146, 1
      %v4149 = vor.u32 %v4144, %v4148
      %v4151 = vshll.u32 %v3769, 16
      %v4153 = vrot.slane %v4151, 1
      %v4154 = vsel %vm794, %v4149, %v4153
      %v4155 = vshrl.u32 %v3769, 16
      %v4157 = vor.u32 %v4155, %v4153
      %v4159 = vshrl.u32 %v3787, 16
      %v4161 = vshll.u32 %v3787, 16
      %v4163 = vrot.slane %v4161, 1
      %v4164 = vor.u32 %v4159, %v4163
      %v4166 = vshll.u32 %v3771, 16
      %v4168 = vrot.slane %v4166, 1
      %v4169 = vsel %vm794, %v4164, %v4168
      %v4170 = vshrl.u32 %v3771, 16
      %v4172 = vor.u32 %v4170, %v4168
      %4173 = vrot.lane.b32.xlu0 %v3944, 2
      %v4174 = vpop.permute.xlu0 %4173
      %4175 = vrot.lane.b32.xlu0 %v3947, 2
      %v4176 = vpop.permute.xlu0 %4175
      %4177 = vrot.lane.b32.xlu0 %v3959, 2
      %v4178 = vpop.permute.xlu0 %4177
      %4179 = vrot.lane.b32.xlu0 %v3962, 2
      %v4180 = vpop.permute.xlu0 %4179
      %4181 = vrot.lane.b32.xlu0 %v3974, 2
      %v4182 = vpop.permute.xlu0 %4181
      %4183 = vrot.lane.b32.xlu0 %v3977, 2
      %v4184 = vpop.permute.xlu0 %4183
      %4185 = vrot.lane.b32.xlu0 %v3989, 2
      %v4186 = vpop.permute.xlu0 %4185
      %4187 = vrot.lane.b32.xlu0 %v3992, 2
      %v4188 = vpop.permute.xlu0 %4187
      %4189 = vrot.lane.b32.xlu0 %v4004, 2
      %v4190 = vpop.permute.xlu0 %4189
      %4191 = vrot.lane.b32.xlu0 %v4007, 2
      %v4192 = vpop.permute.xlu0 %4191
      %4193 = vrot.lane.b32.xlu0 %v4019, 2
      %v4194 = vpop.permute.xlu0 %4193
      %4195 = vrot.lane.b32.xlu0 %v4022, 2
      %v4196 = vpop.permute.xlu0 %4195
      %4197 = vrot.lane.b32.xlu0 %v4034, 2
      %v4198 = vpop.permute.xlu0 %4197
      %4199 = vrot.lane.b32.xlu0 %v4037, 2
      %v4200 = vpop.permute.xlu0 %4199
      %4201 = vrot.lane.b32.xlu0 %v4049, 2
      %v4202 = vpop.permute.xlu0 %4201
      %4203 = vrot.lane.b32.xlu0 %v4052, 2
      %v4204 = vpop.permute.xlu0 %4203
      %4205 = vrot.lane.b32.xlu0 %v4064, 2
      %v4206 = vpop.permute.xlu0 %4205
      %4207 = vrot.lane.b32.xlu0 %v4067, 2
      %v4208 = vpop.permute.xlu0 %4207
      %4209 = vrot.lane.b32.xlu0 %v4079, 2
      %v4210 = vpop.permute.xlu0 %4209
      %4211 = vrot.lane.b32.xlu0 %v4082, 2
      %v4212 = vpop.permute.xlu0 %4211
      %4213 = vrot.lane.b32.xlu0 %v4094, 2
      %v4214 = vpop.permute.xlu0 %4213
      %4215 = vrot.lane.b32.xlu0 %v4097, 2
      %v4216 = vpop.permute.xlu0 %4215
      %4217 = vrot.lane.b32.xlu0 %v4109, 2
      %v4218 = vpop.permute.xlu0 %4217
      %4219 = vrot.lane.b32.xlu0 %v4112, 2
      %v4220 = vpop.permute.xlu0 %4219
      %4221 = vrot.lane.b32.xlu0 %v4124, 2
      %v4222 = vpop.permute.xlu0 %4221
      %4223 = vrot.lane.b32.xlu0 %v4127, 2
      %v4224 = vpop.permute.xlu0 %4223
      %4225 = vrot.lane.b32.xlu0 %v4139, 2
      %v4226 = vpop.permute.xlu0 %4225
      %4227 = vrot.lane.b32.xlu0 %v4142, 2
      %v4228 = vpop.permute.xlu0 %4227
      %4229 = vrot.lane.b32.xlu0 %v4154, 2
      %v4230 = vpop.permute.xlu0 %4229
      %4231 = vrot.lane.b32.xlu0 %v4157, 2
      %v4232 = vpop.permute.xlu0 %4231
      %4233 = vrot.lane.b32.xlu0 %v4169, 2
      %v4234 = vpop.permute.xlu0 %4233
      %4235 = vrot.lane.b32.xlu0 %v4172, 2
      %v4236 = vpop.permute.xlu0 %4235
      %v4269 = vrot.slane %v3772, 1
      %v4270 = vrot.slane %v3788, 1
      %v4271 = vsel %vm1131, %v4269, %v4270
      %v4272 = vrot.slane %v3773, 1
      %v4273 = vrot.slane %v3789, 1
      %v4274 = vsel %vm1131, %v4272, %v4273
      %v4275 = vrot.slane %v3774, 1
      %v4276 = vrot.slane %v3790, 1
      %v4277 = vsel %vm1131, %v4275, %v4276
      %v4278 = vrot.slane %v3775, 1
      %v4279 = vrot.slane %v3791, 1
      %v4280 = vsel %vm1131, %v4278, %v4279
      %v4281 = vrot.slane %v3776, 1
      %v4282 = vrot.slane %v3792, 1
      %v4283 = vsel %vm1131, %v4281, %v4282
      %v4284 = vrot.slane %v3777, 1
      %v4285 = vrot.slane %v3793, 1
      %v4286 = vsel %vm1131, %v4284, %v4285
      %v4287 = vrot.slane %v3778, 1
      %v4288 = vrot.slane %v3794, 1
      %v4289 = vsel %vm1131, %v4287, %v4288
      %v4290 = vrot.slane %v3779, 1
      %v4291 = vrot.slane %v3795, 1
      %v4292 = vsel %vm1131, %v4290, %v4291
      %v4293 = vrot.slane %v3780, 1
      %v4294 = vrot.slane %v3796, 1
      %v4295 = vsel %vm1131, %v4293, %v4294
      %v4296 = vrot.slane %v3781, 1
      %v4297 = vrot.slane %v3797, 1
      %v4298 = vsel %vm1131, %v4296, %v4297
      %v4299 = vrot.slane %v3782, 1
      %v4300 = vrot.slane %v3798, 1
      %v4301 = vsel %vm1131, %v4299, %v4300
      %v4302 = vrot.slane %v3783, 1
      %v4303 = vrot.slane %v3799, 1
      %v4304 = vsel %vm1131, %v4302, %v4303
      %v4305 = vrot.slane %v3784, 1
      %v4306 = vrot.slane %v3800, 1
      %v4307 = vsel %vm1131, %v4305, %v4306
      %v4308 = vrot.slane %v3785, 1
      %v4309 = vrot.slane %v3801, 1
      %v4310 = vsel %vm1131, %v4308, %v4309
      %v4311 = vrot.slane %v3786, 1
      %v4312 = vrot.slane %v3802, 1
      %v4313 = vsel %vm1131, %v4311, %v4312
      %v4314 = vrot.slane %v3787, 1
      %v4315 = vrot.slane %v3803, 1
      %v4316 = vsel %vm1131, %v4314, %v4315
      %4317 = vrot.lane.b32.xlu0 %v4271, 4
      %v4318 = vpop.permute.xlu0 %4317
      %4319 = vrot.lane.b32.xlu0 %v4270, 4
      %v4320 = vpop.permute.xlu0 %4319
      %4321 = vrot.lane.b32.xlu0 %v4274, 4
      %v4322 = vpop.permute.xlu0 %4321
      %4323 = vrot.lane.b32.xlu0 %v4273, 4
      %v4324 = vpop.permute.xlu0 %4323
      %4325 = vrot.lane.b32.xlu0 %v4277, 4
      %v4326 = vpop.permute.xlu0 %4325
      %4327 = vrot.lane.b32.xlu0 %v4276, 4
      %v4328 = vpop.permute.xlu0 %4327
      %4329 = vrot.lane.b32.xlu0 %v4280, 4
      %v4330 = vpop.permute.xlu0 %4329
      %4331 = vrot.lane.b32.xlu0 %v4279, 4
      %v4332 = vpop.permute.xlu0 %4331
      %4333 = vrot.lane.b32.xlu0 %v4283, 4
      %v4334 = vpop.permute.xlu0 %4333
      %4335 = vrot.lane.b32.xlu0 %v4282, 4
      %v4336 = vpop.permute.xlu0 %4335
      %4337 = vrot.lane.b32.xlu0 %v4286, 4
      %v4338 = vpop.permute.xlu0 %4337
      %4339 = vrot.lane.b32.xlu0 %v4285, 4
      %v4340 = vpop.permute.xlu0 %4339
      %4341 = vrot.lane.b32.xlu0 %v4289, 4
      %v4342 = vpop.permute.xlu0 %4341
      %4343 = vrot.lane.b32.xlu0 %v4288, 4
      %v4344 = vpop.permute.xlu0 %4343
      %4345 = vrot.lane.b32.xlu0 %v4292, 4
      %v4346 = vpop.permute.xlu0 %4345
      %4347 = vrot.lane.b32.xlu0 %v4291, 4
      %v4348 = vpop.permute.xlu0 %4347
      %4349 = vrot.lane.b32.xlu0 %v4295, 4
      %v4350 = vpop.permute.xlu0 %4349
      %4351 = vrot.lane.b32.xlu0 %v4294, 4
      %v4352 = vpop.permute.xlu0 %4351
      %4353 = vrot.lane.b32.xlu0 %v4298, 4
      %v4354 = vpop.permute.xlu0 %4353
      %4355 = vrot.lane.b32.xlu0 %v4297, 4
      %v4356 = vpop.permute.xlu0 %4355
      %4357 = vrot.lane.b32.xlu0 %v4301, 4
      %v4358 = vpop.permute.xlu0 %4357
      %4359 = vrot.lane.b32.xlu0 %v4300, 4
      %v4360 = vpop.permute.xlu0 %4359
      %4361 = vrot.lane.b32.xlu0 %v4304, 4
      %v4362 = vpop.permute.xlu0 %4361
      %4363 = vrot.lane.b32.xlu0 %v4303, 4
      %v4364 = vpop.permute.xlu0 %4363
      %4365 = vrot.lane.b32.xlu0 %v4307, 4
      %v4366 = vpop.permute.xlu0 %4365
      %4367 = vrot.lane.b32.xlu0 %v4306, 4
      %v4368 = vpop.permute.xlu0 %4367
      %4369 = vrot.lane.b32.xlu0 %v4310, 4
      %v4370 = vpop.permute.xlu0 %4369
      %4371 = vrot.lane.b32.xlu0 %v4309, 4
      %v4372 = vpop.permute.xlu0 %4371
      %4373 = vrot.lane.b32.xlu0 %v4313, 4
      %v4374 = vpop.permute.xlu0 %4373
      %4375 = vrot.lane.b32.xlu0 %v4312, 4
      %v4376 = vpop.permute.xlu0 %4375
      %4377 = vrot.lane.b32.xlu0 %v4316, 4
      %v4378 = vpop.permute.xlu0 %4377
      %4379 = vrot.lane.b32.xlu0 %v4315, 4
      %v4380 = vpop.permute.xlu0 %4379
      %4413 = vrot.lane.b32.xlu0 %v3804, 6
      %v4414 = vpop.permute.xlu0 %4413
      %4415 = vrot.lane.b32.xlu0 %v3805, 6
      %v4416 = vpop.permute.xlu0 %4415
      %4417 = vrot.lane.b32.xlu0 %v3806, 6
      %v4418 = vpop.permute.xlu0 %4417
      %4419 = vrot.lane.b32.xlu0 %v3807, 6
      %v4420 = vpop.permute.xlu0 %4419
      %4421 = vrot.lane.b32.xlu0 %v3808, 6
      %v4422 = vpop.permute.xlu0 %4421
      %4423 = vrot.lane.b32.xlu0 %v3809, 6
      %v4424 = vpop.permute.xlu0 %4423
      %4425 = vrot.lane.b32.xlu0 %v3810, 6
      %v4426 = vpop.permute.xlu0 %4425
      %4427 = vrot.lane.b32.xlu0 %v3811, 6
      %v4428 = vpop.permute.xlu0 %4427
      %4429 = vrot.lane.b32.xlu0 %v3812, 6
      %v4430 = vpop.permute.xlu0 %4429
      %4431 = vrot.lane.b32.xlu0 %v3813, 6
      %v4432 = vpop.permute.xlu0 %4431
      %4433 = vrot.lane.b32.xlu0 %v3814, 6
      %v4434 = vpop.permute.xlu0 %4433
      %4435 = vrot.lane.b32.xlu0 %v3815, 6
      %v4436 = vpop.permute.xlu0 %4435
      %4437 = vrot.lane.b32.xlu0 %v3816, 6
      %v4438 = vpop.permute.xlu0 %4437
      %4439 = vrot.lane.b32.xlu0 %v3817, 6
      %v4440 = vpop.permute.xlu0 %4439
      %4441 = vrot.lane.b32.xlu0 %v3818, 6
      %v4442 = vpop.permute.xlu0 %4441
      %4443 = vrot.lane.b32.xlu0 %v3819, 6
      %v4444 = vpop.permute.xlu0 %4443
      %4445 = vrot.lane.b32.xlu0 %v3820, 6
      %v4446 = vpop.permute.xlu0 %4445
      %4447 = vrot.lane.b32.xlu0 %v3821, 6
      %v4448 = vpop.permute.xlu0 %4447
      %4449 = vrot.lane.b32.xlu0 %v3822, 6
      %v4450 = vpop.permute.xlu0 %4449
      %4451 = vrot.lane.b32.xlu0 %v3823, 6
      %v4452 = vpop.permute.xlu0 %4451
      %4453 = vrot.lane.b32.xlu0 %v3824, 6
      %v4454 = vpop.permute.xlu0 %4453
      %4455 = vrot.lane.b32.xlu0 %v3825, 6
      %v4456 = vpop.permute.xlu0 %4455
      %4457 = vrot.lane.b32.xlu0 %v3826, 6
      %v4458 = vpop.permute.xlu0 %4457
      %4459 = vrot.lane.b32.xlu0 %v3827, 6
      %v4460 = vpop.permute.xlu0 %4459
      %4461 = vrot.lane.b32.xlu0 %v3828, 6
      %v4462 = vpop.permute.xlu0 %4461
      %4463 = vrot.lane.b32.xlu0 %v3829, 6
      %v4464 = vpop.permute.xlu0 %4463
      %4465 = vrot.lane.b32.xlu0 %v3830, 6
      %v4466 = vpop.permute.xlu0 %4465
      %4467 = vrot.lane.b32.xlu0 %v3831, 6
      %v4468 = vpop.permute.xlu0 %4467
      %4469 = vrot.lane.b32.xlu0 %v3832, 6
      %v4470 = vpop.permute.xlu0 %4469
      %4471 = vrot.lane.b32.xlu0 %v3833, 6
      %v4472 = vpop.permute.xlu0 %4471
      %4473 = vrot.lane.b32.xlu0 %v3834, 6
      %v4474 = vpop.permute.xlu0 %4473
      %4475 = vrot.lane.b32.xlu0 %v3835, 6
      %v4476 = vpop.permute.xlu0 %4475
      %v4478 = vshrl.u32 %v3836, 16
      %v4480 = vshll.u32 %v3836, 16
      %v4482 = vrot.slane %v4480, 1
      %v4483 = vor.u32 %v4478, %v4482
      %v4485 = vshll.u32 %v3805, 16
      %v4487 = vrot.slane %v4485, 1
      %v4488 = vsel %vm794, %v4483, %v4487
      %v4489 = vshrl.u32 %v3805, 16
      %v4491 = vor.u32 %v4489, %v4487
      %v4493 = vshrl.u32 %v3837, 16
      %v4495 = vshll.u32 %v3837, 16
      %v4497 = vrot.slane %v4495, 1
      %v4498 = vor.u32 %v4493, %v4497
      %v4500 = vshll.u32 %v3807, 16
      %v4502 = vrot.slane %v4500, 1
      %v4503 = vsel %vm794, %v4498, %v4502
      %v4504 = vshrl.u32 %v3807, 16
      %v4506 = vor.u32 %v4504, %v4502
      %v4508 = vshrl.u32 %v3838, 16
      %v4510 = vshll.u32 %v3838, 16
      %v4512 = vrot.slane %v4510, 1
      %v4513 = vor.u32 %v4508, %v4512
      %v4515 = vshll.u32 %v3809, 16
      %v4517 = vrot.slane %v4515, 1
      %v4518 = vsel %vm794, %v4513, %v4517
      %v4519 = vshrl.u32 %v3809, 16
      %v4521 = vor.u32 %v4519, %v4517
      %v4523 = vshrl.u32 %v3839, 16
      %v4525 = vshll.u32 %v3839, 16
      %v4527 = vrot.slane %v4525, 1
      %v4528 = vor.u32 %v4523, %v4527
      %v4530 = vshll.u32 %v3811, 16
      %v4532 = vrot.slane %v4530, 1
      %v4533 = vsel %vm794, %v4528, %v4532
      %v4534 = vshrl.u32 %v3811, 16
      %v4536 = vor.u32 %v4534, %v4532
      %v4538 = vshrl.u32 %v3840, 16
      %v4540 = vshll.u32 %v3840, 16
      %v4542 = vrot.slane %v4540, 1
      %v4543 = vor.u32 %v4538, %v4542
      %v4545 = vshll.u32 %v3813, 16
      %v4547 = vrot.slane %v4545, 1
      %v4548 = vsel %vm794, %v4543, %v4547
      %v4549 = vshrl.u32 %v3813, 16
      %v4551 = vor.u32 %v4549, %v4547
      %v4553 = vshrl.u32 %v3841, 16
      %v4555 = vshll.u32 %v3841, 16
      %v4557 = vrot.slane %v4555, 1
      %v4558 = vor.u32 %v4553, %v4557
      %v4560 = vshll.u32 %v3815, 16
      %v4562 = vrot.slane %v4560, 1
      %v4563 = vsel %vm794, %v4558, %v4562
      %v4564 = vshrl.u32 %v3815, 16
      %v4566 = vor.u32 %v4564, %v4562
      %v4568 = vshrl.u32 %v3842, 16
      %v4570 = vshll.u32 %v3842, 16
      %v4572 = vrot.slane %v4570, 1
      %v4573 = vor.u32 %v4568, %v4572
      %v4575 = vshll.u32 %v3817, 16
      %v4577 = vrot.slane %v4575, 1
      %v4578 = vsel %vm794, %v4573, %v4577
      %v4579 = vshrl.u32 %v3817, 16
      %v4581 = vor.u32 %v4579, %v4577
      %v4583 = vshrl.u32 %v3843, 16
      %v4585 = vshll.u32 %v3843, 16
      %v4587 = vrot.slane %v4585, 1
      %v4588 = vor.u32 %v4583, %v4587
      %v4590 = vshll.u32 %v3819, 16
      %v4592 = vrot.slane %v4590, 1
      %v4593 = vsel %vm794, %v4588, %v4592
      %v4594 = vshrl.u32 %v3819, 16
      %v4596 = vor.u32 %v4594, %v4592
      %v4598 = vshrl.u32 %v3844, 16
      %v4600 = vshll.u32 %v3844, 16
      %v4602 = vrot.slane %v4600, 1
      %v4603 = vor.u32 %v4598, %v4602
      %v4605 = vshll.u32 %v3821, 16
      %v4607 = vrot.slane %v4605, 1
      %v4608 = vsel %vm794, %v4603, %v4607
      %v4609 = vshrl.u32 %v3821, 16
      %v4611 = vor.u32 %v4609, %v4607
      %v4613 = vshrl.u32 %v3845, 16
      %v4615 = vshll.u32 %v3845, 16
      %v4617 = vrot.slane %v4615, 1
      %v4618 = vor.u32 %v4613, %v4617
      %v4620 = vshll.u32 %v3823, 16
      %v4622 = vrot.slane %v4620, 1
      %v4623 = vsel %vm794, %v4618, %v4622
      %v4624 = vshrl.u32 %v3823, 16
      %v4626 = vor.u32 %v4624, %v4622
      %v4628 = vshrl.u32 %v3846, 16
      %v4630 = vshll.u32 %v3846, 16
      %v4632 = vrot.slane %v4630, 1
      %v4633 = vor.u32 %v4628, %v4632
      %v4635 = vshll.u32 %v3825, 16
      %v4637 = vrot.slane %v4635, 1
      %v4638 = vsel %vm794, %v4633, %v4637
      %v4639 = vshrl.u32 %v3825, 16
      %v4641 = vor.u32 %v4639, %v4637
      %v4643 = vshrl.u32 %v3847, 16
      %v4645 = vshll.u32 %v3847, 16
      %v4647 = vrot.slane %v4645, 1
      %v4648 = vor.u32 %v4643, %v4647
      %v4650 = vshll.u32 %v3827, 16
      %v4652 = vrot.slane %v4650, 1
      %v4653 = vsel %vm794, %v4648, %v4652
      %v4654 = vshrl.u32 %v3827, 16
      %v4656 = vor.u32 %v4654, %v4652
      %v4658 = vshrl.u32 %v3848, 16
      %v4660 = vshll.u32 %v3848, 16
      %v4662 = vrot.slane %v4660, 1
      %v4663 = vor.u32 %v4658, %v4662
      %v4665 = vshll.u32 %v3829, 16
      %v4667 = vrot.slane %v4665, 1
      %v4668 = vsel %vm794, %v4663, %v4667
      %v4669 = vshrl.u32 %v3829, 16
      %v4671 = vor.u32 %v4669, %v4667
      %v4673 = vshrl.u32 %v3849, 16
      %v4675 = vshll.u32 %v3849, 16
      %v4677 = vrot.slane %v4675, 1
      %v4678 = vor.u32 %v4673, %v4677
      %v4680 = vshll.u32 %v3831, 16
      %v4682 = vrot.slane %v4680, 1
      %v4683 = vsel %vm794, %v4678, %v4682
      %v4684 = vshrl.u32 %v3831, 16
      %v4686 = vor.u32 %v4684, %v4682
      %v4688 = vshrl.u32 %v3850, 16
      %v4690 = vshll.u32 %v3850, 16
      %v4692 = vrot.slane %v4690, 1
      %v4693 = vor.u32 %v4688, %v4692
      %v4695 = vshll.u32 %v3833, 16
      %v4697 = vrot.slane %v4695, 1
      %v4698 = vsel %vm794, %v4693, %v4697
      %v4699 = vshrl.u32 %v3833, 16
      %v4701 = vor.u32 %v4699, %v4697
      %v4703 = vshrl.u32 %v3851, 16
      %v4705 = vshll.u32 %v3851, 16
      %v4707 = vrot.slane %v4705, 1
      %v4708 = vor.u32 %v4703, %v4707
      %v4710 = vshll.u32 %v3835, 16
      %v4712 = vrot.slane %v4710, 1
      %v4713 = vsel %vm794, %v4708, %v4712
      %v4714 = vshrl.u32 %v3835, 16
      %v4716 = vor.u32 %v4714, %v4712
      %4717 = vrot.lane.b32.xlu0 %v4488, 8
      %v4718 = vpop.permute.xlu0 %4717
      %4719 = vrot.lane.b32.xlu0 %v4491, 8
      %v4720 = vpop.permute.xlu0 %4719
      %4721 = vrot.lane.b32.xlu0 %v4503, 8
      %v4722 = vpop.permute.xlu0 %4721
      %4723 = vrot.lane.b32.xlu0 %v4506, 8
      %v4724 = vpop.permute.xlu0 %4723
      %4725 = vrot.lane.b32.xlu0 %v4518, 8
      %v4726 = vpop.permute.xlu0 %4725
      %4727 = vrot.lane.b32.xlu0 %v4521, 8
      %v4728 = vpop.permute.xlu0 %4727
      %4729 = vrot.lane.b32.xlu0 %v4533, 8
      %v4730 = vpop.permute.xlu0 %4729
      %4731 = vrot.lane.b32.xlu0 %v4536, 8
      %v4732 = vpop.permute.xlu0 %4731
      %4733 = vrot.lane.b32.xlu0 %v4548, 8
      %v4734 = vpop.permute.xlu0 %4733
      %4735 = vrot.lane.b32.xlu0 %v4551, 8
      %v4736 = vpop.permute.xlu0 %4735
      %4737 = vrot.lane.b32.xlu0 %v4563, 8
      %v4738 = vpop.permute.xlu0 %4737
      %4739 = vrot.lane.b32.xlu0 %v4566, 8
      %v4740 = vpop.permute.xlu0 %4739
      %4741 = vrot.lane.b32.xlu0 %v4578, 8
      %v4742 = vpop.permute.xlu0 %4741
      %4743 = vrot.lane.b32.xlu0 %v4581, 8
      %v4744 = vpop.permute.xlu0 %4743
      %4745 = vrot.lane.b32.xlu0 %v4593, 8
      %v4746 = vpop.permute.xlu0 %4745
      %4747 = vrot.lane.b32.xlu0 %v4596, 8
      %v4748 = vpop.permute.xlu0 %4747
      %4749 = vrot.lane.b32.xlu0 %v4608, 8
      %v4750 = vpop.permute.xlu0 %4749
      %4751 = vrot.lane.b32.xlu0 %v4611, 8
      %v4752 = vpop.permute.xlu0 %4751
      %4753 = vrot.lane.b32.xlu0 %v4623, 8
      %v4754 = vpop.permute.xlu0 %4753
      %4755 = vrot.lane.b32.xlu0 %v4626, 8
      %v4756 = vpop.permute.xlu0 %4755
      %4757 = vrot.lane.b32.xlu0 %v4638, 8
      %v4758 = vpop.permute.xlu0 %4757
      %4759 = vrot.lane.b32.xlu0 %v4641, 8
      %v4760 = vpop.permute.xlu0 %4759
      %4761 = vrot.lane.b32.xlu0 %v4653, 8
      %v4762 = vpop.permute.xlu0 %4761
      %4763 = vrot.lane.b32.xlu0 %v4656, 8
      %v4764 = vpop.permute.xlu0 %4763
      %4765 = vrot.lane.b32.xlu0 %v4668, 8
      %v4766 = vpop.permute.xlu0 %4765
      %4767 = vrot.lane.b32.xlu0 %v4671, 8
      %v4768 = vpop.permute.xlu0 %4767
      %4769 = vrot.lane.b32.xlu0 %v4683, 8
      %v4770 = vpop.permute.xlu0 %4769
      %4771 = vrot.lane.b32.xlu0 %v4686, 8
      %v4772 = vpop.permute.xlu0 %4771
      %4773 = vrot.lane.b32.xlu0 %v4698, 8
      %v4774 = vpop.permute.xlu0 %4773
      %4775 = vrot.lane.b32.xlu0 %v4701, 8
      %v4776 = vpop.permute.xlu0 %4775
      %4777 = vrot.lane.b32.xlu0 %v4713, 8
      %v4778 = vpop.permute.xlu0 %4777
      %4779 = vrot.lane.b32.xlu0 %v4716, 8
      %v4780 = vpop.permute.xlu0 %4779
      %v4813 = vrot.slane %v3836, 1
      %v4814 = vrot.slane %v3852, 1
      %v4815 = vsel %vm1131, %v4813, %v4814
      %v4816 = vrot.slane %v3837, 1
      %v4817 = vrot.slane %v3853, 1
      %v4818 = vsel %vm1131, %v4816, %v4817
      %v4819 = vrot.slane %v3838, 1
      %v4820 = vrot.slane %v3854, 1
      %v4821 = vsel %vm1131, %v4819, %v4820
      %v4822 = vrot.slane %v3839, 1
      %v4823 = vrot.slane %v3855, 1
      %v4824 = vsel %vm1131, %v4822, %v4823
      %v4825 = vrot.slane %v3840, 1
      %v4826 = vrot.slane %v3856, 1
      %v4827 = vsel %vm1131, %v4825, %v4826
      %v4828 = vrot.slane %v3841, 1
      %v4829 = vrot.slane %v3857, 1
      %v4830 = vsel %vm1131, %v4828, %v4829
      %v4831 = vrot.slane %v3842, 1
      %v4832 = vrot.slane %v3858, 1
      %v4833 = vsel %vm1131, %v4831, %v4832
      %v4834 = vrot.slane %v3843, 1
      %v4835 = vrot.slane %v3859, 1
      %v4836 = vsel %vm1131, %v4834, %v4835
      %v4837 = vrot.slane %v3844, 1
      %v4838 = vrot.slane %v3860, 1
      %v4839 = vsel %vm1131, %v4837, %v4838
      %v4840 = vrot.slane %v3845, 1
      %v4841 = vrot.slane %v3861, 1
      %v4842 = vsel %vm1131, %v4840, %v4841
      %v4843 = vrot.slane %v3846, 1
      %v4844 = vrot.slane %v3862, 1
      %v4845 = vsel %vm1131, %v4843, %v4844
      %v4846 = vrot.slane %v3847, 1
      %v4847 = vrot.slane %v3863, 1
      %v4848 = vsel %vm1131, %v4846, %v4847
      %v4849 = vrot.slane %v3848, 1
      %v4850 = vrot.slane %v3864, 1
      %v4851 = vsel %vm1131, %v4849, %v4850
      %v4852 = vrot.slane %v3849, 1
      %v4853 = vrot.slane %v3865, 1
      %v4854 = vsel %vm1131, %v4852, %v4853
      %v4855 = vrot.slane %v3850, 1
      %v4856 = vrot.slane %v3866, 1
      %v4857 = vsel %vm1131, %v4855, %v4856
      %v4858 = vrot.slane %v3851, 1
      %v4859 = vrot.slane %v3867, 1
      %v4860 = vsel %vm1131, %v4858, %v4859
      %4861 = vrot.lane.b32.xlu0 %v4815, 10
      %v4862 = vpop.permute.xlu0 %4861
      %4863 = vrot.lane.b32.xlu0 %v4814, 10
      %v4864 = vpop.permute.xlu0 %4863
      %4865 = vrot.lane.b32.xlu0 %v4818, 10
      %v4866 = vpop.permute.xlu0 %4865
      %4867 = vrot.lane.b32.xlu0 %v4817, 10
      %v4868 = vpop.permute.xlu0 %4867
      %4869 = vrot.lane.b32.xlu0 %v4821, 10
      %v4870 = vpop.permute.xlu0 %4869
      %4871 = vrot.lane.b32.xlu0 %v4820, 10
      %v4872 = vpop.permute.xlu0 %4871
      %4873 = vrot.lane.b32.xlu0 %v4824, 10
      %v4874 = vpop.permute.xlu0 %4873
      %4875 = vrot.lane.b32.xlu0 %v4823, 10
      %v4876 = vpop.permute.xlu0 %4875
      %4877 = vrot.lane.b32.xlu0 %v4827, 10
      %v4878 = vpop.permute.xlu0 %4877
      %4879 = vrot.lane.b32.xlu0 %v4826, 10
      %v4880 = vpop.permute.xlu0 %4879
      %4881 = vrot.lane.b32.xlu0 %v4830, 10
      %v4882 = vpop.permute.xlu0 %4881
      %4883 = vrot.lane.b32.xlu0 %v4829, 10
      %v4884 = vpop.permute.xlu0 %4883
      %4885 = vrot.lane.b32.xlu0 %v4833, 10
      %v4886 = vpop.permute.xlu0 %4885
      %4887 = vrot.lane.b32.xlu0 %v4832, 10
      %v4888 = vpop.permute.xlu0 %4887
      %4889 = vrot.lane.b32.xlu0 %v4836, 10
      %v4890 = vpop.permute.xlu0 %4889
      %4891 = vrot.lane.b32.xlu0 %v4835, 10
      %v4892 = vpop.permute.xlu0 %4891
      %4893 = vrot.lane.b32.xlu0 %v4839, 10
      %v4894 = vpop.permute.xlu0 %4893
      %4895 = vrot.lane.b32.xlu0 %v4838, 10
      %v4896 = vpop.permute.xlu0 %4895
      %4897 = vrot.lane.b32.xlu0 %v4842, 10
      %v4898 = vpop.permute.xlu0 %4897
      %4899 = vrot.lane.b32.xlu0 %v4841, 10
      %v4900 = vpop.permute.xlu0 %4899
      %4901 = vrot.lane.b32.xlu0 %v4845, 10
      %v4902 = vpop.permute.xlu0 %4901
      %4903 = vrot.lane.b32.xlu0 %v4844, 10
      %v4904 = vpop.permute.xlu0 %4903
      %4905 = vrot.lane.b32.xlu0 %v4848, 10
      %v4906 = vpop.permute.xlu0 %4905
      %4907 = vrot.lane.b32.xlu0 %v4847, 10
      %v4908 = vpop.permute.xlu0 %4907
      %4909 = vrot.lane.b32.xlu0 %v4851, 10
      %v4910 = vpop.permute.xlu0 %4909
      %4911 = vrot.lane.b32.xlu0 %v4850, 10
      %v4912 = vpop.permute.xlu0 %4911
      %4913 = vrot.lane.b32.xlu0 %v4854, 10
      %v4914 = vpop.permute.xlu0 %4913
      %4915 = vrot.lane.b32.xlu0 %v4853, 10
      %v4916 = vpop.permute.xlu0 %4915
      %4917 = vrot.lane.b32.xlu0 %v4857, 10
      %v4918 = vpop.permute.xlu0 %4917
      %4919 = vrot.lane.b32.xlu0 %v4856, 10
      %v4920 = vpop.permute.xlu0 %4919
      %4921 = vrot.lane.b32.xlu0 %v4860, 10
      %v4922 = vpop.permute.xlu0 %4921
      %4923 = vrot.lane.b32.xlu0 %v4859, 10
      %v4924 = vpop.permute.xlu0 %4923
      %4957 = vrot.lane.b32.xlu0 %v3869, 12
      %v4958 = vpop.permute.xlu0 %4957
      %4959 = vrot.lane.b32.xlu0 %v3870, 12
      %v4960 = vpop.permute.xlu0 %4959
      %4961 = vrot.lane.b32.xlu0 %v3871, 12
      %v4962 = vpop.permute.xlu0 %4961
      %4963 = vrot.lane.b32.xlu0 %v3872, 12
      %v4964 = vpop.permute.xlu0 %4963
      %4965 = vrot.lane.b32.xlu0 %v3873, 12
      %v4966 = vpop.permute.xlu0 %4965
      %4967 = vrot.lane.b32.xlu0 %v3874, 12
      %v4968 = vpop.permute.xlu0 %4967
      %4969 = vrot.lane.b32.xlu0 %v3875, 12
      %v4970 = vpop.permute.xlu0 %4969
      %4971 = vrot.lane.b32.xlu0 %v3876, 12
      %v4972 = vpop.permute.xlu0 %4971
      %4973 = vrot.lane.b32.xlu0 %v3877, 12
      %v4974 = vpop.permute.xlu0 %4973
      %4975 = vrot.lane.b32.xlu0 %v3878, 12
      %v4976 = vpop.permute.xlu0 %4975
      %4977 = vrot.lane.b32.xlu0 %v3879, 12
      %v4978 = vpop.permute.xlu0 %4977
      %4979 = vrot.lane.b32.xlu0 %v3880, 12
      %v4980 = vpop.permute.xlu0 %4979
      %4981 = vrot.lane.b32.xlu0 %v3881, 12
      %v4982 = vpop.permute.xlu0 %4981
      %4983 = vrot.lane.b32.xlu0 %v3882, 12
      %v4984 = vpop.permute.xlu0 %4983
      %4985 = vrot.lane.b32.xlu0 %v3883, 12
      %v4986 = vpop.permute.xlu0 %4985
      %4987 = vrot.lane.b32.xlu0 %v3884, 12
      %v4988 = vpop.permute.xlu0 %4987
      %4989 = vrot.lane.b32.xlu0 %v3885, 12
      %v4990 = vpop.permute.xlu0 %4989
      %4991 = vrot.lane.b32.xlu0 %v3886, 12
      %v4992 = vpop.permute.xlu0 %4991
      %4993 = vrot.lane.b32.xlu0 %v3887, 12
      %v4994 = vpop.permute.xlu0 %4993
      %4995 = vrot.lane.b32.xlu0 %v3888, 12
      %v4996 = vpop.permute.xlu0 %4995
      %4997 = vrot.lane.b32.xlu0 %v3889, 12
      %v4998 = vpop.permute.xlu0 %4997
      %4999 = vrot.lane.b32.xlu0 %v3890, 12
      %v5000 = vpop.permute.xlu0 %4999
      %5001 = vrot.lane.b32.xlu0 %v3891, 12
      %v5002 = vpop.permute.xlu0 %5001
      %5003 = vrot.lane.b32.xlu0 %v3892, 12
      %v5004 = vpop.permute.xlu0 %5003
      %5005 = vrot.lane.b32.xlu0 %v3893, 12
      %v5006 = vpop.permute.xlu0 %5005
      %5007 = vrot.lane.b32.xlu0 %v3894, 12
      %v5008 = vpop.permute.xlu0 %5007
      %5009 = vrot.lane.b32.xlu0 %v3895, 12
      %v5010 = vpop.permute.xlu0 %5009
      %5011 = vrot.lane.b32.xlu0 %v3896, 12
      %v5012 = vpop.permute.xlu0 %5011
      %5013 = vrot.lane.b32.xlu0 %v3897, 12
      %v5014 = vpop.permute.xlu0 %5013
      %5015 = vrot.lane.b32.xlu0 %v3898, 12
      %v5016 = vpop.permute.xlu0 %5015
      %5017 = vrot.lane.b32.xlu0 %v3899, 12
      %v5018 = vpop.permute.xlu0 %5017
      %5019 = vrot.lane.b32.xlu0 %v3900, 12
      %v5020 = vpop.permute.xlu0 %5019
      %v5022 = vshrl.u32 %v3901, 16
      %v5024 = vshll.u32 %v3901, 16
      %v5026 = vrot.slane %v5024, 1
      %v5027 = vor.u32 %v5022, %v5026
      %v5029 = vshll.u32 %v3870, 16
      %v5031 = vrot.slane %v5029, 1
      %v5032 = vsel %vm794, %v5027, %v5031
      %v5033 = vshrl.u32 %v3870, 16
      %v5035 = vor.u32 %v5033, %v5031
      %v5037 = vshrl.u32 %v3902, 16
      %v5039 = vshll.u32 %v3902, 16
      %v5041 = vrot.slane %v5039, 1
      %v5042 = vor.u32 %v5037, %v5041
      %v5044 = vshll.u32 %v3872, 16
      %v5046 = vrot.slane %v5044, 1
      %v5047 = vsel %vm794, %v5042, %v5046
      %v5048 = vshrl.u32 %v3872, 16
      %v5050 = vor.u32 %v5048, %v5046
      %v5052 = vshrl.u32 %v3903, 16
      %v5054 = vshll.u32 %v3903, 16
      %v5056 = vrot.slane %v5054, 1
      %v5057 = vor.u32 %v5052, %v5056
      %v5059 = vshll.u32 %v3874, 16
      %v5061 = vrot.slane %v5059, 1
      %v5062 = vsel %vm794, %v5057, %v5061
      %v5063 = vshrl.u32 %v3874, 16
      %v5065 = vor.u32 %v5063, %v5061
      %v5067 = vshrl.u32 %v3904, 16
      %v5069 = vshll.u32 %v3904, 16
      %v5071 = vrot.slane %v5069, 1
      %v5072 = vor.u32 %v5067, %v5071
      %v5074 = vshll.u32 %v3876, 16
      %v5076 = vrot.slane %v5074, 1
      %v5077 = vsel %vm794, %v5072, %v5076
      %v5078 = vshrl.u32 %v3876, 16
      %v5080 = vor.u32 %v5078, %v5076
      %v5082 = vshrl.u32 %v3905, 16
      %v5084 = vshll.u32 %v3905, 16
      %v5086 = vrot.slane %v5084, 1
      %v5087 = vor.u32 %v5082, %v5086
      %v5089 = vshll.u32 %v3878, 16
      %v5091 = vrot.slane %v5089, 1
      %v5092 = vsel %vm794, %v5087, %v5091
      %v5093 = vshrl.u32 %v3878, 16
      %v5095 = vor.u32 %v5093, %v5091
      %v5097 = vshrl.u32 %v3906, 16
      %v5099 = vshll.u32 %v3906, 16
      %v5101 = vrot.slane %v5099, 1
      %v5102 = vor.u32 %v5097, %v5101
      %v5104 = vshll.u32 %v3880, 16
      %v5106 = vrot.slane %v5104, 1
      %v5107 = vsel %vm794, %v5102, %v5106
      %v5108 = vshrl.u32 %v3880, 16
      %v5110 = vor.u32 %v5108, %v5106
      %v5112 = vshrl.u32 %v3907, 16
      %v5114 = vshll.u32 %v3907, 16
      %v5116 = vrot.slane %v5114, 1
      %v5117 = vor.u32 %v5112, %v5116
      %v5119 = vshll.u32 %v3882, 16
      %v5121 = vrot.slane %v5119, 1
      %v5122 = vsel %vm794, %v5117, %v5121
      %v5123 = vshrl.u32 %v3882, 16
      %v5125 = vor.u32 %v5123, %v5121
      %v5127 = vshrl.u32 %v3908, 16
      %v5129 = vshll.u32 %v3908, 16
      %v5131 = vrot.slane %v5129, 1
      %v5132 = vor.u32 %v5127, %v5131
      %v5134 = vshll.u32 %v3884, 16
      %v5136 = vrot.slane %v5134, 1
      %v5137 = vsel %vm794, %v5132, %v5136
      %v5138 = vshrl.u32 %v3884, 16
      %v5140 = vor.u32 %v5138, %v5136
      %v5142 = vshrl.u32 %v3909, 16
      %v5144 = vshll.u32 %v3909, 16
      %v5146 = vrot.slane %v5144, 1
      %v5147 = vor.u32 %v5142, %v5146
      %v5149 = vshll.u32 %v3886, 16
      %v5151 = vrot.slane %v5149, 1
      %v5152 = vsel %vm794, %v5147, %v5151
      %v5153 = vshrl.u32 %v3886, 16
      %v5155 = vor.u32 %v5153, %v5151
      %v5157 = vshrl.u32 %v3910, 16
      %v5159 = vshll.u32 %v3910, 16
      %v5161 = vrot.slane %v5159, 1
      %v5162 = vor.u32 %v5157, %v5161
      %v5164 = vshll.u32 %v3888, 16
      %v5166 = vrot.slane %v5164, 1
      %v5167 = vsel %vm794, %v5162, %v5166
      %v5168 = vshrl.u32 %v3888, 16
      %v5170 = vor.u32 %v5168, %v5166
      %v5172 = vshrl.u32 %v3911, 16
      %v5174 = vshll.u32 %v3911, 16
      %v5176 = vrot.slane %v5174, 1
      %v5177 = vor.u32 %v5172, %v5176
      %v5179 = vshll.u32 %v3890, 16
      %v5181 = vrot.slane %v5179, 1
      %v5182 = vsel %vm794, %v5177, %v5181
      %v5183 = vshrl.u32 %v3890, 16
      %v5185 = vor.u32 %v5183, %v5181
      %v5187 = vshrl.u32 %v3912, 16
      %v5189 = vshll.u32 %v3912, 16
      %v5191 = vrot.slane %v5189, 1
      %v5192 = vor.u32 %v5187, %v5191
      %v5194 = vshll.u32 %v3892, 16
      %v5196 = vrot.slane %v5194, 1
      %v5197 = vsel %vm794, %v5192, %v5196
      %v5198 = vshrl.u32 %v3892, 16
      %v5200 = vor.u32 %v5198, %v5196
      %v5202 = vshrl.u32 %v3913, 16
      %v5204 = vshll.u32 %v3913, 16
      %v5206 = vrot.slane %v5204, 1
      %v5207 = vor.u32 %v5202, %v5206
      %v5209 = vshll.u32 %v3894, 16
      %v5211 = vrot.slane %v5209, 1
      %v5212 = vsel %vm794, %v5207, %v5211
      %v5213 = vshrl.u32 %v3894, 16
      %v5215 = vor.u32 %v5213, %v5211
      %v5217 = vshrl.u32 %v3914, 16
      %v5219 = vshll.u32 %v3914, 16
      %v5221 = vrot.slane %v5219, 1
      %v5222 = vor.u32 %v5217, %v5221
      %v5224 = vshll.u32 %v3896, 16
      %v5226 = vrot.slane %v5224, 1
      %v5227 = vsel %vm794, %v5222, %v5226
      %v5228 = vshrl.u32 %v3896, 16
      %v5230 = vor.u32 %v5228, %v5226
      %v5232 = vshrl.u32 %v3915, 16
      %v5234 = vshll.u32 %v3915, 16
      %v5236 = vrot.slane %v5234, 1
      %v5237 = vor.u32 %v5232, %v5236
      %v5239 = vshll.u32 %v3898, 16
      %v5241 = vrot.slane %v5239, 1
      %v5242 = vsel %vm794, %v5237, %v5241
      %v5243 = vshrl.u32 %v3898, 16
      %v5245 = vor.u32 %v5243, %v5241
      %v5247 = vshrl.u32 %v3916, 16
      %v5249 = vshll.u32 %v3916, 16
      %v5251 = vrot.slane %v5249, 1
      %v5252 = vor.u32 %v5247, %v5251
      %v5254 = vshll.u32 %v3900, 16
      %v5256 = vrot.slane %v5254, 1
      %v5257 = vsel %vm794, %v5252, %v5256
      %v5258 = vshrl.u32 %v3900, 16
      %v5260 = vor.u32 %v5258, %v5256
      %5261 = vrot.lane.b32.xlu0 %v5032, 14
      %v5262 = vpop.permute.xlu0 %5261
      %5263 = vrot.lane.b32.xlu0 %v5035, 14
      %v5264 = vpop.permute.xlu0 %5263
      %5265 = vrot.lane.b32.xlu0 %v5047, 14
      %v5266 = vpop.permute.xlu0 %5265
      %5267 = vrot.lane.b32.xlu0 %v5050, 14
      %v5268 = vpop.permute.xlu0 %5267
      %5269 = vrot.lane.b32.xlu0 %v5062, 14
      %v5270 = vpop.permute.xlu0 %5269
      %5271 = vrot.lane.b32.xlu0 %v5065, 14
      %v5272 = vpop.permute.xlu0 %5271
      %5273 = vrot.lane.b32.xlu0 %v5077, 14
      %v5274 = vpop.permute.xlu0 %5273
      %5275 = vrot.lane.b32.xlu0 %v5080, 14
      %v5276 = vpop.permute.xlu0 %5275
      %5277 = vrot.lane.b32.xlu0 %v5092, 14
      %v5278 = vpop.permute.xlu0 %5277
      %5279 = vrot.lane.b32.xlu0 %v5095, 14
      %v5280 = vpop.permute.xlu0 %5279
      %5281 = vrot.lane.b32.xlu0 %v5107, 14
      %v5282 = vpop.permute.xlu0 %5281
      %5283 = vrot.lane.b32.xlu0 %v5110, 14
      %v5284 = vpop.permute.xlu0 %5283
      %5285 = vrot.lane.b32.xlu0 %v5122, 14
      %v5286 = vpop.permute.xlu0 %5285
      %5287 = vrot.lane.b32.xlu0 %v5125, 14
      %v5288 = vpop.permute.xlu0 %5287
      %5289 = vrot.lane.b32.xlu0 %v5137, 14
      %v5290 = vpop.permute.xlu0 %5289
      %5291 = vrot.lane.b32.xlu0 %v5140, 14
      %v5292 = vpop.permute.xlu0 %5291
      %5293 = vrot.lane.b32.xlu0 %v5152, 14
      %v5294 = vpop.permute.xlu0 %5293
      %5295 = vrot.lane.b32.xlu0 %v5155, 14
      %v5296 = vpop.permute.xlu0 %5295
      %5297 = vrot.lane.b32.xlu0 %v5167, 14
      %v5298 = vpop.permute.xlu0 %5297
      %5299 = vrot.lane.b32.xlu0 %v5170, 14
      %v5300 = vpop.permute.xlu0 %5299
      %5301 = vrot.lane.b32.xlu0 %v5182, 14
      %v5302 = vpop.permute.xlu0 %5301
      %5303 = vrot.lane.b32.xlu0 %v5185, 14
      %v5304 = vpop.permute.xlu0 %5303
      %5305 = vrot.lane.b32.xlu0 %v5197, 14
      %v5306 = vpop.permute.xlu0 %5305
      %5307 = vrot.lane.b32.xlu0 %v5200, 14
      %v5308 = vpop.permute.xlu0 %5307
      %5309 = vrot.lane.b32.xlu0 %v5212, 14
      %v5310 = vpop.permute.xlu0 %5309
      %5311 = vrot.lane.b32.xlu0 %v5215, 14
      %v5312 = vpop.permute.xlu0 %5311
      %5313 = vrot.lane.b32.xlu0 %v5227, 14
      %v5314 = vpop.permute.xlu0 %5313
      %5315 = vrot.lane.b32.xlu0 %v5230, 14
      %v5316 = vpop.permute.xlu0 %5315
      %5317 = vrot.lane.b32.xlu0 %v5242, 14
      %v5318 = vpop.permute.xlu0 %5317
      %5319 = vrot.lane.b32.xlu0 %v5245, 14
      %v5320 = vpop.permute.xlu0 %5319
      %5321 = vrot.lane.b32.xlu0 %v5257, 14
      %v5322 = vpop.permute.xlu0 %5321
      %5323 = vrot.lane.b32.xlu0 %v5260, 14
      %v5324 = vpop.permute.xlu0 %5323
      %v5357 = vrot.slane %v3901, 1
      %v5358 = vrot.slane %v3917, 1
      %v5359 = vsel %vm1131, %v5357, %v5358
      %v5360 = vrot.slane %v3902, 1
      %v5361 = vrot.slane %v3918, 1
      %v5362 = vsel %vm1131, %v5360, %v5361
      %v5363 = vrot.slane %v3903, 1
      %v5364 = vrot.slane %v3919, 1
      %v5365 = vsel %vm1131, %v5363, %v5364
      %v5366 = vrot.slane %v3904, 1
      %v5367 = vrot.slane %v3920, 1
      %v5368 = vsel %vm1131, %v5366, %v5367
      %v5369 = vrot.slane %v3905, 1
      %v5370 = vrot.slane %v3921, 1
      %v5371 = vsel %vm1131, %v5369, %v5370
      %v5372 = vrot.slane %v3906, 1
      %v5373 = vrot.slane %v3922, 1
      %v5374 = vsel %vm1131, %v5372, %v5373
      %v5375 = vrot.slane %v3907, 1
      %v5376 = vrot.slane %v3923, 1
      %v5377 = vsel %vm1131, %v5375, %v5376
      %v5378 = vrot.slane %v3908, 1
      %v5379 = vrot.slane %v3924, 1
      %v5380 = vsel %vm1131, %v5378, %v5379
      %v5381 = vrot.slane %v3909, 1
      %v5382 = vrot.slane %v3925, 1
      %v5383 = vsel %vm1131, %v5381, %v5382
      %v5384 = vrot.slane %v3910, 1
      %v5385 = vrot.slane %v3926, 1
      %v5386 = vsel %vm1131, %v5384, %v5385
      %v5387 = vrot.slane %v3911, 1
      %v5388 = vrot.slane %v3927, 1
      %v5389 = vsel %vm1131, %v5387, %v5388
      %v5390 = vrot.slane %v3912, 1
      %v5391 = vrot.slane %v3928, 1
      %v5392 = vsel %vm1131, %v5390, %v5391
      %v5393 = vrot.slane %v3913, 1
      %v5394 = vrot.slane %v3929, 1
      %v5395 = vsel %vm1131, %v5393, %v5394
      %v5396 = vrot.slane %v3914, 1
      %v5397 = vrot.slane %v3930, 1
      %v5398 = vsel %vm1131, %v5396, %v5397
      %v5399 = vrot.slane %v3915, 1
      %v5400 = vrot.slane %v3931, 1
      %v5401 = vsel %vm1131, %v5399, %v5400
      %v5402 = vrot.slane %v3916, 1
      %v5403 = vrot.slane %v3932, 1
      %v5404 = vsel %vm1131, %v5402, %v5403
      %5405 = vrot.lane.b32.xlu0 %v5359, 16
      %v5406 = vpop.permute.xlu0 %5405
      %5407 = vrot.lane.b32.xlu0 %v5358, 16
      %v5408 = vpop.permute.xlu0 %5407
      %5409 = vrot.lane.b32.xlu0 %v5362, 16
      %v5410 = vpop.permute.xlu0 %5409
      %5411 = vrot.lane.b32.xlu0 %v5361, 16
      %v5412 = vpop.permute.xlu0 %5411
      %5413 = vrot.lane.b32.xlu0 %v5365, 16
      %v5414 = vpop.permute.xlu0 %5413
      %5415 = vrot.lane.b32.xlu0 %v5364, 16
      %v5416 = vpop.permute.xlu0 %5415
      %5417 = vrot.lane.b32.xlu0 %v5368, 16
      %v5418 = vpop.permute.xlu0 %5417
      %5419 = vrot.lane.b32.xlu0 %v5367, 16
      %v5420 = vpop.permute.xlu0 %5419
      %5421 = vrot.lane.b32.xlu0 %v5371, 16
      %v5422 = vpop.permute.xlu0 %5421
      %5423 = vrot.lane.b32.xlu0 %v5370, 16
      %v5424 = vpop.permute.xlu0 %5423
      %5425 = vrot.lane.b32.xlu0 %v5374, 16
      %v5426 = vpop.permute.xlu0 %5425
      %5427 = vrot.lane.b32.xlu0 %v5373, 16
      %v5428 = vpop.permute.xlu0 %5427
      %5429 = vrot.lane.b32.xlu0 %v5377, 16
      %v5430 = vpop.permute.xlu0 %5429
      %5431 = vrot.lane.b32.xlu0 %v5376, 16
      %v5432 = vpop.permute.xlu0 %5431
      %5433 = vrot.lane.b32.xlu0 %v5380, 16
      %v5434 = vpop.permute.xlu0 %5433
      %5435 = vrot.lane.b32.xlu0 %v5379, 16
      %v5436 = vpop.permute.xlu0 %5435
      %5437 = vrot.lane.b32.xlu0 %v5383, 16
      %v5438 = vpop.permute.xlu0 %5437
      %5439 = vrot.lane.b32.xlu0 %v5382, 16
      %v5440 = vpop.permute.xlu0 %5439
      %5441 = vrot.lane.b32.xlu0 %v5386, 16
      %v5442 = vpop.permute.xlu0 %5441
      %5443 = vrot.lane.b32.xlu0 %v5385, 16
      %v5444 = vpop.permute.xlu0 %5443
      %5445 = vrot.lane.b32.xlu0 %v5389, 16
      %v5446 = vpop.permute.xlu0 %5445
      %5447 = vrot.lane.b32.xlu0 %v5388, 16
      %v5448 = vpop.permute.xlu0 %5447
      %5449 = vrot.lane.b32.xlu0 %v5392, 16
      %v5450 = vpop.permute.xlu0 %5449
      %5451 = vrot.lane.b32.xlu0 %v5391, 16
      %v5452 = vpop.permute.xlu0 %5451
      %5453 = vrot.lane.b32.xlu0 %v5395, 16
      %v5454 = vpop.permute.xlu0 %5453
      %5455 = vrot.lane.b32.xlu0 %v5394, 16
      %v5456 = vpop.permute.xlu0 %5455
      %5457 = vrot.lane.b32.xlu0 %v5398, 16
      %v5458 = vpop.permute.xlu0 %5457
      %5459 = vrot.lane.b32.xlu0 %v5397, 16
      %v5460 = vpop.permute.xlu0 %5459
      %5461 = vrot.lane.b32.xlu0 %v5401, 16
      %v5462 = vpop.permute.xlu0 %5461
      %5463 = vrot.lane.b32.xlu0 %v5400, 16
      %v5464 = vpop.permute.xlu0 %5463
      %5465 = vrot.lane.b32.xlu0 %v5404, 16
      %v5466 = vpop.permute.xlu0 %5465
      %5467 = vrot.lane.b32.xlu0 %v5403, 16
      %v5468 = vpop.permute.xlu0 %5467
      %v5471 = vsel %vm368, %v3740, %v4174
      %v5473 = vsel %vm368, %v3741, %v4176
      %v5476 = vsel %vm368, %v3742, %v4178
      %v5478 = vsel %vm368, %v3743, %v4180
      %v5481 = vsel %vm368, %v3744, %v4182
      %v5483 = vsel %vm368, %v3745, %v4184
      %v5486 = vsel %vm368, %v3746, %v4186
      %v5488 = vsel %vm368, %v3747, %v4188
      %v5491 = vsel %vm368, %v3748, %v4190
      %v5493 = vsel %vm368, %v3749, %v4192
      %v5496 = vsel %vm368, %v3750, %v4194
      %v5498 = vsel %vm368, %v3751, %v4196
      %v5501 = vsel %vm368, %v3752, %v4198
      %v5503 = vsel %vm368, %v3753, %v4200
      %v5506 = vsel %vm368, %v3754, %v4202
      %v5508 = vsel %vm368, %v3755, %v4204
      %v5511 = vsel %vm368, %v3756, %v4206
      %v5513 = vsel %vm368, %v3757, %v4208
      %v5516 = vsel %vm368, %v3758, %v4210
      %v5518 = vsel %vm368, %v3759, %v4212
      %v5521 = vsel %vm368, %v3760, %v4214
      %v5523 = vsel %vm368, %v3761, %v4216
      %v5526 = vsel %vm368, %v3762, %v4218
      %v5528 = vsel %vm368, %v3763, %v4220
      %v5531 = vsel %vm368, %v3764, %v4222
      %v5533 = vsel %vm368, %v3765, %v4224
      %v5536 = vsel %vm368, %v3766, %v4226
      %v5538 = vsel %vm368, %v3767, %v4228
      %v5541 = vsel %vm368, %v3768, %v4230
      %v5543 = vsel %vm368, %v3769, %v4232
      %v5546 = vsel %vm368, %v3770, %v4234
      %v5548 = vsel %vm368, %v3771, %v4236
      %v5550 = vsel %vm327, %v5471, %v4318
      %v5552 = vsel %vm327, %v5473, %v4320
      %v5554 = vsel %vm327, %v5476, %v4322
      %v5556 = vsel %vm327, %v5478, %v4324
      %v5558 = vsel %vm327, %v5481, %v4326
      %v5560 = vsel %vm327, %v5483, %v4328
      %v5562 = vsel %vm327, %v5486, %v4330
      %v5564 = vsel %vm327, %v5488, %v4332
      %v5566 = vsel %vm327, %v5491, %v4334
      %v5568 = vsel %vm327, %v5493, %v4336
      %v5570 = vsel %vm327, %v5496, %v4338
      %v5572 = vsel %vm327, %v5498, %v4340
      %v5574 = vsel %vm327, %v5501, %v4342
      %v5576 = vsel %vm327, %v5503, %v4344
      %v5578 = vsel %vm327, %v5506, %v4346
      %v5580 = vsel %vm327, %v5508, %v4348
      %v5582 = vsel %vm327, %v5511, %v4350
      %v5584 = vsel %vm327, %v5513, %v4352
      %v5586 = vsel %vm327, %v5516, %v4354
      %v5588 = vsel %vm327, %v5518, %v4356
      %v5590 = vsel %vm327, %v5521, %v4358
      %v5592 = vsel %vm327, %v5523, %v4360
      %v5594 = vsel %vm327, %v5526, %v4362
      %v5596 = vsel %vm327, %v5528, %v4364
      %v5598 = vsel %vm327, %v5531, %v4366
      %v5600 = vsel %vm327, %v5533, %v4368
      %v5602 = vsel %vm327, %v5536, %v4370
      %v5604 = vsel %vm327, %v5538, %v4372
      %v5606 = vsel %vm327, %v5541, %v4374
      %v5608 = vsel %vm327, %v5543, %v4376
      %v5610 = vsel %vm327, %v5546, %v4378
      %v5612 = vsel %vm327, %v5548, %v4380
      %vm5613 = vcmask 48128
      %v5615 = vsel %vm5613, %v5550, %v4414
      %v5617 = vsel %vm5613, %v5552, %v4416
      %v5619 = vsel %vm5613, %v5554, %v4418
      %v5621 = vsel %vm5613, %v5556, %v4420
      %v5623 = vsel %vm5613, %v5558, %v4422
      %v5625 = vsel %vm5613, %v5560, %v4424
      %v5627 = vsel %vm5613, %v5562, %v4426
      %v5629 = vsel %vm5613, %v5564, %v4428
      %v5631 = vsel %vm5613, %v5566, %v4430
      %v5633 = vsel %vm5613, %v5568, %v4432
      %v5635 = vsel %vm5613, %v5570, %v4434
      %v5637 = vsel %vm5613, %v5572, %v4436
      %v5639 = vsel %vm5613, %v5574, %v4438
      %v5641 = vsel %vm5613, %v5576, %v4440
      %v5643 = vsel %vm5613, %v5578, %v4442
      %v5645 = vsel %vm5613, %v5580, %v4444
      %v5647 = vsel %vm5613, %v5582, %v4446
      %v5649 = vsel %vm5613, %v5584, %v4448
      %v5651 = vsel %vm5613, %v5586, %v4450
      %v5653 = vsel %vm5613, %v5588, %v4452
      %v5655 = vsel %vm5613, %v5590, %v4454
      %v5657 = vsel %vm5613, %v5592, %v4456
      %v5659 = vsel %vm5613, %v5594, %v4458
      %v5661 = vsel %vm5613, %v5596, %v4460
      %v5663 = vsel %vm5613, %v5598, %v4462
      %v5665 = vsel %vm5613, %v5600, %v4464
      %v5667 = vsel %vm5613, %v5602, %v4466
      %v5669 = vsel %vm5613, %v5604, %v4468
      %v5671 = vsel %vm5613, %v5606, %v4470
      %v5673 = vsel %vm5613, %v5608, %v4472
      %v5675 = vsel %vm5613, %v5610, %v4474
      %v5677 = vsel %vm5613, %v5612, %v4476
      %v5679 = vsel %vm2412, %v5615, %v4718
      %v5681 = vsel %vm2412, %v5617, %v4720
      %v5683 = vsel %vm2412, %v5619, %v4722
      %v5685 = vsel %vm2412, %v5621, %v4724
      %v5687 = vsel %vm2412, %v5623, %v4726
      %v5689 = vsel %vm2412, %v5625, %v4728
      %v5691 = vsel %vm2412, %v5627, %v4730
      %v5693 = vsel %vm2412, %v5629, %v4732
      %v5695 = vsel %vm2412, %v5631, %v4734
      %v5697 = vsel %vm2412, %v5633, %v4736
      %v5699 = vsel %vm2412, %v5635, %v4738
      %v5701 = vsel %vm2412, %v5637, %v4740
      %v5703 = vsel %vm2412, %v5639, %v4742
      %v5705 = vsel %vm2412, %v5641, %v4744
      %v5707 = vsel %vm2412, %v5643, %v4746
      %v5709 = vsel %vm2412, %v5645, %v4748
      %v5711 = vsel %vm2412, %v5647, %v4750
      %v5713 = vsel %vm2412, %v5649, %v4752
      %v5715 = vsel %vm2412, %v5651, %v4754
      %v5717 = vsel %vm2412, %v5653, %v4756
      %v5719 = vsel %vm2412, %v5655, %v4758
      %v5721 = vsel %vm2412, %v5657, %v4760
      %v5723 = vsel %vm2412, %v5659, %v4762
      %v5725 = vsel %vm2412, %v5661, %v4764
      %v5727 = vsel %vm2412, %v5663, %v4766
      %v5729 = vsel %vm2412, %v5665, %v4768
      %v5731 = vsel %vm2412, %v5667, %v4770
      %v5733 = vsel %vm2412, %v5669, %v4772
      %v5735 = vsel %vm2412, %v5671, %v4774
      %v5737 = vsel %vm2412, %v5673, %v4776
      %v5739 = vsel %vm2412, %v5675, %v4778
      %v5741 = vsel %vm2412, %v5677, %v4780
      %vm5742 = vcmask 80896
      %v5744 = vsel %vm5742, %v5679, %v4862
      %v5746 = vsel %vm5742, %v5681, %v4864
      %v5748 = vsel %vm5742, %v5683, %v4866
      %v5750 = vsel %vm5742, %v5685, %v4868
      %v5752 = vsel %vm5742, %v5687, %v4870
      %v5754 = vsel %vm5742, %v5689, %v4872
      %v5756 = vsel %vm5742, %v5691, %v4874
      %v5758 = vsel %vm5742, %v5693, %v4876
      %v5760 = vsel %vm5742, %v5695, %v4878
      %v5762 = vsel %vm5742, %v5697, %v4880
      %v5764 = vsel %vm5742, %v5699, %v4882
      %v5766 = vsel %vm5742, %v5701, %v4884
      %v5768 = vsel %vm5742, %v5703, %v4886
      %v5770 = vsel %vm5742, %v5705, %v4888
      %v5772 = vsel %vm5742, %v5707, %v4890
      %v5774 = vsel %vm5742, %v5709, %v4892
      %v5776 = vsel %vm5742, %v5711, %v4894
      %v5778 = vsel %vm5742, %v5713, %v4896
      %v5780 = vsel %vm5742, %v5715, %v4898
      %v5782 = vsel %vm5742, %v5717, %v4900
      %v5784 = vsel %vm5742, %v5719, %v4902
      %v5786 = vsel %vm5742, %v5721, %v4904
      %v5788 = vsel %vm5742, %v5723, %v4906
      %v5790 = vsel %vm5742, %v5725, %v4908
      %v5792 = vsel %vm5742, %v5727, %v4910
      %v5794 = vsel %vm5742, %v5729, %v4912
      %v5796 = vsel %vm5742, %v5731, %v4914
      %v5798 = vsel %vm5742, %v5733, %v4916
      %v5800 = vsel %vm5742, %v5735, %v4918
      %v5802 = vsel %vm5742, %v5737, %v4920
      %v5804 = vsel %vm5742, %v5739, %v4922
      %v5806 = vsel %vm5742, %v5741, %v4924
      %v5808 = vsel %vm2477, %v5744, %v4958
      %v5810 = vsel %vm2477, %v5746, %v4960
      %v5812 = vsel %vm2477, %v5748, %v4962
      %v5814 = vsel %vm2477, %v5750, %v4964
      %v5816 = vsel %vm2477, %v5752, %v4966
      %v5818 = vsel %vm2477, %v5754, %v4968
      %v5820 = vsel %vm2477, %v5756, %v4970
      %v5822 = vsel %vm2477, %v5758, %v4972
      %v5824 = vsel %vm2477, %v5760, %v4974
      %v5826 = vsel %vm2477, %v5762, %v4976
      %v5828 = vsel %vm2477, %v5764, %v4978
      %v5830 = vsel %vm2477, %v5766, %v4980
      %v5832 = vsel %vm2477, %v5768, %v4982
      %v5834 = vsel %vm2477, %v5770, %v4984
      %v5836 = vsel %vm2477, %v5772, %v4986
      %v5838 = vsel %vm2477, %v5774, %v4988
      %v5840 = vsel %vm2477, %v5776, %v4990
      %v5842 = vsel %vm2477, %v5778, %v4992
      %v5844 = vsel %vm2477, %v5780, %v4994
      %v5846 = vsel %vm2477, %v5782, %v4996
      %v5848 = vsel %vm2477, %v5784, %v4998
      %v5850 = vsel %vm2477, %v5786, %v5000
      %v5852 = vsel %vm2477, %v5788, %v5002
      %v5854 = vsel %vm2477, %v5790, %v5004
      %v5856 = vsel %vm2477, %v5792, %v5006
      %v5858 = vsel %vm2477, %v5794, %v5008
      %v5860 = vsel %vm2477, %v5796, %v5010
      %v5862 = vsel %vm2477, %v5798, %v5012
      %v5864 = vsel %vm2477, %v5800, %v5014
      %v5866 = vsel %vm2477, %v5802, %v5016
      %v5868 = vsel %vm2477, %v5804, %v5018
      %v5870 = vsel %vm2477, %v5806, %v5020
      %vm5871 = vcmask 113664
      %v5873 = vsel %vm5871, %v5808, %v5262
      %v5875 = vsel %vm5871, %v5810, %v5264
      %v5877 = vsel %vm5871, %v5812, %v5266
      %v5879 = vsel %vm5871, %v5814, %v5268
      %v5881 = vsel %vm5871, %v5816, %v5270
      %v5883 = vsel %vm5871, %v5818, %v5272
      %v5885 = vsel %vm5871, %v5820, %v5274
      %v5887 = vsel %vm5871, %v5822, %v5276
      %v5889 = vsel %vm5871, %v5824, %v5278
      %v5891 = vsel %vm5871, %v5826, %v5280
      %v5893 = vsel %vm5871, %v5828, %v5282
      %v5895 = vsel %vm5871, %v5830, %v5284
      %v5897 = vsel %vm5871, %v5832, %v5286
      %v5899 = vsel %vm5871, %v5834, %v5288
      %v5901 = vsel %vm5871, %v5836, %v5290
      %v5903 = vsel %vm5871, %v5838, %v5292
      %v5905 = vsel %vm5871, %v5840, %v5294
      %v5907 = vsel %vm5871, %v5842, %v5296
      %v5909 = vsel %vm5871, %v5844, %v5298
      %v5911 = vsel %vm5871, %v5846, %v5300
      %v5913 = vsel %vm5871, %v5848, %v5302
      %v5915 = vsel %vm5871, %v5850, %v5304
      %v5917 = vsel %vm5871, %v5852, %v5306
      %v5919 = vsel %vm5871, %v5854, %v5308
      %v5921 = vsel %vm5871, %v5856, %v5310
      %v5923 = vsel %vm5871, %v5858, %v5312
      %v5925 = vsel %vm5871, %v5860, %v5314
      %v5927 = vsel %vm5871, %v5862, %v5316
      %v5929 = vsel %vm5871, %v5864, %v5318
      %v5931 = vsel %vm5871, %v5866, %v5320
      %v5933 = vsel %vm5871, %v5868, %v5322
      %v5935 = vsel %vm5871, %v5870, %v5324
      %v5937 = vsel %vm2542, %v5873, %v5406
      %v5939 = vsel %vm2542, %v5875, %v5408
      %v5941 = vsel %vm2542, %v5877, %v5410
      %v5943 = vsel %vm2542, %v5879, %v5412
      %v5945 = vsel %vm2542, %v5881, %v5414
      %v5947 = vsel %vm2542, %v5883, %v5416
      %v5949 = vsel %vm2542, %v5885, %v5418
      %v5951 = vsel %vm2542, %v5887, %v5420
      %v5953 = vsel %vm2542, %v5889, %v5422
      %v5955 = vsel %vm2542, %v5891, %v5424
      %v5957 = vsel %vm2542, %v5893, %v5426
      %v5959 = vsel %vm2542, %v5895, %v5428
      %v5961 = vsel %vm2542, %v5897, %v5430
      %v5963 = vsel %vm2542, %v5899, %v5432
      %v5965 = vsel %vm2542, %v5901, %v5434
      %v5967 = vsel %vm2542, %v5903, %v5436
      %v5969 = vsel %vm2542, %v5905, %v5438
      %v5971 = vsel %vm2542, %v5907, %v5440
      %v5973 = vsel %vm2542, %v5909, %v5442
      %v5975 = vsel %vm2542, %v5911, %v5444
      %v5977 = vsel %vm2542, %v5913, %v5446
      %v5979 = vsel %vm2542, %v5915, %v5448
      %v5981 = vsel %vm2542, %v5917, %v5450
      %v5983 = vsel %vm2542, %v5919, %v5452
      %v5985 = vsel %vm2542, %v5921, %v5454
      %v5987 = vsel %vm2542, %v5923, %v5456
      %v5989 = vsel %vm2542, %v5925, %v5458
      %v5991 = vsel %vm2542, %v5927, %v5460
      %v5993 = vsel %vm2542, %v5929, %v5462
      %v5995 = vsel %vm2542, %v5931, %v5464
      %v5997 = vsel %vm2542, %v5933, %v5466
      %v5999 = vsel %vm2542, %v5935, %v5468
      %v6000 = vshrl.u32 %v5937, 16
      %v6002 = vrot.slane %v6000, 3
      %v6003 = vshll.u32 %v5937, 16
      %v6005 = vrot.slane %v6003, 4
      %v6006 = vor.u32 %v6002, %v6005
      %v6007 = vshrl.u32 %v5939, 16
      %v6009 = vrot.slane %v6007, 3
      %v6010 = vshll.u32 %v5939, 16
      %v6012 = vrot.slane %v6010, 4
      %v6013 = vor.u32 %v6009, %v6012
      %v6014 = vsel %vm2867, %v6006, %v6013
      %v6015 = vshrl.u32 %v5941, 16
      %v6017 = vrot.slane %v6015, 3
      %v6018 = vshll.u32 %v5941, 16
      %v6020 = vrot.slane %v6018, 4
      %v6021 = vor.u32 %v6017, %v6020
      %v6022 = vshrl.u32 %v5943, 16
      %v6024 = vrot.slane %v6022, 3
      %v6025 = vshll.u32 %v5943, 16
      %v6027 = vrot.slane %v6025, 4
      %v6028 = vor.u32 %v6024, %v6027
      %v6029 = vsel %vm2867, %v6021, %v6028
      %v6030 = vshrl.u32 %v5945, 16
      %v6032 = vrot.slane %v6030, 3
      %v6033 = vshll.u32 %v5945, 16
      %v6035 = vrot.slane %v6033, 4
      %v6036 = vor.u32 %v6032, %v6035
      %v6037 = vshrl.u32 %v5947, 16
      %v6039 = vrot.slane %v6037, 3
      %v6040 = vshll.u32 %v5947, 16
      %v6042 = vrot.slane %v6040, 4
      %v6043 = vor.u32 %v6039, %v6042
      %v6044 = vsel %vm2867, %v6036, %v6043
      %v6045 = vshrl.u32 %v5949, 16
      %v6047 = vrot.slane %v6045, 3
      %v6048 = vshll.u32 %v5949, 16
      %v6050 = vrot.slane %v6048, 4
      %v6051 = vor.u32 %v6047, %v6050
      %v6052 = vshrl.u32 %v5951, 16
      %v6054 = vrot.slane %v6052, 3
      %v6055 = vshll.u32 %v5951, 16
      %v6057 = vrot.slane %v6055, 4
      %v6058 = vor.u32 %v6054, %v6057
      %v6059 = vsel %vm2867, %v6051, %v6058
      %v6060 = vshrl.u32 %v5953, 16
      %v6062 = vrot.slane %v6060, 3
      %v6063 = vshll.u32 %v5953, 16
      %v6065 = vrot.slane %v6063, 4
      %v6066 = vor.u32 %v6062, %v6065
      %v6067 = vshrl.u32 %v5955, 16
      %v6069 = vrot.slane %v6067, 3
      %v6070 = vshll.u32 %v5955, 16
      %v6072 = vrot.slane %v6070, 4
      %v6073 = vor.u32 %v6069, %v6072
      %v6074 = vsel %vm2867, %v6066, %v6073
      %v6075 = vshrl.u32 %v5957, 16
      %v6077 = vrot.slane %v6075, 3
      %v6078 = vshll.u32 %v5957, 16
      %v6080 = vrot.slane %v6078, 4
      %v6081 = vor.u32 %v6077, %v6080
      %v6082 = vshrl.u32 %v5959, 16
      %v6084 = vrot.slane %v6082, 3
      %v6085 = vshll.u32 %v5959, 16
      %v6087 = vrot.slane %v6085, 4
      %v6088 = vor.u32 %v6084, %v6087
      %v6089 = vsel %vm2867, %v6081, %v6088
      %v6090 = vshrl.u32 %v5961, 16
      %v6092 = vrot.slane %v6090, 3
      %v6093 = vshll.u32 %v5961, 16
      %v6095 = vrot.slane %v6093, 4
      %v6096 = vor.u32 %v6092, %v6095
      %v6097 = vshrl.u32 %v5963, 16
      %v6099 = vrot.slane %v6097, 3
      %v6100 = vshll.u32 %v5963, 16
      %v6102 = vrot.slane %v6100, 4
      %v6103 = vor.u32 %v6099, %v6102
      %v6104 = vsel %vm2867, %v6096, %v6103
      %v6105 = vshrl.u32 %v5965, 16
      %v6107 = vrot.slane %v6105, 3
      %v6108 = vshll.u32 %v5965, 16
      %v6110 = vrot.slane %v6108, 4
      %v6111 = vor.u32 %v6107, %v6110
      %v6112 = vshrl.u32 %v5967, 16
      %v6114 = vrot.slane %v6112, 3
      %v6115 = vshll.u32 %v5967, 16
      %v6117 = vrot.slane %v6115, 4
      %v6118 = vor.u32 %v6114, %v6117
      %v6119 = vsel %vm2867, %v6111, %v6118
      %v6120 = vshrl.u32 %v5969, 16
      %v6122 = vrot.slane %v6120, 3
      %v6123 = vshll.u32 %v5969, 16
      %v6125 = vrot.slane %v6123, 4
      %v6126 = vor.u32 %v6122, %v6125
      %v6127 = vshrl.u32 %v5971, 16
      %v6129 = vrot.slane %v6127, 3
      %v6130 = vshll.u32 %v5971, 16
      %v6132 = vrot.slane %v6130, 4
      %v6133 = vor.u32 %v6129, %v6132
      %v6134 = vsel %vm2867, %v6126, %v6133
      %v6135 = vshrl.u32 %v5973, 16
      %v6137 = vrot.slane %v6135, 3
      %v6138 = vshll.u32 %v5973, 16
      %v6140 = vrot.slane %v6138, 4
      %v6141 = vor.u32 %v6137, %v6140
      %v6142 = vshrl.u32 %v5975, 16
      %v6144 = vrot.slane %v6142, 3
      %v6145 = vshll.u32 %v5975, 16
      %v6147 = vrot.slane %v6145, 4
      %v6148 = vor.u32 %v6144, %v6147
      %v6149 = vsel %vm2867, %v6141, %v6148
      %v6150 = vshrl.u32 %v5977, 16
      %v6152 = vrot.slane %v6150, 3
      %v6153 = vshll.u32 %v5977, 16
      %v6155 = vrot.slane %v6153, 4
      %v6156 = vor.u32 %v6152, %v6155
      %v6157 = vshrl.u32 %v5979, 16
      %v6159 = vrot.slane %v6157, 3
      %v6160 = vshll.u32 %v5979, 16
      %v6162 = vrot.slane %v6160, 4
      %v6163 = vor.u32 %v6159, %v6162
      %v6164 = vsel %vm2867, %v6156, %v6163
      %v6165 = vshrl.u32 %v5981, 16
      %v6167 = vrot.slane %v6165, 3
      %v6168 = vshll.u32 %v5981, 16
      %v6170 = vrot.slane %v6168, 4
      %v6171 = vor.u32 %v6167, %v6170
      %v6172 = vshrl.u32 %v5983, 16
      %v6174 = vrot.slane %v6172, 3
      %v6175 = vshll.u32 %v5983, 16
      %v6177 = vrot.slane %v6175, 4
      %v6178 = vor.u32 %v6174, %v6177
      %v6179 = vsel %vm2867, %v6171, %v6178
      %v6180 = vshrl.u32 %v5985, 16
      %v6182 = vrot.slane %v6180, 3
      %v6183 = vshll.u32 %v5985, 16
      %v6185 = vrot.slane %v6183, 4
      %v6186 = vor.u32 %v6182, %v6185
      %v6187 = vshrl.u32 %v5987, 16
      %v6189 = vrot.slane %v6187, 3
      %v6190 = vshll.u32 %v5987, 16
      %v6192 = vrot.slane %v6190, 4
      %v6193 = vor.u32 %v6189, %v6192
      %v6194 = vsel %vm2867, %v6186, %v6193
      %v6195 = vshrl.u32 %v5989, 16
      %v6197 = vrot.slane %v6195, 3
      %v6198 = vshll.u32 %v5989, 16
      %v6200 = vrot.slane %v6198, 4
      %v6201 = vor.u32 %v6197, %v6200
      %v6202 = vshrl.u32 %v5991, 16
      %v6204 = vrot.slane %v6202, 3
      %v6205 = vshll.u32 %v5991, 16
      %v6207 = vrot.slane %v6205, 4
      %v6208 = vor.u32 %v6204, %v6207
      %v6209 = vsel %vm2867, %v6201, %v6208
      %v6210 = vshrl.u32 %v5993, 16
      %v6212 = vrot.slane %v6210, 3
      %v6213 = vshll.u32 %v5993, 16
      %v6215 = vrot.slane %v6213, 4
      %v6216 = vor.u32 %v6212, %v6215
      %v6217 = vshrl.u32 %v5995, 16
      %v6219 = vrot.slane %v6217, 3
      %v6220 = vshll.u32 %v5995, 16
      %v6222 = vrot.slane %v6220, 4
      %v6223 = vor.u32 %v6219, %v6222
      %v6224 = vsel %vm2867, %v6216, %v6223
      %v6225 = vshrl.u32 %v5997, 16
      %v6227 = vrot.slane %v6225, 3
      %v6228 = vshll.u32 %v5997, 16
      %v6230 = vrot.slane %v6228, 4
      %v6231 = vor.u32 %v6227, %v6230
      %v6232 = vshrl.u32 %v5999, 16
      %v6234 = vrot.slane %v6232, 3
      %v6235 = vshll.u32 %v5999, 16
      %v6237 = vrot.slane %v6235, 4
      %v6238 = vor.u32 %v6234, %v6237
      %v6239 = vsel %vm2867, %v6231, %v6238
      %v6240 = vld [vmem:[%s2] sm:$0xf]
      %v6241 = vld [vmem:[%s2 + $0x4] sm:$0xf]
      %v6242 = vld [vmem:[%s2 + $0x8] sm:$0x1]
      %v6246 = vunpack.c.l.b16 %v6240
      %v6247 = vunpack.c.l.b16 %v6241
      %v6248 = vunpack.c.l.b16 %v6242
      %v6249 = vpack.c.b16 %v6247, %v6246
      %v6250 = vpack.c.b16 %v6248, %v6248
      %vm6252 = vcmask 146432
      %v6254 = vsel %vm6252, %v6014, 0
      %v6257 = vsel %vm6252, %v6029, 0
      %v6260 = vsel %vm6252, %v6044, 0
      %v6263 = vsel %vm6252, %v6059, 0
      %v6266 = vsel %vm6252, %v6074, 0
      %v6269 = vsel %vm6252, %v6089, 0
      %v6272 = vsel %vm6252, %v6104, 0
      %v6275 = vsel %vm6252, %v6119, 0
      %v6278 = vsel %vm6252, %v6134, 0
      %v6281 = vsel %vm6252, %v6149, 0
      %v6284 = vsel %vm6252, %v6164, 0
      %v6287 = vsel %vm6252, %v6179, 0
      %v6290 = vsel %vm6252, %v6194, 0
      %v6293 = vsel %vm6252, %v6209, 0
      %v6296 = vsel %vm6252, %v6224, 0
      %v6299 = vsel %vm6252, %v6239, 0
      %vm6301 = vcmask 1040384
      %v6303 = vsel %vm6301, %v6250, 0
      %6305 = vmatprep.subr.bf16.mxu0 0
      %6306 = vmatpush1.bf16.msra.mxu0 %v6249
      %6307 = vmatprep.subr.bf16.mxu0 0
      %6308 = vmatpush1.bf16.msra.mxu0 %v6303
      %6309 = vmatprep.subr.bf16.mxu0 0
      %6310 = vmatpush1.bf16.msra.mxu0 0
      %6311 = vmatprep.subr.bf16.mxu0 0
      %6312 = vmatpush1.bf16.msra.mxu0 0
      %6313 = vmatprep.subr.bf16.mxu0 0
      %6314 = vmatpush1.bf16.msra.mxu0 0
      %6315 = vmatprep.subr.bf16.mxu0 0
      %6316 = vmatpush1.bf16.msra.mxu0 0
      %6317 = vmatprep.subr.bf16.mxu0 0
      %6318 = vmatpush1.bf16.msra.mxu0 0
      %6319 = vmatprep.subr.bf16.mxu0 0
      %6320 = vmatpush1.bf16.msra.mxu0 0
      %6321 = vmatprep.subr.bf16.mxu0 0
      %6322 = vmatpush1.bf16.msra.mxu0 0
      %6323 = vmatprep.subr.bf16.mxu0 0
      %6324 = vmatpush1.bf16.msra.mxu0 0
      %6325 = vmatprep.subr.bf16.mxu0 0
      %6326 = vmatpush1.bf16.msra.mxu0 0
      %6327 = vmatprep.subr.bf16.mxu0 0
      %6328 = vmatpush1.bf16.msra.mxu0 0
      %6329 = vmatprep.subr.bf16.mxu0 0
      %6330 = vmatpush1.bf16.msra.mxu0 0
      %6331 = vmatprep.subr.bf16.mxu0 0
      %6332 = vmatpush1.bf16.msra.mxu0 0
      %6333 = vmatprep.subr.bf16.mxu0 0
      %6334 = vmatpush1.bf16.msra.mxu0 0
      %6335 = vmatprep.subr.bf16.mxu0 0
      %6336 = vmatpush1.bf16.msra.mxu0 0
      %6337 = vmatprep.mubr.bf16.mxu0 0
      %6338 = vmatmul.mubr.bf16.gmra.mrb[0].mxu0 %v6254
      %v6339 = vpop.f32.mrb[0].mxu0
      %v6340 = vadd.f32 0.0, %v6339
      %v6341 = vpop.f32.mrb[0].mxu0
      %v6342 = vpop.f32.mrb[0].mxu0
      %v6343 = vadd.f32 0.0, %v6342
      %v6344 = vpop.f32.mrb[0].mxu0
      %6345 = vmatprep.mubr.bf16.mxu0 0
      %6346 = vmatmul.mubr.bf16.gmra.mrb[0].mxu0 %v6257
      %v6347 = vpop.f32.mrb[0].mxu0
      %v6348 = vadd.f32 0.0, %v6347
      %v6349 = vpop.f32.mrb[0].mxu0
      %v6350 = vpop.f32.mrb[0].mxu0
      %v6351 = vadd.f32 0.0, %v6350
      %v6352 = vpop.f32.mrb[0].mxu0
      %6353 = vmatprep.mubr.bf16.mxu0 0
      %6354 = vmatmul.mubr.bf16.gmra.mrb[0].mxu0 %v6260
      %v6355 = vpop.f32.mrb[0].mxu0
      %v6356 = vadd.f32 0.0, %v6355
      %v6357 = vpop.f32.mrb[0].mxu0
      %v6358 = vpop.f32.mrb[0].mxu0
      %v6359 = vadd.f32 0.0, %v6358
      %v6360 = vpop.f32.mrb[0].mxu0
      %6361 = vmatprep.mubr.bf16.mxu0 0
      %6362 = vmatmul.mubr.bf16.gmra.mrb[0].mxu0 %v6263
      %v6363 = vpop.f32.mrb[0].mxu0
      %v6364 = vadd.f32 0.0, %v6363
      %v6365 = vpop.f32.mrb[0].mxu0
      %v6366 = vpop.f32.mrb[0].mxu0
      %v6367 = vadd.f32 0.0, %v6366
      %v6368 = vpop.f32.mrb[0].mxu0
      %6369 = vmatprep.mubr.bf16.mxu0 0
      %6370 = vmatmul.mubr.bf16.gmra.mrb[0].mxu0 %v6266
      %v6371 = vpop.f32.mrb[0].mxu0
      %v6372 = vadd.f32 0.0, %v6371
      %v6373 = vpop.f32.mrb[0].mxu0
      %v6374 = vpop.f32.mrb[0].mxu0
      %v6375 = vadd.f32 0.0, %v6374
      %v6376 = vpop.f32.mrb[0].mxu0
      %6377 = vmatprep.mubr.bf16.mxu0 0
      %6378 = vmatmul.mubr.bf16.gmra.mrb[0].mxu0 %v6269
      %v6379 = vpop.f32.mrb[0].mxu0
      %v6380 = vadd.f32 0.0, %v6379
      %v6381 = vpop.f32.mrb[0].mxu0
      %v6382 = vpop.f32.mrb[0].mxu0
      %v6383 = vadd.f32 0.0, %v6382
      %v6384 = vpop.f32.mrb[0].mxu0
      %6385 = vmatprep.mubr.bf16.mxu0 0
      %6386 = vmatmul.mubr.bf16.gmra.mrb[0].mxu0 %v6272
      %v6387 = vpop.f32.mrb[0].mxu0
      %v6388 = vadd.f32 0.0, %v6387
      %v6389 = vpop.f32.mrb[0].mxu0
      %v6390 = vpop.f32.mrb[0].mxu0
      %v6391 = vadd.f32 0.0, %v6390
      %v6392 = vpop.f32.mrb[0].mxu0
      %6393 = vmatprep.mubr.bf16.mxu0 0
      %6394 = vmatmul.mubr.bf16.gmra.mrb[0].mxu0 %v6275
      %v6395 = vpop.f32.mrb[0].mxu0
      %v6396 = vadd.f32 0.0, %v6395
      %v6397 = vpop.f32.mrb[0].mxu0
      %v6398 = vpop.f32.mrb[0].mxu0
      %v6399 = vadd.f32 0.0, %v6398
      %v6400 = vpop.f32.mrb[0].mxu0
      %6401 = vmatprep.mubr.bf16.mxu0 0
      %6402 = vmatmul.mubr.bf16.gmra.mrb[0].mxu0 %v6278
      %v6403 = vpop.f32.mrb[0].mxu0
      %v6404 = vadd.f32 0.0, %v6403
      %v6405 = vpop.f32.mrb[0].mxu0
      %v6406 = vpop.f32.mrb[0].mxu0
      %v6407 = vadd.f32 0.0, %v6406
      %v6408 = vpop.f32.mrb[0].mxu0
      %6409 = vmatprep.mubr.bf16.mxu0 0
      %6410 = vmatmul.mubr.bf16.gmra.mrb[0].mxu0 %v6281
      %v6411 = vpop.f32.mrb[0].mxu0
      %v6412 = vadd.f32 0.0, %v6411
      %v6413 = vpop.f32.mrb[0].mxu0
      %v6414 = vpop.f32.mrb[0].mxu0
      %v6415 = vadd.f32 0.0, %v6414
      %v6416 = vpop.f32.mrb[0].mxu0
      %6417 = vmatprep.mubr.bf16.mxu0 0
      %6418 = vmatmul.mubr.bf16.gmra.mrb[0].mxu0 %v6284
      %v6419 = vpop.f32.mrb[0].mxu0
      %v6420 = vadd.f32 0.0, %v6419
      %v6421 = vpop.f32.mrb[0].mxu0
      %v6422 = vpop.f32.mrb[0].mxu0
      %v6423 = vadd.f32 0.0, %v6422
      %v6424 = vpop.f32.mrb[0].mxu0
      %6425 = vmatprep.mubr.bf16.mxu0 0
      %6426 = vmatmul.mubr.bf16.gmra.mrb[0].mxu0 %v6287
      %v6427 = vpop.f32.mrb[0].mxu0
      %v6428 = vadd.f32 0.0, %v6427
      %v6429 = vpop.f32.mrb[0].mxu0
      %v6430 = vpop.f32.mrb[0].mxu0
      %v6431 = vadd.f32 0.0, %v6430
      %v6432 = vpop.f32.mrb[0].mxu0
      %6433 = vmatprep.mubr.bf16.mxu0 0
      %6434 = vmatmul.mubr.bf16.gmra.mrb[0].mxu0 %v6290
      %v6435 = vpop.f32.mrb[0].mxu0
      %v6436 = vadd.f32 0.0, %v6435
      %v6437 = vpop.f32.mrb[0].mxu0
      %v6438 = vpop.f32.mrb[0].mxu0
      %v6439 = vadd.f32 0.0, %v6438
      %v6440 = vpop.f32.mrb[0].mxu0
      %6441 = vmatprep.mubr.bf16.mxu0 0
      %6442 = vmatmul.mubr.bf16.gmra.mrb[0].mxu0 %v6293
      %v6443 = vpop.f32.mrb[0].mxu0
      %v6444 = vadd.f32 0.0, %v6443
      %v6445 = vpop.f32.mrb[0].mxu0
      %v6446 = vpop.f32.mrb[0].mxu0
      %v6447 = vadd.f32 0.0, %v6446
      %v6448 = vpop.f32.mrb[0].mxu0
      %6449 = vmatprep.mubr.bf16.mxu0 0
      %6450 = vmatmul.mubr.bf16.gmra.mrb[0].mxu0 %v6296
      %v6451 = vpop.f32.mrb[0].mxu0
      %v6452 = vadd.f32 0.0, %v6451
      %v6453 = vpop.f32.mrb[0].mxu0
      %v6454 = vpop.f32.mrb[0].mxu0
      %v6455 = vadd.f32 0.0, %v6454
      %v6456 = vpop.f32.mrb[0].mxu0
      %6457 = vmatprep.mubr.bf16.mxu0 0
      %6458 = vmatmul.mubr.bf16.gmra.mrb[0].mxu0 %v6299
      %v6459 = vpop.f32.mrb[0].mxu0
      %v6460 = vadd.f32 0.0, %v6459
      %v6461 = vpop.f32.mrb[0].mxu0
      %v6462 = vpop.f32.mrb[0].mxu0
      %v6463 = vadd.f32 0.0, %v6462
      %v6464 = vpop.f32.mrb[0].mxu0
      %6465 = vdwg.mxu0
      %v6466 = vld [vmem:[%s5] sm:$0x1]
      %v6468 = vlaneseq
      %v6469 = vshrl.u32 %v6468, 7
      %v6470 = vsub.s32 0, %v6469
      %v6471 = vrot.slane %v6466, %v6470
      %v6473 = vmul.f32 %v6340, %v6471
      %v6474 = vmul.f32 %v6343, %v6471
      %v6475 = vmul.f32 %v6348, %v6471
      %v6476 = vmul.f32 %v6351, %v6471
      %v6477 = vmul.f32 %v6356, %v6471
      %v6478 = vmul.f32 %v6359, %v6471
      %v6479 = vmul.f32 %v6364, %v6471
      %v6480 = vmul.f32 %v6367, %v6471
      %v6481 = vmul.f32 %v6372, %v6471
      %v6482 = vmul.f32 %v6375, %v6471
      %v6483 = vmul.f32 %v6380, %v6471
      %v6484 = vmul.f32 %v6383, %v6471
      %v6485 = vmul.f32 %v6388, %v6471
      %v6486 = vmul.f32 %v6391, %v6471
      %v6487 = vmul.f32 %v6396, %v6471
      %v6488 = vmul.f32 %v6399, %v6471
      %v6489 = vmul.f32 %v6404, %v6471
      %v6490 = vmul.f32 %v6407, %v6471
      %v6491 = vmul.f32 %v6412, %v6471
      %v6492 = vmul.f32 %v6415, %v6471
      %v6493 = vmul.f32 %v6420, %v6471
      %v6494 = vmul.f32 %v6423, %v6471
      %v6495 = vmul.f32 %v6428, %v6471
      %v6496 = vmul.f32 %v6431, %v6471
      %v6497 = vmul.f32 %v6436, %v6471
      %v6498 = vmul.f32 %v6439, %v6471
      %v6499 = vmul.f32 %v6444, %v6471
      %v6500 = vmul.f32 %v6447, %v6471
      %v6501 = vmul.f32 %v6452, %v6471
      %v6502 = vmul.f32 %v6455, %v6471
      %v6503 = vmul.f32 %v6460, %v6471
      %v6504 = vmul.f32 %v6463, %v6471
      %v6505 = vld [vmem:[%s6] sm:$0x1]
      %v6507 = vlaneseq
      %v6508 = vshrl.u32 %v6507, 7
      %v6509 = vsub.s32 0, %v6508
      %v6510 = vrot.slane %v6505, %v6509
      %v6512 = vadd.f32 %v6473, %v6510
      %v6513 = vadd.f32 %v6474, %v6510
      %v6514 = vadd.f32 %v6475, %v6510
      %v6515 = vadd.f32 %v6476, %v6510
      %v6516 = vadd.f32 %v6477, %v6510
      %v6517 = vadd.f32 %v6478, %v6510
      %v6518 = vadd.f32 %v6479, %v6510
      %v6519 = vadd.f32 %v6480, %v6510
      %v6520 = vadd.f32 %v6481, %v6510
      %v6521 = vadd.f32 %v6482, %v6510
      %v6522 = vadd.f32 %v6483, %v6510
      %v6523 = vadd.f32 %v6484, %v6510
      %v6524 = vadd.f32 %v6485, %v6510
      %v6525 = vadd.f32 %v6486, %v6510
      %v6526 = vadd.f32 %v6487, %v6510
      %v6527 = vadd.f32 %v6488, %v6510
      %v6528 = vadd.f32 %v6489, %v6510
      %v6529 = vadd.f32 %v6490, %v6510
      %v6530 = vadd.f32 %v6491, %v6510
      %v6531 = vadd.f32 %v6492, %v6510
      %v6532 = vadd.f32 %v6493, %v6510
      %v6533 = vadd.f32 %v6494, %v6510
      %v6534 = vadd.f32 %v6495, %v6510
      %v6535 = vadd.f32 %v6496, %v6510
      %v6536 = vadd.f32 %v6497, %v6510
      %v6537 = vadd.f32 %v6498, %v6510
      %v6538 = vadd.f32 %v6499, %v6510
      %v6539 = vadd.f32 %v6500, %v6510
      %v6540 = vadd.f32 %v6501, %v6510
      %v6541 = vadd.f32 %v6502, %v6510
      %v6542 = vadd.f32 %v6503, %v6510
      %v6543 = vadd.f32 %v6504, %v6510
      %v6544 = vxor.u32 %v6512, 2147483648
      %v6545 = vxor.u32 %v6513, 2147483648
      %v6546 = vxor.u32 %v6514, 2147483648
      %v6547 = vxor.u32 %v6515, 2147483648
      %v6548 = vxor.u32 %v6516, 2147483648
      %v6549 = vxor.u32 %v6517, 2147483648
      %v6550 = vxor.u32 %v6518, 2147483648
      %v6551 = vxor.u32 %v6519, 2147483648
      %v6552 = vxor.u32 %v6520, 2147483648
      %v6553 = vxor.u32 %v6521, 2147483648
      %v6554 = vxor.u32 %v6522, 2147483648
      %v6555 = vxor.u32 %v6523, 2147483648
      %v6556 = vxor.u32 %v6524, 2147483648
      %v6557 = vxor.u32 %v6525, 2147483648
      %v6558 = vxor.u32 %v6526, 2147483648
      %v6559 = vxor.u32 %v6527, 2147483648
      %v6560 = vxor.u32 %v6528, 2147483648
      %v6561 = vxor.u32 %v6529, 2147483648
      %v6562 = vxor.u32 %v6530, 2147483648
      %v6563 = vxor.u32 %v6531, 2147483648
      %v6564 = vxor.u32 %v6532, 2147483648
      %v6565 = vxor.u32 %v6533, 2147483648
      %v6566 = vxor.u32 %v6534, 2147483648
      %v6567 = vxor.u32 %v6535, 2147483648
      %v6568 = vxor.u32 %v6536, 2147483648
      %v6569 = vxor.u32 %v6537, 2147483648
      %v6570 = vxor.u32 %v6538, 2147483648
      %v6571 = vxor.u32 %v6539, 2147483648
      %v6572 = vxor.u32 %v6540, 2147483648
      %v6573 = vxor.u32 %v6541, 2147483648
      %v6574 = vxor.u32 %v6542, 2147483648
      %v6575 = vxor.u32 %v6543, 2147483648
      %v6576 = vmul.f32 %v6544, 1.442695
      %v6577 = vpow.pop %v6576
      %v6578 = vmul.f32 %v6545, 1.442695
      %v6579 = vpow.pop %v6578
      %v6580 = vmul.f32 %v6546, 1.442695
      %v6581 = vpow.pop %v6580
      %v6582 = vmul.f32 %v6547, 1.442695
      %v6583 = vpow.pop %v6582
      %v6584 = vmul.f32 %v6548, 1.442695
      %v6585 = vpow.pop %v6584
      %v6586 = vmul.f32 %v6549, 1.442695
      %v6587 = vpow.pop %v6586
      %v6588 = vmul.f32 %v6550, 1.442695
      %v6589 = vpow.pop %v6588
      %v6590 = vmul.f32 %v6551, 1.442695
      %v6591 = vpow.pop %v6590
      %v6592 = vmul.f32 %v6552, 1.442695
      %v6593 = vpow.pop %v6592
      %v6594 = vmul.f32 %v6553, 1.442695
      %v6595 = vpow.pop %v6594
      %v6596 = vmul.f32 %v6554, 1.442695
      %v6597 = vpow.pop %v6596
      %v6598 = vmul.f32 %v6555, 1.442695
      %v6599 = vpow.pop %v6598
      %v6600 = vmul.f32 %v6556, 1.442695
      %v6601 = vpow.pop %v6600
      %v6602 = vmul.f32 %v6557, 1.442695
      %v6603 = vpow.pop %v6602
      %v6604 = vmul.f32 %v6558, 1.442695
      %v6605 = vpow.pop %v6604
      %v6606 = vmul.f32 %v6559, 1.442695
      %v6607 = vpow.pop %v6606
      %v6608 = vmul.f32 %v6560, 1.442695
      %v6609 = vpow.pop %v6608
      %v6610 = vmul.f32 %v6561, 1.442695
      %v6611 = vpow.pop %v6610
      %v6612 = vmul.f32 %v6562, 1.442695
      %v6613 = vpow.pop %v6612
      %v6614 = vmul.f32 %v6563, 1.442695
      %v6615 = vpow.pop %v6614
      %v6616 = vmul.f32 %v6564, 1.442695
      %v6617 = vpow.pop %v6616
      %v6618 = vmul.f32 %v6565, 1.442695
      %v6619 = vpow.pop %v6618
      %v6620 = vmul.f32 %v6566, 1.442695
      %v6621 = vpow.pop %v6620
      %v6622 = vmul.f32 %v6567, 1.442695
      %v6623 = vpow.pop %v6622
      %v6624 = vmul.f32 %v6568, 1.442695
      %v6625 = vpow.pop %v6624
      %v6626 = vmul.f32 %v6569, 1.442695
      %v6627 = vpow.pop %v6626
      %v6628 = vmul.f32 %v6570, 1.442695
      %v6629 = vpow.pop %v6628
      %v6630 = vmul.f32 %v6571, 1.442695
      %v6631 = vpow.pop %v6630
      %v6632 = vmul.f32 %v6572, 1.442695
      %v6633 = vpow.pop %v6632
      %v6634 = vmul.f32 %v6573, 1.442695
      %v6635 = vpow.pop %v6634
      %v6636 = vmul.f32 %v6574, 1.442695
      %v6637 = vpow.pop %v6636
      %v6638 = vmul.f32 %v6575, 1.442695
      %v6639 = vpow.pop %v6638
      %v6640 = vadd.f32 %v6577, 1.0
      %v6641 = vadd.f32 %v6579, 1.0
      %v6642 = vadd.f32 %v6581, 1.0
      %v6643 = vadd.f32 %v6583, 1.0
      %v6644 = vadd.f32 %v6585, 1.0
      %v6645 = vadd.f32 %v6587, 1.0
      %v6646 = vadd.f32 %v6589, 1.0
      %v6647 = vadd.f32 %v6591, 1.0
      %v6648 = vadd.f32 %v6593, 1.0
      %v6649 = vadd.f32 %v6595, 1.0
      %v6650 = vadd.f32 %v6597, 1.0
      %v6651 = vadd.f32 %v6599, 1.0
      %v6652 = vadd.f32 %v6601, 1.0
      %v6653 = vadd.f32 %v6603, 1.0
      %v6654 = vadd.f32 %v6605, 1.0
      %v6655 = vadd.f32 %v6607, 1.0
      %v6656 = vadd.f32 %v6609, 1.0
      %v6657 = vadd.f32 %v6611, 1.0
      %v6658 = vadd.f32 %v6613, 1.0
      %v6659 = vadd.f32 %v6615, 1.0
      %v6660 = vadd.f32 %v6617, 1.0
      %v6661 = vadd.f32 %v6619, 1.0
      %v6662 = vadd.f32 %v6621, 1.0
      %v6663 = vadd.f32 %v6623, 1.0
      %v6664 = vadd.f32 %v6625, 1.0
      %v6665 = vadd.f32 %v6627, 1.0
      %v6666 = vadd.f32 %v6629, 1.0
      %v6667 = vadd.f32 %v6631, 1.0
      %v6668 = vadd.f32 %v6633, 1.0
      %v6669 = vadd.f32 %v6635, 1.0
      %v6670 = vadd.f32 %v6637, 1.0
      %v6671 = vadd.f32 %v6639, 1.0
      %v6672 = vrcp.pop %v6640
      %v6673 = vmul.f32 1.0, %v6672
      %v6674 = vrcp.pop %v6641
      %v6675 = vmul.f32 1.0, %v6674
      %v6676 = vrcp.pop %v6642
      %v6677 = vmul.f32 1.0, %v6676
      %v6678 = vrcp.pop %v6643
      %v6679 = vmul.f32 1.0, %v6678
      %v6680 = vrcp.pop %v6644
      %v6681 = vmul.f32 1.0, %v6680
      %v6682 = vrcp.pop %v6645
      %v6683 = vmul.f32 1.0, %v6682
      %v6684 = vrcp.pop %v6646
      %v6685 = vmul.f32 1.0, %v6684
      %v6686 = vrcp.pop %v6647
      %v6687 = vmul.f32 1.0, %v6686
      %v6688 = vrcp.pop %v6648
      %v6689 = vmul.f32 1.0, %v6688
      %v6690 = vrcp.pop %v6649
      %v6691 = vmul.f32 1.0, %v6690
      %v6692 = vrcp.pop %v6650
      %v6693 = vmul.f32 1.0, %v6692
      %v6694 = vrcp.pop %v6651
      %v6695 = vmul.f32 1.0, %v6694
      %v6696 = vrcp.pop %v6652
      %v6697 = vmul.f32 1.0, %v6696
      %v6698 = vrcp.pop %v6653
      %v6699 = vmul.f32 1.0, %v6698
      %v6700 = vrcp.pop %v6654
      %v6701 = vmul.f32 1.0, %v6700
      %v6702 = vrcp.pop %v6655
      %v6703 = vmul.f32 1.0, %v6702
      %v6704 = vrcp.pop %v6656
      %v6705 = vmul.f32 1.0, %v6704
      %v6706 = vrcp.pop %v6657
      %v6707 = vmul.f32 1.0, %v6706
      %v6708 = vrcp.pop %v6658
      %v6709 = vmul.f32 1.0, %v6708
      %v6710 = vrcp.pop %v6659
      %v6711 = vmul.f32 1.0, %v6710
      %v6712 = vrcp.pop %v6660
      %v6713 = vmul.f32 1.0, %v6712
      %v6714 = vrcp.pop %v6661
      %v6715 = vmul.f32 1.0, %v6714
      %v6716 = vrcp.pop %v6662
      %v6717 = vmul.f32 1.0, %v6716
      %v6718 = vrcp.pop %v6663
      %v6719 = vmul.f32 1.0, %v6718
      %v6720 = vrcp.pop %v6664
      %v6721 = vmul.f32 1.0, %v6720
      %v6722 = vrcp.pop %v6665
      %v6723 = vmul.f32 1.0, %v6722
      %v6724 = vrcp.pop %v6666
      %v6725 = vmul.f32 1.0, %v6724
      %v6726 = vrcp.pop %v6667
      %v6727 = vmul.f32 1.0, %v6726
      %v6728 = vrcp.pop %v6668
      %v6729 = vmul.f32 1.0, %v6728
      %v6730 = vrcp.pop %v6669
      %v6731 = vmul.f32 1.0, %v6730
      %v6732 = vrcp.pop %v6670
      %v6733 = vmul.f32 1.0, %v6732
      %v6734 = vrcp.pop %v6671
      %v6735 = vmul.f32 1.0, %v6734
      %v6736 = vmul.f32 %v6512, %v6673
      %v6737 = vmul.f32 %v6513, %v6675
      %v6738 = vmul.f32 %v6514, %v6677
      %v6739 = vmul.f32 %v6515, %v6679
      %v6740 = vmul.f32 %v6516, %v6681
      %v6741 = vmul.f32 %v6517, %v6683
      %v6742 = vmul.f32 %v6518, %v6685
      %v6743 = vmul.f32 %v6519, %v6687
      %v6744 = vmul.f32 %v6520, %v6689
      %v6745 = vmul.f32 %v6521, %v6691
      %v6746 = vmul.f32 %v6522, %v6693
      %v6747 = vmul.f32 %v6523, %v6695
      %v6748 = vmul.f32 %v6524, %v6697
      %v6749 = vmul.f32 %v6525, %v6699
      %v6750 = vmul.f32 %v6526, %v6701
      %v6751 = vmul.f32 %v6527, %v6703
      %v6752 = vmul.f32 %v6528, %v6705
      %v6753 = vmul.f32 %v6529, %v6707
      %v6754 = vmul.f32 %v6530, %v6709
      %v6755 = vmul.f32 %v6531, %v6711
      %v6756 = vmul.f32 %v6532, %v6713
      %v6757 = vmul.f32 %v6533, %v6715
      %v6758 = vmul.f32 %v6534, %v6717
      %v6759 = vmul.f32 %v6535, %v6719
      %v6760 = vmul.f32 %v6536, %v6721
      %v6761 = vmul.f32 %v6537, %v6723
      %v6762 = vmul.f32 %v6538, %v6725
      %v6763 = vmul.f32 %v6539, %v6727
      %v6764 = vmul.f32 %v6540, %v6729
      %v6765 = vmul.f32 %v6541, %v6731
      %v6766 = vmul.f32 %v6542, %v6733
      %v6767 = vmul.f32 %v6543, %v6735
      %v6768 = vld [vmem:[%s320] sm:$0xff]
      %v6769 = vld [vmem:[%s320 + $0x8] sm:$0xff]
      %v6770 = vld [vmem:[%s320 + $0x10] sm:$0xff]
      %v6771 = vld [vmem:[%s320 + $0x18] sm:$0xff]
      %v6772 = vld [vmem:[%s320 + $0x20] sm:$0xff]
      %v6773 = vld [vmem:[%s320 + $0x28] sm:$0xff]
      %v6774 = vld [vmem:[%s320 + $0x30] sm:$0xff]
      %v6775 = vld [vmem:[%s320 + $0x38] sm:$0xff]
      %v6776 = vld [vmem:[%s320 + $0x40] sm:$0xff]
      %v6777 = vld [vmem:[%s320 + $0x48] sm:$0xff]
      %v6778 = vld [vmem:[%s320 + $0x50] sm:$0xff]
      %v6779 = vld [vmem:[%s320 + $0x58] sm:$0xff]
      %v6780 = vld [vmem:[%s320 + $0x60] sm:$0xff]
      %v6781 = vld [vmem:[%s320 + $0x68] sm:$0xff]
      %v6782 = vld [vmem:[%s320 + $0x70] sm:$0xff]
      %v6783 = vld [vmem:[%s320 + $0x78] sm:$0xff]
      %v6784 = vld [vmem:[%s320 + $0x80] sm:$0xff]
      %v6785 = vld [vmem:[%s320 + $0x88] sm:$0xff]
      %v6786 = vld [vmem:[%s320 + $0x90] sm:$0xff]
      %v6787 = vld [vmem:[%s320 + $0x98] sm:$0xff]
      %v6788 = vld [vmem:[%s320 + $0xa0] sm:$0xff]
      %v6789 = vld [vmem:[%s320 + $0xa8] sm:$0xff]
      %v6790 = vld [vmem:[%s320 + $0xb0] sm:$0xff]
      %v6791 = vld [vmem:[%s320 + $0xb8] sm:$0xff]
      %v6792 = vld [vmem:[%s320 + $0xc0] sm:$0xff]
      %v6793 = vld [vmem:[%s320 + $0xc8] sm:$0xff]
      %v6794 = vld [vmem:[%s320 + $0xd0] sm:$0xff]
      %v6795 = vld [vmem:[%s320 + $0xd8] sm:$0xff]
      %v6796 = vld [vmem:[%s320 + $0xe0] sm:$0xff]
      %v6797 = vld [vmem:[%s320 + $0xe8] sm:$0xff]
      %v6798 = vld [vmem:[%s320 + $0xf0] sm:$0xff]
      %v6799 = vld [vmem:[%s320 + $0xf8] sm:$0xff]
      %v6800 = vadd.f32 %v6736, %v6768
      %v6801 = vadd.f32 %v6737, %v6769
      %v6802 = vadd.f32 %v6738, %v6770
      %v6803 = vadd.f32 %v6739, %v6771
      %v6804 = vadd.f32 %v6740, %v6772
      %v6805 = vadd.f32 %v6741, %v6773
      %v6806 = vadd.f32 %v6742, %v6774
      %v6807 = vadd.f32 %v6743, %v6775
      %v6808 = vadd.f32 %v6744, %v6776
      %v6809 = vadd.f32 %v6745, %v6777
      %v6810 = vadd.f32 %v6746, %v6778
      %v6811 = vadd.f32 %v6747, %v6779
      %v6812 = vadd.f32 %v6748, %v6780
      %v6813 = vadd.f32 %v6749, %v6781
      %v6814 = vadd.f32 %v6750, %v6782
      %v6815 = vadd.f32 %v6751, %v6783
      %v6816 = vadd.f32 %v6752, %v6784
      %v6817 = vadd.f32 %v6753, %v6785
      %v6818 = vadd.f32 %v6754, %v6786
      %v6819 = vadd.f32 %v6755, %v6787
      %v6820 = vadd.f32 %v6756, %v6788
      %v6821 = vadd.f32 %v6757, %v6789
      %v6822 = vadd.f32 %v6758, %v6790
      %v6823 = vadd.f32 %v6759, %v6791
      %v6824 = vadd.f32 %v6760, %v6792
      %v6825 = vadd.f32 %v6761, %v6793
      %v6826 = vadd.f32 %v6762, %v6794
      %v6827 = vadd.f32 %v6763, %v6795
      %v6828 = vadd.f32 %v6764, %v6796
      %v6829 = vadd.f32 %v6765, %v6797
      %v6830 = vadd.f32 %v6766, %v6798
      %v6831 = vadd.f32 %v6767, %v6799
      %6832 = vst [vmem:[%s325] sm:$0xff] %v6800
      %6833 = vst [vmem:[%s325 + $0x8] sm:$0xff] %v6801
      %6834 = vst [vmem:[%s325 + $0x10] sm:$0xff] %v6802
      %6835 = vst [vmem:[%s325 + $0x18] sm:$0xff] %v6803
      %6836 = vst [vmem:[%s325 + $0x20] sm:$0xff] %v6804
      %6837 = vst [vmem:[%s325 + $0x28] sm:$0xff] %v6805
      %6838 = vst [vmem:[%s325 + $0x30] sm:$0xff] %v6806
      %6839 = vst [vmem:[%s325 + $0x38] sm:$0xff] %v6807
      %6840 = vst [vmem:[%s325 + $0x40] sm:$0xff] %v6808
      %6841 = vst [vmem:[%s325 + $0x48] sm:$0xff] %v6809
      %6842 = vst [vmem:[%s325 + $0x50] sm:$0xff] %v6810
      %6843 = vst [vmem:[%s325 + $0x58] sm:$0xff] %v6811
      %6844 = vst [vmem:[%s325 + $0x60] sm:$0xff] %v6812
      %6845 = vst [vmem:[%s325 + $0x68] sm:$0xff] %v6813
      %6846 = vst [vmem:[%s325 + $0x70] sm:$0xff] %v6814
      %6847 = vst [vmem:[%s325 + $0x78] sm:$0xff] %v6815
      %6848 = vst [vmem:[%s325 + $0x80] sm:$0xff] %v6816
      %6849 = vst [vmem:[%s325 + $0x88] sm:$0xff] %v6817
      %6850 = vst [vmem:[%s325 + $0x90] sm:$0xff] %v6818
      %6851 = vst [vmem:[%s325 + $0x98] sm:$0xff] %v6819
      %6852 = vst [vmem:[%s325 + $0xa0] sm:$0xff] %v6820
      %6853 = vst [vmem:[%s325 + $0xa8] sm:$0xff] %v6821
      %6854 = vst [vmem:[%s325 + $0xb0] sm:$0xff] %v6822
      %6855 = vst [vmem:[%s325 + $0xb8] sm:$0xff] %v6823
      %6856 = vst [vmem:[%s325 + $0xc0] sm:$0xff] %v6824
      %6857 = vst [vmem:[%s325 + $0xc8] sm:$0xff] %v6825
      %6858 = vst [vmem:[%s325 + $0xd0] sm:$0xff] %v6826
      %6859 = vst [vmem:[%s325 + $0xd8] sm:$0xff] %v6827
      %6860 = vst [vmem:[%s325 + $0xe0] sm:$0xff] %v6828
      %6861 = vst [vmem:[%s325 + $0xe8] sm:$0xff] %v6829
      %6862 = vst [vmem:[%s325 + $0xf0] sm:$0xff] %v6830
      %6863 = vst [vmem:[%s325 + $0xf8] sm:$0xff] %v6831
      %p6864 = scmp.lt.s32.totalorder %s19, 1
      %s6865 = scalar_select %p6864, %s19, 1
      %s6866 = smul.addr %s6865, 32
      %s6867 = smul.addr %s6866, 8
      %s6868 = scalar_lea.vmem %s8, %s6867
      // Predicated region
      $region53: #{bottleneck_forward.1} parent=51 // pred_check
        %p6869 = pneg %p215
      $region54: #{bottleneck_forward.1} parent=51 // pred_check_branch
        %6871 = sbr.rel (%p6869) target = $region56
      $region55: #{bottleneck_forward.1} parent=51 // pred_region
        _
      $region56: #{bottleneck_forward.1} parent=51 // pred_fallthru
        _
    $region52: #{bottleneck_forward.1} parent=5 // pred_fallthru
      _
    %p6872 = scmp.le.s32.totalorder 2, %s14
    // Predicated region
    $region57: #{bottleneck_forward.1} parent=5 // pred_check
      %p6873 = pneg %p6872
    $region58: #{bottleneck_forward.1} parent=5 // pred_check_branch
      %6875 = sbr.rel (%p6873) target = $region60
    $region59: #{bottleneck_forward.1} parent=5 // pred_region
      %s6876 = ssub.s32 %s14, 2
      // Predicated region
      $region61: #{bottleneck_forward.1} parent=59 // pred_check
        %p6877 = pneg %p221
      $region62: #{bottleneck_forward.1} parent=59 // pred_check_branch
        %6879 = sbr.rel (%p6877) target = $region64
      $region63: #{bottleneck_forward.1} parent=59 // pred_region
        %p6880 = scmp.lt.s32.totalorder %s20, 1
        %s6881 = scalar_select %p6880, %s20, 1
        %s6882 = smul.addr %s6881, 32
        %s6883 = smul.addr %s6882, 8
        %s6884 = scalar_lea.vmem %s8, %s6883
      $region64: #{bottleneck_forward.1} parent=59 // pred_fallthru
        _
    $region60: #{bottleneck_forward.1} parent=5 // pred_fallthru
      _
  $region6: #{bottleneck_forward.1} parent=0 // loop_footer
    %s18 = sadd.s32 1, %s14
  $region7: #{bottleneck_forward.1} parent=0 // loop_footer_branch
    %13 = sbr.rel target = $region3
  $region8: #{bottleneck_forward.1} parent=0 // loop_exit
    _

</llo_original>
